<compile_context>
chip_gen: v6e
topology: v6e:2x2x1
jax: 0.10.0
libtpu: 0.0.40
codegen_flags: <defaults>
</compile_context>

<pallas_src>
import jax
import jax.numpy as jnp
import numpy as np
from jax.experimental import pallas as pl
from jax.experimental.pallas import tpu as pltpu

# ----------------------------- model config ---------------------------------
VOCAB_SIZE = 50
EMBED_DIM = 16
HIDDEN_DIM = 32
OUTPUT_DIM = 3
N_LAYERS = 2          # kernel below is written for exactly 2 layers
BIDIRECTIONAL = True
PAD_IDX = 0

SEQ_LEN = 8
BATCH = 2


# -------------------- single fused Pallas kernel -----------------------------
def _bilstm_attn_kernel(emb_ref, ids_ref, len_ref,
                        wih0_ref, whh0_ref, b0_ref,
                        wih1_ref, whh1_ref, b1_ref,
                        attn_w_ref, attn_b_ref, fc_w_ref, fc_b_ref,
                        rep_ref, attn_ref,
                        gx_scr, out_scr):
    """Fused embedding + 2-layer BiLSTM + attention + FC.

    emb_ref:  (VP, E)      zero-padded embedding table (pad_idx row is zero)
    ids_ref:  (S*BP, 1)    int32 token ids, row index = t*BP + b
    len_ref:  (BP, 1)      int32 sequence lengths (0 for padded batch rows)
    wih{l}:   (in_l, 8H)   gate-interleaved [i_f|i_r|f_f|f_r|g_f|g_r|o_f|o_r]
    whh{l}:   (2H, 8H)     block-structured so h=[h_f|h_r] drives both dirs
    b{l}:     (1, 8H)      b_ih + b_hh, gate-interleaved
    outputs:  rep (BP, O), attn (BP, S)  (already time-major for the caller)
    scratch:  gx (S,BP,8H) time-aligned input gates, out (S,BP,2H) layer output
    """
    S, BP, H2 = out_scr.shape
    H = H2 // 2
    G2 = 2 * H                      # width of one fwd|rev gate slab
    SB = S * BP
    VP = emb_ref.shape[0]

    # ------------- prologue: constants / masks computed exactly once --------
    lens = len_ref[...]                                          # (BP, 1) int32
    tio = jax.lax.broadcasted_iota(jnp.int32, (S, BP, H2), 0)
    cio = jax.lax.broadcasted_iota(jnp.int32, (S, BP, H2), 2)
    # fwd half (lanes < H) is keyed on time t, rev half on time S-1-t.
    step_time = jnp.where(cio < H, tio, (S - 1) - tio)
    mask_all = (step_time < lens[None, :, :]).astype(jnp.float32)  # (S,BP,2H)
    keep_all = 1.0 - mask_all

    # column selector over the 8H gate vector: first H cols of each 2H slab
    # belong to the forward direction.
    col = jax.lax.broadcasted_iota(jnp.int32, (BP, 8 * H), 1)
    is_fwd = (col % G2) < H                                      # (BP, 8H) bool

    # ------------- in-kernel embedding lookup (one-hot matmul) --------------
    ids = ids_ref[...]                                           # (S*BP, 1)
    vio = jax.lax.broadcasted_iota(jnp.int32, (SB, VP), 1)
    onehot = (vio == ids).astype(jnp.float32)                    # (S*BP, VP)
    x = jnp.dot(onehot, emb_ref[...],
                preferred_element_type=jnp.float32)              # (S*BP, E)
    # dropout(embedded) -> identity (eval).  TODO(synk): training-mode dropout.

    def cell(gates, c_prev):
        # gates: (BP, 8H) interleaved; each slab is (BP, 2H) = [fwd | rev].
        i = jax.nn.sigmoid(gates[:, 0:G2])
        g = jnp.tanh(gates[:, 2 * G2:3 * G2])
        o = jax.nn.sigmoid(gates[:, 3 * G2:4 * G2])
        if c_prev is None:                    # first step: c_prev == 0
            c_new = i * g
        else:
            f = jax.nn.sigmoid(gates[:, G2:2 * G2])
            c_new = f * c_prev + i * g
        return o * jnp.tanh(c_new), c_new

    def run_recurrence(whh):
        # Fully unrolled fused fwd+rev recurrence.  h/c live in registers.
        h = None
        c = None
        for t in range(S):
            gx_t = gx_scr[t]                                     # (BP, 8H)
            if h is None:
                gates = gx_t                                     # h0 == 0
            else:
                gates = gx_t + jnp.dot(h, whh,
                                       preferred_element_type=jnp.float32)
            h_new, c_new = cell(gates, c)
            m = mask_all[t]                                      # (BP, 2H)
            k = keep_all[t]
            h_out = m * h_new                 # padded positions emit exactly 0
            c = m * c_new if c is None else m * c_new + k * c
            h = h_out if h is None else h_out + k * h
            # fwd half belongs to time t, rev half to time S-1-t.
            out_scr[t, :, 0:H] = h_out[:, 0:H]
            out_scr[S - 1 - t, :, H:H2] = h_out[:, H:H2]

    # ------------------------------ layer 0 ----------------------------------
    # One batched M=S*BP projection matmul; bias folded in once.
    gA0 = jnp.dot(x, wih0_ref[...],
                  preferred_element_type=jnp.float32) + b0_ref[...]   # (S*BP,8H)
    for t in range(S):
        ga_f = gA0[t * BP:(t + 1) * BP, :]
        ga_r = gA0[(S - 1 - t) * BP:(S - t) * BP, :]
        gx_scr[t] = jnp.where(is_fwd, ga_f, ga_r)
    run_recurrence(whh0_ref[...])             # recurrent weight loaded once

    # ------------------------------ layer 1 ----------------------------------
    wih1 = wih1_ref[...]
    b1 = b1_ref[...]
    proj = [jnp.dot(out_scr[t], wih1,
                    preferred_element_type=jnp.float32) + b1
            for t in range(S)]                # off the serial critical path
    for t in range(S):
        gx_scr[t] = jnp.where(is_fwd, proj[t], proj[S - 1 - t])
    run_recurrence(whh1_ref[...])

    # ------------- epilogue: tanh -> attention -> weighted sum -> FC ---------
    o_all = jnp.tanh(out_scr[...])                               # (S, BP, 2H)
    w_att = attn_w_ref[...]                                      # (1, 2H)
    scores = (jnp.sum(o_all * w_att[None, :, :], axis=-1, keepdims=True)
              + attn_b_ref[...])                                 # (S, BP, 1)
    # softmax over the sequence dim (dim=1 of the (B,S,1) PyTorch scores)
    scores = scores - jnp.max(scores, axis=0, keepdims=True)
    e = jnp.exp(scores)
    att = e / jnp.sum(e, axis=0, keepdims=True)                  # (S, BP, 1)

    rep = jnp.sum(att * o_all, axis=0)                           # (BP, 2H)
    rep_ref[...] = (jnp.dot(rep, fc_w_ref[...],
                            preferred_element_type=jnp.float32)
                    + fc_b_ref[...])                             # (BP, O)

    # Emit attention already transposed to (BP, S) (no wrapper transpose):
    # att_bs[b, s] = att[s, b] via an iota-select + time reduction.
    sio = jax.lax.broadcasted_iota(jnp.int32, (S, BP, S), 0)
    kio = jax.lax.broadcasted_iota(jnp.int32, (S, BP, S), 2)
    attn_ref[...] = jnp.sum(jnp.where(sio == kio, att, 0.0), axis=0)   # (BP, S)


# ----------------------------- wrapper ---------------------------------------
def _interleave_gate_cols(mf, mr):
    """(rows,4H) fwd + (rows,4H) rev, gate order [i|f|g|o] ->
    (rows,8H) interleaved [i_f|i_r|f_f|f_r|g_f|g_r|o_f|o_r]."""
    rows = mf.shape[0]
    h = mf.shape[1] // 4
    return jnp.stack([mf.reshape(rows, 4, h), mr.reshape(rows, 4, h)],
                     axis=2).reshape(rows, 8 * h)


def _fuse_layer(layer_params, H):
    """Fuse fwd/rev weights of one bidirectional LSTM layer."""
    pf, pr = layer_params
    wih = _interleave_gate_cols(pf["w_ih"].T, pr["w_ih"].T)          # (in, 8H)
    z = jnp.zeros((H, 4 * H), jnp.float32)
    whh = _interleave_gate_cols(
        jnp.concatenate([pf["w_hh"].T, z], axis=0),
        jnp.concatenate([z, pr["w_hh"].T], axis=0))                  # (2H, 8H)
    b = _interleave_gate_cols((pf["b_ih"] + pf["b_hh"]).reshape(1, 4 * H),
                              (pr["b_ih"] + pr["b_hh"]).reshape(1, 4 * H))
    return wih, whh, b                                               # b: (1,8H)


def rnn_forward(params, text, lengths):
    S, B = text.shape
    H = HIDDEN_DIM
    BP = max(8, ((B + 7) // 8) * 8)           # pad batch to sublane width
    VP = ((VOCAB_SIZE + 7) // 8) * 8          # pad vocab rows for one-hot matmul

    # Token ids / lengths padded to BP; padded rows use PAD_IDX / length 0.
    text_p = jnp.full((S, BP), PAD_IDX, dtype=jnp.int32)
    text_p = text_p.at[:, :B].set(text.astype(jnp.int32))
    ids = text_p.reshape(S * BP, 1)

    len_p = jnp.zeros((BP, 1), dtype=jnp.int32)
    len_p = len_p.at[:B, 0].set(lengths.astype(jnp.int32))

    emb_p = jnp.zeros((VP, EMBED_DIM), jnp.float32)
    emb_p = emb_p.at[:VOCAB_SIZE, :].set(params["embedding"])

    wih0, whh0, b0 = _fuse_layer(params["lstm"][0], H)
    wih1, whh1, b1 = _fuse_layer(params["lstm"][1], H)

    rep_p, att_p = pl.pallas_call(
        _bilstm_attn_kernel,
        out_shape=(jax.ShapeDtypeStruct((BP, OUTPUT_DIM), jnp.float32),
                   jax.ShapeDtypeStruct((BP, S), jnp.float32)),
        scratch_shapes=[
            pltpu.VMEM((S, BP, 8 * H), jnp.float32),   # time-aligned input gates
            pltpu.VMEM((S, BP, 2 * H), jnp.float32),   # layer output [fwd | rev]
        ],
    )(emb_p, ids, len_p,
      wih0, whh0, b0, wih1, whh1, b1,
      params["attn_w"], params["attn_b"].reshape(1, 1),
      params["fc_w"].T, params["fc_b"].reshape(1, OUTPUT_DIM))

    representation = rep_p[:B]                                  # (B, O)
    attention = att_p[:B][:, None, :]                           # (B, 1, S)
    return representation, attention


rnn_forward_jit = jax.jit(rnn_forward)


# --------------------------- pure-JAX reference ------------------------------
def _lstm_dir_ref(x, mask, w_ih, w_hh, b, H, reverse):
    S, B, _ = x.shape

    def step(carry, inp):
        h, c = carry
        xt, mt = inp
        gates = xt @ w_ih.T + h @ w_hh.T + b
        i = jax.nn.sigmoid(gates[:, :H])
        f = jax.nn.sigmoid(gates[:, H:2 * H])
        g = jnp.tanh(gates[:, 2 * H:3 * H])
        o = jax.nn.sigmoid(gates[:, 3 * H:])
        c_new = f * c + i * g
        h_new = o * jnp.tanh(c_new)
        h2 = mt * h_new + (1 - mt) * h
        c2 = mt * c_new + (1 - mt) * c
        return (h2, c2), mt * h_new

    xs = (x[::-1], mask[::-1]) if reverse else (x, mask)
    init = (jnp.zeros((B, H), jnp.float32), jnp.zeros((B, H), jnp.float32))
    _, outs = jax.lax.scan(step, init, xs)
    return outs[::-1] if reverse else outs


def rnn_forward_ref(params, text, lengths):
    S, B = text.shape
    H = HIDDEN_DIM
    emb = jnp.take(params["embedding"], text, axis=0)
    mask = (jnp.arange(S)[:, None] < lengths[None, :]).astype(jnp.float32)[:, :, None]
    layer_in = emb
    for layer in range(N_LAYERS):
        outs = []
        for d, rev in enumerate((False, True)):
            p = params["lstm"][layer][d]
            outs.append(_lstm_dir_ref(layer_in, mask, p["w_ih"], p["w_hh"],
                                      p["b_ih"] + p["b_hh"], H, rev))
        layer_in = jnp.concatenate(outs, axis=-1)
    output = jnp.tanh(jnp.transpose(layer_in, (1, 0, 2)))          # (B, S, 2H)
    scores = output @ params["attn_w"].T + params["attn_b"]        # (B, S, 1)
    attn = jax.nn.softmax(scores, axis=1)[..., 0]                  # (B, S)
    rep = jnp.einsum("bs,bsd->bd", attn, output)
    rep = rep @ params["fc_w"].T + params["fc_b"]
    return rep, attn.reshape(B, 1, S)


# ------------------------------- param init ----------------------------------
def init_params(key):
    keys = jax.random.split(key, 32)
    ki = iter(keys)
    params = {}

    emb = jax.random.normal(next(ki), (VOCAB_SIZE, EMBED_DIM), jnp.float32)
    emb = emb.at[PAD_IDX].set(0.0)                 # padding_idx row is zero
    params["embedding"] = emb

    k = 1.0 / np.sqrt(HIDDEN_DIM)
    lstm = []
    for layer in range(N_LAYERS):
        in_dim = EMBED_DIM if layer == 0 else 2 * HIDDEN_DIM
        dirs = []
        for _d in range(2):
            dirs.append({
                "w_ih": jax.random.uniform(next(ki), (4 * HIDDEN_DIM, in_dim),
                                           jnp.float32, -k, k),
                "w_hh": jax.random.uniform(next(ki), (4 * HIDDEN_DIM, HIDDEN_DIM),
                                           jnp.float32, -k, k),
                "b_ih": jax.random.uniform(next(ki), (4 * HIDDEN_DIM,),
                                           jnp.float32, -k, k),
                "b_hh": jax.random.uniform(next(ki), (4 * HIDDEN_DIM,),
                                           jnp.float32, -k, k),
            })
        lstm.append(dirs)
    params["lstm"] = lstm

    ka = 1.0 / np.sqrt(2 * HIDDEN_DIM)
    params["attn_w"] = jax.random.uniform(next(ki), (1, 2 * HIDDEN_DIM),
                                          jnp.float32, -ka, ka)
    params["attn_b"] = jax.random.uniform(next(ki), (1,), jnp.float32, -ka, ka)
    params["fc_w"] = jax.random.uniform(next(ki), (OUTPUT_DIM, 2 * HIDDEN_DIM),
                                        jnp.float32, -ka, ka)
    params["fc_b"] = jax.random.uniform(next(ki), (OUTPUT_DIM,),
                                        jnp.float32, -ka, ka)
    return params


# ---------------------------------- main --------------------------------------
if __name__ == "__main__":
    root = jax.random.PRNGKey(0)
    kp, kt = jax.random.split(root)
    params = init_params(kp)

    # text: (S, B) int32 token ids; padded positions use PAD_IDX.
    # max(lengths) == SEQ_LEN so pad_packed_sequence's output length equals SEQ_LEN.
    lengths_np = np.array([SEQ_LEN, SEQ_LEN - 3], dtype=np.int32)
    tok = jax.random.randint(kt, (SEQ_LEN, BATCH), 1, VOCAB_SIZE, jnp.int32)
    pad_mask = np.arange(SEQ_LEN)[:, None] < lengths_np[None, :]
    text = jnp.where(jnp.asarray(pad_mask), tok, PAD_IDX)
    lengths = jnp.asarray(lengths_np)

    rep, attention = jax.block_until_ready(rnn_forward_jit(params, text, lengths))

    rep_ref, attn_ref = jax.block_until_ready(rnn_forward_ref(params, text, lengths))
    np.testing.assert_allclose(np.asarray(rep), np.asarray(rep_ref),
                               rtol=1e-4, atol=1e-4)
    np.testing.assert_allclose(np.asarray(attention), np.asarray(attn_ref),
                               rtol=1e-4, atol=1e-4)

    assert rep.shape == (BATCH, OUTPUT_DIM)
    assert attention.shape == (BATCH, 1, SEQ_LEN)
    print("KERNEL_OK")
</pallas_src>

<mosaic_0001>
module attributes {stable_mosaic.version = 11 : i64} {
  func.func @_bilstm_attn_kernel(%arg0: memref<56x16xf32, #tpu.memory_space<vmem>>, %arg1: memref<64x1xi32, #tpu.memory_space<vmem>>, %arg2: memref<8x1xi32, #tpu.memory_space<vmem>>, %arg3: memref<16x256xf32, #tpu.memory_space<vmem>>, %arg4: memref<64x256xf32, #tpu.memory_space<vmem>>, %arg5: memref<1x256xf32, #tpu.memory_space<vmem>>, %arg6: memref<64x256xf32, #tpu.memory_space<vmem>>, %arg7: memref<64x256xf32, #tpu.memory_space<vmem>>, %arg8: memref<1x256xf32, #tpu.memory_space<vmem>>, %arg9: memref<1x64xf32, #tpu.memory_space<vmem>>, %arg10: memref<1x1xf32, #tpu.memory_space<vmem>>, %arg11: memref<64x3xf32, #tpu.memory_space<vmem>>, %arg12: memref<1x3xf32, #tpu.memory_space<vmem>>, %arg13: memref<8x3xf32, #tpu.memory_space<vmem>>, %arg14: memref<8x8xf32, #tpu.memory_space<vmem>>, %arg15: memref<8x8x256xf32, #tpu.memory_space<vmem>>, %arg16: memref<8x8x64xf32, #tpu.memory_space<vmem>>) attributes {dimension_semantics = [], scalar_prefetch = 0 : i64, scratch_operands = 2 : i64, tpu.core_type = #tpu.core_type<tc>} {
    %c0 = arith.constant 0 : index
    %c0_0 = arith.constant 0 : index
    %0 = vector.load %arg2[%c0, %c0_0] : memref<8x1xi32, #tpu.memory_space<vmem>>, vector<8x1xi32>
    %1 = tpu.iota {dimensions = array<i32: 0>} : vector<8x8x64xi32>
    %2 = tpu.iota {dimensions = array<i32: 2>} : vector<8x8x64xi32>
    %c32_i32 = arith.constant 32 : i32
    %3 = vector.broadcast %c32_i32 : i32 to vector<8x8x64xi32>
    %4 = arith.cmpi slt, %2, %3 : vector<8x8x64xi32>
    %c7_i32 = arith.constant 7 : i32
    %5 = vector.broadcast %c7_i32 : i32 to vector<8x8x64xi32>
    %6 = arith.subi %5, %1 : vector<8x8x64xi32>
    %7 = arith.select %4, %1, %6 : vector<8x8x64xi1>, vector<8x8x64xi32>
    %8 = vector.shape_cast %0 : vector<8x1xi32> to vector<1x8x1xi32>
    %9 = vector.broadcast %8 : vector<1x8x1xi32> to vector<8x8x64xi32>
    %10 = arith.cmpi slt, %7, %9 : vector<8x8x64xi32>
    %11 = arith.extui %10 : vector<8x8x64xi1> to vector<8x8x64xi32>
    %12 = arith.sitofp %11 : vector<8x8x64xi32> to vector<8x8x64xf32>
    %cst = arith.constant 1.000000e+00 : f32
    %13 = vector.broadcast %cst : f32 to vector<8x8x64xf32>
    %14 = arith.subf %13, %12 : vector<8x8x64xf32>
    %15 = tpu.iota {dimensions = array<i32: 1>} : vector<8x256xi32>
    %c64_i32 = arith.constant 64 : i32
    %c0_i32 = arith.constant 0 : i32
    %16 = arith.cmpi eq, %c64_i32, %c0_i32 : i32
    %c1_i32 = arith.constant 1 : i32
    %17 = arith.select %16, %c1_i32, %c64_i32 : i32
    %18 = vector.broadcast %17 : i32 to vector<8x256xi32>
    %19 = arith.remsi %15, %18 : vector<8x256xi32>
    %c0_i32_1 = arith.constant 0 : i32
    %20 = vector.broadcast %c0_i32_1 : i32 to vector<8x256xi32>
    %21 = arith.cmpi ne, %19, %20 : vector<8x256xi32>
    %c0_i32_2 = arith.constant 0 : i32
    %22 = vector.broadcast %c0_i32_2 : i32 to vector<8x256xi32>
    %23 = arith.cmpi slt, %19, %22 : vector<8x256xi32>
    %c0_i32_3 = arith.constant 0 : i32
    %24 = arith.cmpi slt, %17, %c0_i32_3 : i32
    %25 = vector.broadcast %24 : i1 to vector<8x256xi1>
    %26 = vector.broadcast %25 : vector<8x256xi1> to vector<8x256xi1>
    %27 = arith.xori %23, %26 : vector<8x256xi1>
    %28 = arith.andi %27, %21 : vector<8x256xi1>
    %29 = vector.broadcast %17 : i32 to vector<8x256xi32>
    %30 = arith.addi %19, %29 : vector<8x256xi32>
    %31 = arith.select %28, %30, %19 : vector<8x256xi1>, vector<8x256xi32>
    %c32_i32_4 = arith.constant 32 : i32
    %32 = vector.broadcast %c32_i32_4 : i32 to vector<8x256xi32>
    %33 = arith.cmpi slt, %31, %32 : vector<8x256xi32>
    %c0_5 = arith.constant 0 : index
    %c0_6 = arith.constant 0 : index
    %34 = vector.load %arg1[%c0_5, %c0_6] : memref<64x1xi32, #tpu.memory_space<vmem>>, vector<64x1xi32>
    %35 = tpu.iota {dimensions = array<i32: 1>} : vector<64x56xi32>
    %36 = vector.broadcast %34 : vector<64x1xi32> to vector<64x56xi32>
    %37 = arith.cmpi eq, %35, %36 : vector<64x56xi32>
    %38 = arith.extui %37 : vector<64x56xi1> to vector<64x56xi32>
    %39 = arith.sitofp %38 : vector<64x56xi32> to vector<64x56xf32>
    %c0_7 = arith.constant 0 : index
    %c0_8 = arith.constant 0 : index
    %40 = vector.load %arg0[%c0_7, %c0_8] : memref<56x16xf32, #tpu.memory_space<vmem>>, vector<56x16xf32>
    %cst_9 = arith.constant dense<0.000000e+00> : vector<64x16xf32>
    %41 = tpu.matmul %39, %40, %cst_9 {dimension_numbers = #tpu.dot_dimension_numbers<[1], [0], [0], [1], [0, 0, 1, 1], [], []>} : vector<64x56xf32>, vector<56x16xf32>, vector<64x16xf32> -> vector<64x16xf32>
    %c0_10 = arith.constant 0 : index
    %c0_11 = arith.constant 0 : index
    %42 = vector.load %arg3[%c0_10, %c0_11] : memref<16x256xf32, #tpu.memory_space<vmem>>, vector<16x256xf32>
    %cst_12 = arith.constant dense<0.000000e+00> : vector<64x256xf32>
    %43 = tpu.matmul %41, %42, %cst_12 {dimension_numbers = #tpu.dot_dimension_numbers<[1], [0], [0], [1], [0, 0, 1, 1], [], []>} : vector<64x16xf32>, vector<16x256xf32>, vector<64x256xf32> -> vector<64x256xf32>
    %c0_13 = arith.constant 0 : index
    %c0_14 = arith.constant 0 : index
    %44 = vector.load %arg5[%c0_13, %c0_14] : memref<1x256xf32, #tpu.memory_space<vmem>>, vector<1x256xf32>
    %45 = vector.broadcast %44 : vector<1x256xf32> to vector<64x256xf32>
    %46 = arith.addf %43, %45 : vector<64x256xf32>
    %47 = vector.extract_strided_slice %46 {offsets = [0, 0], sizes = [8, 256], strides = [1, 1]} : vector<64x256xf32> to vector<8x256xf32>
    %48 = vector.extract_strided_slice %46 {offsets = [56, 0], sizes = [8, 256], strides = [1, 1]} : vector<64x256xf32> to vector<8x256xf32>
    %49 = arith.select %33, %47, %48 : vector<8x256xi1>, vector<8x256xf32>
    %c0_15 = arith.constant 0 : index
    %c0_16 = arith.constant 0 : index
    %c0_17 = arith.constant 0 : index
    %50 = vector.load %arg15[%c0_15, %c0_16, %c0_17] : memref<8x8x256xf32, #tpu.memory_space<vmem>>, vector<1x8x256xf32>
    %51 = vector.shape_cast %50 : vector<1x8x256xf32> to vector<8x256xf32>
    %52 = vector.shape_cast %49 : vector<8x256xf32> to vector<1x8x256xf32>
    tpu.vector_store %arg15[%c0_15, %c0_16, %c0_17], %52 {strides = array<i32>} : memref<8x8x256xf32, #tpu.memory_space<vmem>>, vector<1x8x256xf32>,
    %53 = vector.extract_strided_slice %46 {offsets = [8, 0], sizes = [8, 256], strides = [1, 1]} : vector<64x256xf32> to vector<8x256xf32>
    %54 = vector.extract_strided_slice %46 {offsets = [48, 0], sizes = [8, 256], strides = [1, 1]} : vector<64x256xf32> to vector<8x256xf32>
    %55 = arith.select %33, %53, %54 : vector<8x256xi1>, vector<8x256xf32>
    %c1 = arith.constant 1 : index
    %c0_18 = arith.constant 0 : index
    %c0_19 = arith.constant 0 : index
    %56 = vector.load %arg15[%c1, %c0_18, %c0_19] : memref<8x8x256xf32, #tpu.memory_space<vmem>>, vector<1x8x256xf32>
    %57 = vector.shape_cast %56 : vector<1x8x256xf32> to vector<8x256xf32>
    %58 = vector.shape_cast %55 : vector<8x256xf32> to vector<1x8x256xf32>
    tpu.vector_store %arg15[%c1, %c0_18, %c0_19], %58 {strides = array<i32>} : memref<8x8x256xf32, #tpu.memory_space<vmem>>, vector<1x8x256xf32>,
    %59 = vector.extract_strided_slice %46 {offsets = [16, 0], sizes = [8, 256], strides = [1, 1]} : vector<64x256xf32> to vector<8x256xf32>
    %60 = vector.extract_strided_slice %46 {offsets = [40, 0], sizes = [8, 256], strides = [1, 1]} : vector<64x256xf32> to vector<8x256xf32>
    %61 = arith.select %33, %59, %60 : vector<8x256xi1>, vector<8x256xf32>
    %c2 = arith.constant 2 : index
    %c0_20 = arith.constant 0 : index
    %c0_21 = arith.constant 0 : index
    %62 = vector.load %arg15[%c2, %c0_20, %c0_21] : memref<8x8x256xf32, #tpu.memory_space<vmem>>, vector<1x8x256xf32>
    %63 = vector.shape_cast %62 : vector<1x8x256xf32> to vector<8x256xf32>
    %64 = vector.shape_cast %61 : vector<8x256xf32> to vector<1x8x256xf32>
    tpu.vector_store %arg15[%c2, %c0_20, %c0_21], %64 {strides = array<i32>} : memref<8x8x256xf32, #tpu.memory_space<vmem>>, vector<1x8x256xf32>,
    %65 = vector.extract_strided_slice %46 {offsets = [24, 0], sizes = [8, 256], strides = [1, 1]} : vector<64x256xf32> to vector<8x256xf32>
    %66 = vector.extract_strided_slice %46 {offsets = [32, 0], sizes = [8, 256], strides = [1, 1]} : vector<64x256xf32> to vector<8x256xf32>
    %67 = arith.select %33, %65, %66 : vector<8x256xi1>, vector<8x256xf32>
    %c3 = arith.constant 3 : index
    %c0_22 = arith.constant 0 : index
    %c0_23 = arith.constant 0 : index
    %68 = vector.load %arg15[%c3, %c0_22, %c0_23] : memref<8x8x256xf32, #tpu.memory_space<vmem>>, vector<1x8x256xf32>
    %69 = vector.shape_cast %68 : vector<1x8x256xf32> to vector<8x256xf32>
    %70 = vector.shape_cast %67 : vector<8x256xf32> to vector<1x8x256xf32>
    tpu.vector_store %arg15[%c3, %c0_22, %c0_23], %70 {strides = array<i32>} : memref<8x8x256xf32, #tpu.memory_space<vmem>>, vector<1x8x256xf32>,
    %71 = vector.extract_strided_slice %46 {offsets = [32, 0], sizes = [8, 256], strides = [1, 1]} : vector<64x256xf32> to vector<8x256xf32>
    %72 = vector.extract_strided_slice %46 {offsets = [24, 0], sizes = [8, 256], strides = [1, 1]} : vector<64x256xf32> to vector<8x256xf32>
    %73 = arith.select %33, %71, %72 : vector<8x256xi1>, vector<8x256xf32>
    %c4 = arith.constant 4 : index
    %c0_24 = arith.constant 0 : index
    %c0_25 = arith.constant 0 : index
    %74 = vector.load %arg15[%c4, %c0_24, %c0_25] : memref<8x8x256xf32, #tpu.memory_space<vmem>>, vector<1x8x256xf32>
    %75 = vector.shape_cast %74 : vector<1x8x256xf32> to vector<8x256xf32>
    %76 = vector.shape_cast %73 : vector<8x256xf32> to vector<1x8x256xf32>
    tpu.vector_store %arg15[%c4, %c0_24, %c0_25], %76 {strides = array<i32>} : memref<8x8x256xf32, #tpu.memory_space<vmem>>, vector<1x8x256xf32>,
    %77 = vector.extract_strided_slice %46 {offsets = [40, 0], sizes = [8, 256], strides = [1, 1]} : vector<64x256xf32> to vector<8x256xf32>
    %78 = vector.extract_strided_slice %46 {offsets = [16, 0], sizes = [8, 256], strides = [1, 1]} : vector<64x256xf32> to vector<8x256xf32>
    %79 = arith.select %33, %77, %78 : vector<8x256xi1>, vector<8x256xf32>
    %c5 = arith.constant 5 : index
    %c0_26 = arith.constant 0 : index
    %c0_27 = arith.constant 0 : index
    %80 = vector.load %arg15[%c5, %c0_26, %c0_27] : memref<8x8x256xf32, #tpu.memory_space<vmem>>, vector<1x8x256xf32>
    %81 = vector.shape_cast %80 : vector<1x8x256xf32> to vector<8x256xf32>
    %82 = vector.shape_cast %79 : vector<8x256xf32> to vector<1x8x256xf32>
    tpu.vector_store %arg15[%c5, %c0_26, %c0_27], %82 {strides = array<i32>} : memref<8x8x256xf32, #tpu.memory_space<vmem>>, vector<1x8x256xf32>,
    %83 = vector.extract_strided_slice %46 {offsets = [48, 0], sizes = [8, 256], strides = [1, 1]} : vector<64x256xf32> to vector<8x256xf32>
    %84 = vector.extract_strided_slice %46 {offsets = [8, 0], sizes = [8, 256], strides = [1, 1]} : vector<64x256xf32> to vector<8x256xf32>
    %85 = arith.select %33, %83, %84 : vector<8x256xi1>, vector<8x256xf32>
    %c6 = arith.constant 6 : index
    %c0_28 = arith.constant 0 : index
    %c0_29 = arith.constant 0 : index
    %86 = vector.load %arg15[%c6, %c0_28, %c0_29] : memref<8x8x256xf32, #tpu.memory_space<vmem>>, vector<1x8x256xf32>
    %87 = vector.shape_cast %86 : vector<1x8x256xf32> to vector<8x256xf32>
    %88 = vector.shape_cast %85 : vector<8x256xf32> to vector<1x8x256xf32>
    tpu.vector_store %arg15[%c6, %c0_28, %c0_29], %88 {strides = array<i32>} : memref<8x8x256xf32, #tpu.memory_space<vmem>>, vector<1x8x256xf32>,
    %89 = vector.extract_strided_slice %46 {offsets = [56, 0], sizes = [8, 256], strides = [1, 1]} : vector<64x256xf32> to vector<8x256xf32>
    %90 = vector.extract_strided_slice %46 {offsets = [0, 0], sizes = [8, 256], strides = [1, 1]} : vector<64x256xf32> to vector<8x256xf32>
    %91 = arith.select %33, %89, %90 : vector<8x256xi1>, vector<8x256xf32>
    %c7 = arith.constant 7 : index
    %c0_30 = arith.constant 0 : index
    %c0_31 = arith.constant 0 : index
    %92 = vector.load %arg15[%c7, %c0_30, %c0_31] : memref<8x8x256xf32, #tpu.memory_space<vmem>>, vector<1x8x256xf32>
    %93 = vector.shape_cast %92 : vector<1x8x256xf32> to vector<8x256xf32>
    %94 = vector.shape_cast %91 : vector<8x256xf32> to vector<1x8x256xf32>
    tpu.vector_store %arg15[%c7, %c0_30, %c0_31], %94 {strides = array<i32>} : memref<8x8x256xf32, #tpu.memory_space<vmem>>, vector<1x8x256xf32>,
    %c0_32 = arith.constant 0 : index
    %c0_33 = arith.constant 0 : index
    %95 = vector.load %arg4[%c0_32, %c0_33] : memref<64x256xf32, #tpu.memory_space<vmem>>, vector<64x256xf32>
    %c0_34 = arith.constant 0 : index
    %c0_35 = arith.constant 0 : index
    %c0_36 = arith.constant 0 : index
    %96 = vector.load %arg15[%c0_34, %c0_35, %c0_36] : memref<8x8x256xf32, #tpu.memory_space<vmem>>, vector<1x8x256xf32>
    %97 = vector.shape_cast %96 : vector<1x8x256xf32> to vector<8x256xf32>
    %98 = vector.extract_strided_slice %97 {offsets = [0, 0], sizes = [8, 64], strides = [1, 1]} : vector<8x256xf32> to vector<8x64xf32>
    %99 = arith.negf %98 : vector<8x64xf32>
    %100 = math.exp %99 : vector<8x64xf32>
    %cst_37 = arith.constant 1.000000e+00 : f32
    %101 = vector.broadcast %cst_37 : f32 to vector<8x64xf32>
    %102 = arith.addf %101, %100 : vector<8x64xf32>
    %103 = arith.divf %101, %102 : vector<8x64xf32>
    %104 = vector.extract_strided_slice %97 {offsets = [0, 128], sizes = [8, 64], strides = [1, 1]} : vector<8x256xf32> to vector<8x64xf32>
    %105 = math.tanh %104 : vector<8x64xf32>
    %106 = vector.extract_strided_slice %97 {offsets = [0, 192], sizes = [8, 64], strides = [1, 1]} : vector<8x256xf32> to vector<8x64xf32>
    %107 = arith.negf %106 : vector<8x64xf32>
    %108 = math.exp %107 : vector<8x64xf32>
    %cst_38 = arith.constant 1.000000e+00 : f32
    %109 = vector.broadcast %cst_38 : f32 to vector<8x64xf32>
    %110 = arith.addf %109, %108 : vector<8x64xf32>
    %111 = arith.divf %109, %110 : vector<8x64xf32>
    %112 = arith.mulf %103, %105 : vector<8x64xf32>
    %113 = math.tanh %112 : vector<8x64xf32>
    %114 = arith.mulf %111, %113 : vector<8x64xf32>
    %115 = vector.extract_strided_slice %12 {offsets = [0, 0, 0], sizes = [1, 8, 64], strides = [1, 1, 1]} : vector<8x8x64xf32> to vector<1x8x64xf32>
    %116 = vector.shape_cast %115 : vector<1x8x64xf32> to vector<8x64xf32>
    %117 = arith.mulf %116, %114 : vector<8x64xf32>
    %118 = arith.mulf %116, %112 : vector<8x64xf32>
    %119 = vector.extract_strided_slice %117 {offsets = [0, 0], sizes = [8, 32], strides = [1, 1]} : vector<8x64xf32> to vector<8x32xf32>
    %c0_39 = arith.constant 0 : index
    %c0_40 = arith.constant 0 : index
    %c0_41 = arith.constant 0 : index
    %120 = vector.load %arg16[%c0_39, %c0_40, %c0_41] : memref<8x8x64xf32, #tpu.memory_space<vmem>>, vector<1x8x32xf32>
    %121 = vector.shape_cast %120 : vector<1x8x32xf32> to vector<8x32xf32>
    %122 = vector.shape_cast %119 : vector<8x32xf32> to vector<1x8x32xf32>
    tpu.vector_store %arg16[%c0_39, %c0_40, %c0_41], %122 {strides = array<i32>} : memref<8x8x64xf32, #tpu.memory_space<vmem>>, vector<1x8x32xf32>,
    %123 = vector.extract_strided_slice %117 {offsets = [0, 32], sizes = [8, 32], strides = [1, 1]} : vector<8x64xf32> to vector<8x32xf32>
    %c7_42 = arith.constant 7 : index
    %c0_43 = arith.constant 0 : index
    %c32 = arith.constant 32 : index
    %124 = vector.load %arg16[%c7_42, %c0_43, %c32] : memref<8x8x64xf32, #tpu.memory_space<vmem>>, vector<1x8x32xf32>
    %125 = vector.shape_cast %124 : vector<1x8x32xf32> to vector<8x32xf32>
    %126 = vector.shape_cast %123 : vector<8x32xf32> to vector<1x8x32xf32>
    tpu.vector_store %arg16[%c7_42, %c0_43, %c32], %126 {strides = array<i32>} : memref<8x8x64xf32, #tpu.memory_space<vmem>>, vector<1x8x32xf32>,
    %c1_44 = arith.constant 1 : index
    %c0_45 = arith.constant 0 : index
    %c0_46 = arith.constant 0 : index
    %127 = vector.load %arg15[%c1_44, %c0_45, %c0_46] : memref<8x8x256xf32, #tpu.memory_space<vmem>>, vector<1x8x256xf32>
    %128 = vector.shape_cast %127 : vector<1x8x256xf32> to vector<8x256xf32>
    %cst_47 = arith.constant dense<0.000000e+00> : vector<8x256xf32>
    %129 = tpu.matmul %117, %95, %cst_47 {dimension_numbers = #tpu.dot_dimension_numbers<[1], [0], [0], [1], [0, 0, 1, 1], [], []>} : vector<8x64xf32>, vector<64x256xf32>, vector<8x256xf32> -> vector<8x256xf32>
    %130 = arith.addf %128, %129 : vector<8x256xf32>
    %131 = vector.extract_strided_slice %130 {offsets = [0, 0], sizes = [8, 64], strides = [1, 1]} : vector<8x256xf32> to vector<8x64xf32>
    %132 = arith.negf %131 : vector<8x64xf32>
    %133 = math.exp %132 : vector<8x64xf32>
    %cst_48 = arith.constant 1.000000e+00 : f32
    %134 = vector.broadcast %cst_48 : f32 to vector<8x64xf32>
    %135 = arith.addf %134, %133 : vector<8x64xf32>
    %136 = arith.divf %134, %135 : vector<8x64xf32>
    %137 = vector.extract_strided_slice %130 {offsets = [0, 128], sizes = [8, 64], strides = [1, 1]} : vector<8x256xf32> to vector<8x64xf32>
    %138 = math.tanh %137 : vector<8x64xf32>
    %139 = vector.extract_strided_slice %130 {offsets = [0, 192], sizes = [8, 64], strides = [1, 1]} : vector<8x256xf32> to vector<8x64xf32>
    %140 = arith.negf %139 : vector<8x64xf32>
    %141 = math.exp %140 : vector<8x64xf32>
    %cst_49 = arith.constant 1.000000e+00 : f32
    %142 = vector.broadcast %cst_49 : f32 to vector<8x64xf32>
    %143 = arith.addf %142, %141 : vector<8x64xf32>
    %144 = arith.divf %142, %143 : vector<8x64xf32>
    %145 = vector.extract_strided_slice %130 {offsets = [0, 64], sizes = [8, 64], strides = [1, 1]} : vector<8x256xf32> to vector<8x64xf32>
    %146 = arith.negf %145 : vector<8x64xf32>
    %147 = math.exp %146 : vector<8x64xf32>
    %cst_50 = arith.constant 1.000000e+00 : f32
    %148 = vector.broadcast %cst_50 : f32 to vector<8x64xf32>
    %149 = arith.addf %148, %147 : vector<8x64xf32>
    %150 = arith.divf %148, %149 : vector<8x64xf32>
    %151 = arith.mulf %150, %118 : vector<8x64xf32>
    %152 = arith.mulf %136, %138 : vector<8x64xf32>
    %153 = arith.addf %151, %152 : vector<8x64xf32>
    %154 = math.tanh %153 : vector<8x64xf32>
    %155 = arith.mulf %144, %154 : vector<8x64xf32>
    %156 = vector.extract_strided_slice %12 {offsets = [1, 0, 0], sizes = [1, 8, 64], strides = [1, 1, 1]} : vector<8x8x64xf32> to vector<1x8x64xf32>
    %157 = vector.shape_cast %156 : vector<1x8x64xf32> to vector<8x64xf32>
    %158 = vector.extract_strided_slice %14 {offsets = [1, 0, 0], sizes = [1, 8, 64], strides = [1, 1, 1]} : vector<8x8x64xf32> to vector<1x8x64xf32>
    %159 = vector.shape_cast %158 : vector<1x8x64xf32> to vector<8x64xf32>
    %160 = arith.mulf %157, %155 : vector<8x64xf32>
    %161 = arith.mulf %157, %153 : vector<8x64xf32>
    %162 = arith.mulf %159, %118 : vector<8x64xf32>
    %163 = arith.addf %161, %162 : vector<8x64xf32>
    %164 = arith.mulf %159, %117 : vector<8x64xf32>
    %165 = arith.addf %160, %164 : vector<8x64xf32>
    %166 = vector.extract_strided_slice %160 {offsets = [0, 0], sizes = [8, 32], strides = [1, 1]} : vector<8x64xf32> to vector<8x32xf32>
    %c1_51 = arith.constant 1 : index
    %c0_52 = arith.constant 0 : index
    %c0_53 = arith.constant 0 : index
    %167 = vector.load %arg16[%c1_51, %c0_52, %c0_53] : memref<8x8x64xf32, #tpu.memory_space<vmem>>, vector<1x8x32xf32>
    %168 = vector.shape_cast %167 : vector<1x8x32xf32> to vector<8x32xf32>
    %169 = vector.shape_cast %166 : vector<8x32xf32> to vector<1x8x32xf32>
    tpu.vector_store %arg16[%c1_51, %c0_52, %c0_53], %169 {strides = array<i32>} : memref<8x8x64xf32, #tpu.memory_space<vmem>>, vector<1x8x32xf32>,
    %170 = vector.extract_strided_slice %160 {offsets = [0, 32], sizes = [8, 32], strides = [1, 1]} : vector<8x64xf32> to vector<8x32xf32>
    %c6_54 = arith.constant 6 : index
    %c0_55 = arith.constant 0 : index
    %c32_56 = arith.constant 32 : index
    %171 = vector.load %arg16[%c6_54, %c0_55, %c32_56] : memref<8x8x64xf32, #tpu.memory_space<vmem>>, vector<1x8x32xf32>
    %172 = vector.shape_cast %171 : vector<1x8x32xf32> to vector<8x32xf32>
    %173 = vector.shape_cast %170 : vector<8x32xf32> to vector<1x8x32xf32>
    tpu.vector_store %arg16[%c6_54, %c0_55, %c32_56], %173 {strides = array<i32>} : memref<8x8x64xf32, #tpu.memory_space<vmem>>, vector<1x8x32xf32>,
    %c2_57 = arith.constant 2 : index
    %c0_58 = arith.constant 0 : index
    %c0_59 = arith.constant 0 : index
    %174 = vector.load %arg15[%c2_57, %c0_58, %c0_59] : memref<8x8x256xf32, #tpu.memory_space<vmem>>, vector<1x8x256xf32>
    %175 = vector.shape_cast %174 : vector<1x8x256xf32> to vector<8x256xf32>
    %cst_60 = arith.constant dense<0.000000e+00> : vector<8x256xf32>
    %176 = tpu.matmul %165, %95, %cst_60 {dimension_numbers = #tpu.dot_dimension_numbers<[1], [0], [0], [1], [0, 0, 1, 1], [], []>} : vector<8x64xf32>, vector<64x256xf32>, vector<8x256xf32> -> vector<8x256xf32>
    %177 = arith.addf %175, %176 : vector<8x256xf32>
    %178 = vector.extract_strided_slice %177 {offsets = [0, 0], sizes = [8, 64], strides = [1, 1]} : vector<8x256xf32> to vector<8x64xf32>
    %179 = arith.negf %178 : vector<8x64xf32>
    %180 = math.exp %179 : vector<8x64xf32>
    %cst_61 = arith.constant 1.000000e+00 : f32
    %181 = vector.broadcast %cst_61 : f32 to vector<8x64xf32>
    %182 = arith.addf %181, %180 : vector<8x64xf32>
    %183 = arith.divf %181, %182 : vector<8x64xf32>
    %184 = vector.extract_strided_slice %177 {offsets = [0, 128], sizes = [8, 64], strides = [1, 1]} : vector<8x256xf32> to vector<8x64xf32>
    %185 = math.tanh %184 : vector<8x64xf32>
    %186 = vector.extract_strided_slice %177 {offsets = [0, 192], sizes = [8, 64], strides = [1, 1]} : vector<8x256xf32> to vector<8x64xf32>
    %187 = arith.negf %186 : vector<8x64xf32>
    %188 = math.exp %187 : vector<8x64xf32>
    %cst_62 = arith.constant 1.000000e+00 : f32
    %189 = vector.broadcast %cst_62 : f32 to vector<8x64xf32>
    %190 = arith.addf %189, %188 : vector<8x64xf32>
    %191 = arith.divf %189, %190 : vector<8x64xf32>
    %192 = vector.extract_strided_slice %177 {offsets = [0, 64], sizes = [8, 64], strides = [1, 1]} : vector<8x256xf32> to vector<8x64xf32>
    %193 = arith.negf %192 : vector<8x64xf32>
    %194 = math.exp %193 : vector<8x64xf32>
    %cst_63 = arith.constant 1.000000e+00 : f32
    %195 = vector.broadcast %cst_63 : f32 to vector<8x64xf32>
    %196 = arith.addf %195, %194 : vector<8x64xf32>
    %197 = arith.divf %195, %196 : vector<8x64xf32>
    %198 = arith.mulf %197, %163 : vector<8x64xf32>
    %199 = arith.mulf %183, %185 : vector<8x64xf32>
    %200 = arith.addf %198, %199 : vector<8x64xf32>
    %201 = math.tanh %200 : vector<8x64xf32>
    %202 = arith.mulf %191, %201 : vector<8x64xf32>
    %203 = vector.extract_strided_slice %12 {offsets = [2, 0, 0], sizes = [1, 8, 64], strides = [1, 1, 1]} : vector<8x8x64xf32> to vector<1x8x64xf32>
    %204 = vector.shape_cast %203 : vector<1x8x64xf32> to vector<8x64xf32>
    %205 = vector.extract_strided_slice %14 {offsets = [2, 0, 0], sizes = [1, 8, 64], strides = [1, 1, 1]} : vector<8x8x64xf32> to vector<1x8x64xf32>
    %206 = vector.shape_cast %205 : vector<1x8x64xf32> to vector<8x64xf32>
    %207 = arith.mulf %204, %202 : vector<8x64xf32>
    %208 = arith.mulf %204, %200 : vector<8x64xf32>
    %209 = arith.mulf %206, %163 : vector<8x64xf32>
    %210 = arith.addf %208, %209 : vector<8x64xf32>
    %211 = arith.mulf %206, %165 : vector<8x64xf32>
    %212 = arith.addf %207, %211 : vector<8x64xf32>
    %213 = vector.extract_strided_slice %207 {offsets = [0, 0], sizes = [8, 32], strides = [1, 1]} : vector<8x64xf32> to vector<8x32xf32>
    %c2_64 = arith.constant 2 : index
    %c0_65 = arith.constant 0 : index
    %c0_66 = arith.constant 0 : index
    %214 = vector.load %arg16[%c2_64, %c0_65, %c0_66] : memref<8x8x64xf32, #tpu.memory_space<vmem>>, vector<1x8x32xf32>
    %215 = vector.shape_cast %214 : vector<1x8x32xf32> to vector<8x32xf32>
    %216 = vector.shape_cast %213 : vector<8x32xf32> to vector<1x8x32xf32>
    tpu.vector_store %arg16[%c2_64, %c0_65, %c0_66], %216 {strides = array<i32>} : memref<8x8x64xf32, #tpu.memory_space<vmem>>, vector<1x8x32xf32>,
    %217 = vector.extract_strided_slice %207 {offsets = [0, 32], sizes = [8, 32], strides = [1, 1]} : vector<8x64xf32> to vector<8x32xf32>
    %c5_67 = arith.constant 5 : index
    %c0_68 = arith.constant 0 : index
    %c32_69 = arith.constant 32 : index
    %218 = vector.load %arg16[%c5_67, %c0_68, %c32_69] : memref<8x8x64xf32, #tpu.memory_space<vmem>>, vector<1x8x32xf32>
    %219 = vector.shape_cast %218 : vector<1x8x32xf32> to vector<8x32xf32>
    %220 = vector.shape_cast %217 : vector<8x32xf32> to vector<1x8x32xf32>
    tpu.vector_store %arg16[%c5_67, %c0_68, %c32_69], %220 {strides = array<i32>} : memref<8x8x64xf32, #tpu.memory_space<vmem>>, vector<1x8x32xf32>,
    %c3_70 = arith.constant 3 : index
    %c0_71 = arith.constant 0 : index
    %c0_72 = arith.constant 0 : index
    %221 = vector.load %arg15[%c3_70, %c0_71, %c0_72] : memref<8x8x256xf32, #tpu.memory_space<vmem>>, vector<1x8x256xf32>
    %222 = vector.shape_cast %221 : vector<1x8x256xf32> to vector<8x256xf32>
    %cst_73 = arith.constant dense<0.000000e+00> : vector<8x256xf32>
    %223 = tpu.matmul %212, %95, %cst_73 {dimension_numbers = #tpu.dot_dimension_numbers<[1], [0], [0], [1], [0, 0, 1, 1], [], []>} : vector<8x64xf32>, vector<64x256xf32>, vector<8x256xf32> -> vector<8x256xf32>
    %224 = arith.addf %222, %223 : vector<8x256xf32>
    %225 = vector.extract_strided_slice %224 {offsets = [0, 0], sizes = [8, 64], strides = [1, 1]} : vector<8x256xf32> to vector<8x64xf32>
    %226 = arith.negf %225 : vector<8x64xf32>
    %227 = math.exp %226 : vector<8x64xf32>
    %cst_74 = arith.constant 1.000000e+00 : f32
    %228 = vector.broadcast %cst_74 : f32 to vector<8x64xf32>
    %229 = arith.addf %228, %227 : vector<8x64xf32>
    %230 = arith.divf %228, %229 : vector<8x64xf32>
    %231 = vector.extract_strided_slice %224 {offsets = [0, 128], sizes = [8, 64], strides = [1, 1]} : vector<8x256xf32> to vector<8x64xf32>
    %232 = math.tanh %231 : vector<8x64xf32>
    %233 = vector.extract_strided_slice %224 {offsets = [0, 192], sizes = [8, 64], strides = [1, 1]} : vector<8x256xf32> to vector<8x64xf32>
    %234 = arith.negf %233 : vector<8x64xf32>
    %235 = math.exp %234 : vector<8x64xf32>
    %cst_75 = arith.constant 1.000000e+00 : f32
    %236 = vector.broadcast %cst_75 : f32 to vector<8x64xf32>
    %237 = arith.addf %236, %235 : vector<8x64xf32>
    %238 = arith.divf %236, %237 : vector<8x64xf32>
    %239 = vector.extract_strided_slice %224 {offsets = [0, 64], sizes = [8, 64], strides = [1, 1]} : vector<8x256xf32> to vector<8x64xf32>
    %240 = arith.negf %239 : vector<8x64xf32>
    %241 = math.exp %240 : vector<8x64xf32>
    %cst_76 = arith.constant 1.000000e+00 : f32
    %242 = vector.broadcast %cst_76 : f32 to vector<8x64xf32>
    %243 = arith.addf %242, %241 : vector<8x64xf32>
    %244 = arith.divf %242, %243 : vector<8x64xf32>
    %245 = arith.mulf %244, %210 : vector<8x64xf32>
    %246 = arith.mulf %230, %232 : vector<8x64xf32>
    %247 = arith.addf %245, %246 : vector<8x64xf32>
    %248 = math.tanh %247 : vector<8x64xf32>
    %249 = arith.mulf %238, %248 : vector<8x64xf32>
    %250 = vector.extract_strided_slice %12 {offsets = [3, 0, 0], sizes = [1, 8, 64], strides = [1, 1, 1]} : vector<8x8x64xf32> to vector<1x8x64xf32>
    %251 = vector.shape_cast %250 : vector<1x8x64xf32> to vector<8x64xf32>
    %252 = vector.extract_strided_slice %14 {offsets = [3, 0, 0], sizes = [1, 8, 64], strides = [1, 1, 1]} : vector<8x8x64xf32> to vector<1x8x64xf32>
    %253 = vector.shape_cast %252 : vector<1x8x64xf32> to vector<8x64xf32>
    %254 = arith.mulf %251, %249 : vector<8x64xf32>
    %255 = arith.mulf %251, %247 : vector<8x64xf32>
    %256 = arith.mulf %253, %210 : vector<8x64xf32>
    %257 = arith.addf %255, %256 : vector<8x64xf32>
    %258 = arith.mulf %253, %212 : vector<8x64xf32>
    %259 = arith.addf %254, %258 : vector<8x64xf32>
    %260 = vector.extract_strided_slice %254 {offsets = [0, 0], sizes = [8, 32], strides = [1, 1]} : vector<8x64xf32> to vector<8x32xf32>
    %c3_77 = arith.constant 3 : index
    %c0_78 = arith.constant 0 : index
    %c0_79 = arith.constant 0 : index
    %261 = vector.load %arg16[%c3_77, %c0_78, %c0_79] : memref<8x8x64xf32, #tpu.memory_space<vmem>>, vector<1x8x32xf32>
    %262 = vector.shape_cast %261 : vector<1x8x32xf32> to vector<8x32xf32>
    %263 = vector.shape_cast %260 : vector<8x32xf32> to vector<1x8x32xf32>
    tpu.vector_store %arg16[%c3_77, %c0_78, %c0_79], %263 {strides = array<i32>} : memref<8x8x64xf32, #tpu.memory_space<vmem>>, vector<1x8x32xf32>,
    %264 = vector.extract_strided_slice %254 {offsets = [0, 32], sizes = [8, 32], strides = [1, 1]} : vector<8x64xf32> to vector<8x32xf32>
    %c4_80 = arith.constant 4 : index
    %c0_81 = arith.constant 0 : index
    %c32_82 = arith.constant 32 : index
    %265 = vector.load %arg16[%c4_80, %c0_81, %c32_82] : memref<8x8x64xf32, #tpu.memory_space<vmem>>, vector<1x8x32xf32>
    %266 = vector.shape_cast %265 : vector<1x8x32xf32> to vector<8x32xf32>
    %267 = vector.shape_cast %264 : vector<8x32xf32> to vector<1x8x32xf32>
    tpu.vector_store %arg16[%c4_80, %c0_81, %c32_82], %267 {strides = array<i32>} : memref<8x8x64xf32, #tpu.memory_space<vmem>>, vector<1x8x32xf32>,
    %c4_83 = arith.constant 4 : index
    %c0_84 = arith.constant 0 : index
    %c0_85 = arith.constant 0 : index
    %268 = vector.load %arg15[%c4_83, %c0_84, %c0_85] : memref<8x8x256xf32, #tpu.memory_space<vmem>>, vector<1x8x256xf32>
    %269 = vector.shape_cast %268 : vector<1x8x256xf32> to vector<8x256xf32>
    %cst_86 = arith.constant dense<0.000000e+00> : vector<8x256xf32>
    %270 = tpu.matmul %259, %95, %cst_86 {dimension_numbers = #tpu.dot_dimension_numbers<[1], [0], [0], [1], [0, 0, 1, 1], [], []>} : vector<8x64xf32>, vector<64x256xf32>, vector<8x256xf32> -> vector<8x256xf32>
    %271 = arith.addf %269, %270 : vector<8x256xf32>
    %272 = vector.extract_strided_slice %271 {offsets = [0, 0], sizes = [8, 64], strides = [1, 1]} : vector<8x256xf32> to vector<8x64xf32>
    %273 = arith.negf %272 : vector<8x64xf32>
    %274 = math.exp %273 : vector<8x64xf32>
    %cst_87 = arith.constant 1.000000e+00 : f32
    %275 = vector.broadcast %cst_87 : f32 to vector<8x64xf32>
    %276 = arith.addf %275, %274 : vector<8x64xf32>
    %277 = arith.divf %275, %276 : vector<8x64xf32>
    %278 = vector.extract_strided_slice %271 {offsets = [0, 128], sizes = [8, 64], strides = [1, 1]} : vector<8x256xf32> to vector<8x64xf32>
    %279 = math.tanh %278 : vector<8x64xf32>
    %280 = vector.extract_strided_slice %271 {offsets = [0, 192], sizes = [8, 64], strides = [1, 1]} : vector<8x256xf32> to vector<8x64xf32>
    %281 = arith.negf %280 : vector<8x64xf32>
    %282 = math.exp %281 : vector<8x64xf32>
    %cst_88 = arith.constant 1.000000e+00 : f32
    %283 = vector.broadcast %cst_88 : f32 to vector<8x64xf32>
    %284 = arith.addf %283, %282 : vector<8x64xf32>
    %285 = arith.divf %283, %284 : vector<8x64xf32>
    %286 = vector.extract_strided_slice %271 {offsets = [0, 64], sizes = [8, 64], strides = [1, 1]} : vector<8x256xf32> to vector<8x64xf32>
    %287 = arith.negf %286 : vector<8x64xf32>
    %288 = math.exp %287 : vector<8x64xf32>
    %cst_89 = arith.constant 1.000000e+00 : f32
    %289 = vector.broadcast %cst_89 : f32 to vector<8x64xf32>
    %290 = arith.addf %289, %288 : vector<8x64xf32>
    %291 = arith.divf %289, %290 : vector<8x64xf32>
    %292 = arith.mulf %291, %257 : vector<8x64xf32>
    %293 = arith.mulf %277, %279 : vector<8x64xf32>
    %294 = arith.addf %292, %293 : vector<8x64xf32>
    %295 = math.tanh %294 : vector<8x64xf32>
    %296 = arith.mulf %285, %295 : vector<8x64xf32>
    %297 = vector.extract_strided_slice %12 {offsets = [4, 0, 0], sizes = [1, 8, 64], strides = [1, 1, 1]} : vector<8x8x64xf32> to vector<1x8x64xf32>
    %298 = vector.shape_cast %297 : vector<1x8x64xf32> to vector<8x64xf32>
    %299 = vector.extract_strided_slice %14 {offsets = [4, 0, 0], sizes = [1, 8, 64], strides = [1, 1, 1]} : vector<8x8x64xf32> to vector<1x8x64xf32>
    %300 = vector.shape_cast %299 : vector<1x8x64xf32> to vector<8x64xf32>
    %301 = arith.mulf %298, %296 : vector<8x64xf32>
    %302 = arith.mulf %298, %294 : vector<8x64xf32>
    %303 = arith.mulf %300, %257 : vector<8x64xf32>
    %304 = arith.addf %302, %303 : vector<8x64xf32>
    %305 = arith.mulf %300, %259 : vector<8x64xf32>
    %306 = arith.addf %301, %305 : vector<8x64xf32>
    %307 = vector.extract_strided_slice %301 {offsets = [0, 0], sizes = [8, 32], strides = [1, 1]} : vector<8x64xf32> to vector<8x32xf32>
    %c4_90 = arith.constant 4 : index
    %c0_91 = arith.constant 0 : index
    %c0_92 = arith.constant 0 : index
    %308 = vector.load %arg16[%c4_90, %c0_91, %c0_92] : memref<8x8x64xf32, #tpu.memory_space<vmem>>, vector<1x8x32xf32>
    %309 = vector.shape_cast %308 : vector<1x8x32xf32> to vector<8x32xf32>
    %310 = vector.shape_cast %307 : vector<8x32xf32> to vector<1x8x32xf32>
    tpu.vector_store %arg16[%c4_90, %c0_91, %c0_92], %310 {strides = array<i32>} : memref<8x8x64xf32, #tpu.memory_space<vmem>>, vector<1x8x32xf32>,
    %311 = vector.extract_strided_slice %301 {offsets = [0, 32], sizes = [8, 32], strides = [1, 1]} : vector<8x64xf32> to vector<8x32xf32>
    %c3_93 = arith.constant 3 : index
    %c0_94 = arith.constant 0 : index
    %c32_95 = arith.constant 32 : index
    %312 = vector.load %arg16[%c3_93, %c0_94, %c32_95] : memref<8x8x64xf32, #tpu.memory_space<vmem>>, vector<1x8x32xf32>
    %313 = vector.shape_cast %312 : vector<1x8x32xf32> to vector<8x32xf32>
    %314 = vector.shape_cast %311 : vector<8x32xf32> to vector<1x8x32xf32>
    tpu.vector_store %arg16[%c3_93, %c0_94, %c32_95], %314 {strides = array<i32>} : memref<8x8x64xf32, #tpu.memory_space<vmem>>, vector<1x8x32xf32>,
    %c5_96 = arith.constant 5 : index
    %c0_97 = arith.constant 0 : index
    %c0_98 = arith.constant 0 : index
    %315 = vector.load %arg15[%c5_96, %c0_97, %c0_98] : memref<8x8x256xf32, #tpu.memory_space<vmem>>, vector<1x8x256xf32>
    %316 = vector.shape_cast %315 : vector<1x8x256xf32> to vector<8x256xf32>
    %cst_99 = arith.constant dense<0.000000e+00> : vector<8x256xf32>
    %317 = tpu.matmul %306, %95, %cst_99 {dimension_numbers = #tpu.dot_dimension_numbers<[1], [0], [0], [1], [0, 0, 1, 1], [], []>} : vector<8x64xf32>, vector<64x256xf32>, vector<8x256xf32> -> vector<8x256xf32>
    %318 = arith.addf %316, %317 : vector<8x256xf32>
    %319 = vector.extract_strided_slice %318 {offsets = [0, 0], sizes = [8, 64], strides = [1, 1]} : vector<8x256xf32> to vector<8x64xf32>
    %320 = arith.negf %319 : vector<8x64xf32>
    %321 = math.exp %320 : vector<8x64xf32>
    %cst_100 = arith.constant 1.000000e+00 : f32
    %322 = vector.broadcast %cst_100 : f32 to vector<8x64xf32>
    %323 = arith.addf %322, %321 : vector<8x64xf32>
    %324 = arith.divf %322, %323 : vector<8x64xf32>
    %325 = vector.extract_strided_slice %318 {offsets = [0, 128], sizes = [8, 64], strides = [1, 1]} : vector<8x256xf32> to vector<8x64xf32>
    %326 = math.tanh %325 : vector<8x64xf32>
    %327 = vector.extract_strided_slice %318 {offsets = [0, 192], sizes = [8, 64], strides = [1, 1]} : vector<8x256xf32> to vector<8x64xf32>
    %328 = arith.negf %327 : vector<8x64xf32>
    %329 = math.exp %328 : vector<8x64xf32>
    %cst_101 = arith.constant 1.000000e+00 : f32
    %330 = vector.broadcast %cst_101 : f32 to vector<8x64xf32>
    %331 = arith.addf %330, %329 : vector<8x64xf32>
    %332 = arith.divf %330, %331 : vector<8x64xf32>
    %333 = vector.extract_strided_slice %318 {offsets = [0, 64], sizes = [8, 64], strides = [1, 1]} : vector<8x256xf32> to vector<8x64xf32>
    %334 = arith.negf %333 : vector<8x64xf32>
    %335 = math.exp %334 : vector<8x64xf32>
    %cst_102 = arith.constant 1.000000e+00 : f32
    %336 = vector.broadcast %cst_102 : f32 to vector<8x64xf32>
    %337 = arith.addf %336, %335 : vector<8x64xf32>
    %338 = arith.divf %336, %337 : vector<8x64xf32>
    %339 = arith.mulf %338, %304 : vector<8x64xf32>
    %340 = arith.mulf %324, %326 : vector<8x64xf32>
    %341 = arith.addf %339, %340 : vector<8x64xf32>
    %342 = math.tanh %341 : vector<8x64xf32>
    %343 = arith.mulf %332, %342 : vector<8x64xf32>
    %344 = vector.extract_strided_slice %12 {offsets = [5, 0, 0], sizes = [1, 8, 64], strides = [1, 1, 1]} : vector<8x8x64xf32> to vector<1x8x64xf32>
    %345 = vector.shape_cast %344 : vector<1x8x64xf32> to vector<8x64xf32>
    %346 = vector.extract_strided_slice %14 {offsets = [5, 0, 0], sizes = [1, 8, 64], strides = [1, 1, 1]} : vector<8x8x64xf32> to vector<1x8x64xf32>
    %347 = vector.shape_cast %346 : vector<1x8x64xf32> to vector<8x64xf32>
    %348 = arith.mulf %345, %343 : vector<8x64xf32>
    %349 = arith.mulf %345, %341 : vector<8x64xf32>
    %350 = arith.mulf %347, %304 : vector<8x64xf32>
    %351 = arith.addf %349, %350 : vector<8x64xf32>
    %352 = arith.mulf %347, %306 : vector<8x64xf32>
    %353 = arith.addf %348, %352 : vector<8x64xf32>
    %354 = vector.extract_strided_slice %348 {offsets = [0, 0], sizes = [8, 32], strides = [1, 1]} : vector<8x64xf32> to vector<8x32xf32>
    %c5_103 = arith.constant 5 : index
    %c0_104 = arith.constant 0 : index
    %c0_105 = arith.constant 0 : index
    %355 = vector.load %arg16[%c5_103, %c0_104, %c0_105] : memref<8x8x64xf32, #tpu.memory_space<vmem>>, vector<1x8x32xf32>
    %356 = vector.shape_cast %355 : vector<1x8x32xf32> to vector<8x32xf32>
    %357 = vector.shape_cast %354 : vector<8x32xf32> to vector<1x8x32xf32>
    tpu.vector_store %arg16[%c5_103, %c0_104, %c0_105], %357 {strides = array<i32>} : memref<8x8x64xf32, #tpu.memory_space<vmem>>, vector<1x8x32xf32>,
    %358 = vector.extract_strided_slice %348 {offsets = [0, 32], sizes = [8, 32], strides = [1, 1]} : vector<8x64xf32> to vector<8x32xf32>
    %c2_106 = arith.constant 2 : index
    %c0_107 = arith.constant 0 : index
    %c32_108 = arith.constant 32 : index
    %359 = vector.load %arg16[%c2_106, %c0_107, %c32_108] : memref<8x8x64xf32, #tpu.memory_space<vmem>>, vector<1x8x32xf32>
    %360 = vector.shape_cast %359 : vector<1x8x32xf32> to vector<8x32xf32>
    %361 = vector.shape_cast %358 : vector<8x32xf32> to vector<1x8x32xf32>
    tpu.vector_store %arg16[%c2_106, %c0_107, %c32_108], %361 {strides = array<i32>} : memref<8x8x64xf32, #tpu.memory_space<vmem>>, vector<1x8x32xf32>,
    %c6_109 = arith.constant 6 : index
    %c0_110 = arith.constant 0 : index
    %c0_111 = arith.constant 0 : index
    %362 = vector.load %arg15[%c6_109, %c0_110, %c0_111] : memref<8x8x256xf32, #tpu.memory_space<vmem>>, vector<1x8x256xf32>
    %363 = vector.shape_cast %362 : vector<1x8x256xf32> to vector<8x256xf32>
    %cst_112 = arith.constant dense<0.000000e+00> : vector<8x256xf32>
    %364 = tpu.matmul %353, %95, %cst_112 {dimension_numbers = #tpu.dot_dimension_numbers<[1], [0], [0], [1], [0, 0, 1, 1], [], []>} : vector<8x64xf32>, vector<64x256xf32>, vector<8x256xf32> -> vector<8x256xf32>
    %365 = arith.addf %363, %364 : vector<8x256xf32>
    %366 = vector.extract_strided_slice %365 {offsets = [0, 0], sizes = [8, 64], strides = [1, 1]} : vector<8x256xf32> to vector<8x64xf32>
    %367 = arith.negf %366 : vector<8x64xf32>
    %368 = math.exp %367 : vector<8x64xf32>
    %cst_113 = arith.constant 1.000000e+00 : f32
    %369 = vector.broadcast %cst_113 : f32 to vector<8x64xf32>
    %370 = arith.addf %369, %368 : vector<8x64xf32>
    %371 = arith.divf %369, %370 : vector<8x64xf32>
    %372 = vector.extract_strided_slice %365 {offsets = [0, 128], sizes = [8, 64], strides = [1, 1]} : vector<8x256xf32> to vector<8x64xf32>
    %373 = math.tanh %372 : vector<8x64xf32>
    %374 = vector.extract_strided_slice %365 {offsets = [0, 192], sizes = [8, 64], strides = [1, 1]} : vector<8x256xf32> to vector<8x64xf32>
    %375 = arith.negf %374 : vector<8x64xf32>
    %376 = math.exp %375 : vector<8x64xf32>
    %cst_114 = arith.constant 1.000000e+00 : f32
    %377 = vector.broadcast %cst_114 : f32 to vector<8x64xf32>
    %378 = arith.addf %377, %376 : vector<8x64xf32>
    %379 = arith.divf %377, %378 : vector<8x64xf32>
    %380 = vector.extract_strided_slice %365 {offsets = [0, 64], sizes = [8, 64], strides = [1, 1]} : vector<8x256xf32> to vector<8x64xf32>
    %381 = arith.negf %380 : vector<8x64xf32>
    %382 = math.exp %381 : vector<8x64xf32>
    %cst_115 = arith.constant 1.000000e+00 : f32
    %383 = vector.broadcast %cst_115 : f32 to vector<8x64xf32>
    %384 = arith.addf %383, %382 : vector<8x64xf32>
    %385 = arith.divf %383, %384 : vector<8x64xf32>
    %386 = arith.mulf %385, %351 : vector<8x64xf32>
    %387 = arith.mulf %371, %373 : vector<8x64xf32>
    %388 = arith.addf %386, %387 : vector<8x64xf32>
    %389 = math.tanh %388 : vector<8x64xf32>
    %390 = arith.mulf %379, %389 : vector<8x64xf32>
    %391 = vector.extract_strided_slice %12 {offsets = [6, 0, 0], sizes = [1, 8, 64], strides = [1, 1, 1]} : vector<8x8x64xf32> to vector<1x8x64xf32>
    %392 = vector.shape_cast %391 : vector<1x8x64xf32> to vector<8x64xf32>
    %393 = vector.extract_strided_slice %14 {offsets = [6, 0, 0], sizes = [1, 8, 64], strides = [1, 1, 1]} : vector<8x8x64xf32> to vector<1x8x64xf32>
    %394 = vector.shape_cast %393 : vector<1x8x64xf32> to vector<8x64xf32>
    %395 = arith.mulf %392, %390 : vector<8x64xf32>
    %396 = arith.mulf %392, %388 : vector<8x64xf32>
    %397 = arith.mulf %394, %351 : vector<8x64xf32>
    %398 = arith.addf %396, %397 : vector<8x64xf32>
    %399 = arith.mulf %394, %353 : vector<8x64xf32>
    %400 = arith.addf %395, %399 : vector<8x64xf32>
    %401 = vector.extract_strided_slice %395 {offsets = [0, 0], sizes = [8, 32], strides = [1, 1]} : vector<8x64xf32> to vector<8x32xf32>
    %c6_116 = arith.constant 6 : index
    %c0_117 = arith.constant 0 : index
    %c0_118 = arith.constant 0 : index
    %402 = vector.load %arg16[%c6_116, %c0_117, %c0_118] : memref<8x8x64xf32, #tpu.memory_space<vmem>>, vector<1x8x32xf32>
    %403 = vector.shape_cast %402 : vector<1x8x32xf32> to vector<8x32xf32>
    %404 = vector.shape_cast %401 : vector<8x32xf32> to vector<1x8x32xf32>
    tpu.vector_store %arg16[%c6_116, %c0_117, %c0_118], %404 {strides = array<i32>} : memref<8x8x64xf32, #tpu.memory_space<vmem>>, vector<1x8x32xf32>,
    %405 = vector.extract_strided_slice %395 {offsets = [0, 32], sizes = [8, 32], strides = [1, 1]} : vector<8x64xf32> to vector<8x32xf32>
    %c1_119 = arith.constant 1 : index
    %c0_120 = arith.constant 0 : index
    %c32_121 = arith.constant 32 : index
    %406 = vector.load %arg16[%c1_119, %c0_120, %c32_121] : memref<8x8x64xf32, #tpu.memory_space<vmem>>, vector<1x8x32xf32>
    %407 = vector.shape_cast %406 : vector<1x8x32xf32> to vector<8x32xf32>
    %408 = vector.shape_cast %405 : vector<8x32xf32> to vector<1x8x32xf32>
    tpu.vector_store %arg16[%c1_119, %c0_120, %c32_121], %408 {strides = array<i32>} : memref<8x8x64xf32, #tpu.memory_space<vmem>>, vector<1x8x32xf32>,
    %c7_122 = arith.constant 7 : index
    %c0_123 = arith.constant 0 : index
    %c0_124 = arith.constant 0 : index
    %409 = vector.load %arg15[%c7_122, %c0_123, %c0_124] : memref<8x8x256xf32, #tpu.memory_space<vmem>>, vector<1x8x256xf32>
    %410 = vector.shape_cast %409 : vector<1x8x256xf32> to vector<8x256xf32>
    %cst_125 = arith.constant dense<0.000000e+00> : vector<8x256xf32>
    %411 = tpu.matmul %400, %95, %cst_125 {dimension_numbers = #tpu.dot_dimension_numbers<[1], [0], [0], [1], [0, 0, 1, 1], [], []>} : vector<8x64xf32>, vector<64x256xf32>, vector<8x256xf32> -> vector<8x256xf32>
    %412 = arith.addf %410, %411 : vector<8x256xf32>
    %413 = vector.extract_strided_slice %412 {offsets = [0, 0], sizes = [8, 64], strides = [1, 1]} : vector<8x256xf32> to vector<8x64xf32>
    %414 = arith.negf %413 : vector<8x64xf32>
    %415 = math.exp %414 : vector<8x64xf32>
    %cst_126 = arith.constant 1.000000e+00 : f32
    %416 = vector.broadcast %cst_126 : f32 to vector<8x64xf32>
    %417 = arith.addf %416, %415 : vector<8x64xf32>
    %418 = arith.divf %416, %417 : vector<8x64xf32>
    %419 = vector.extract_strided_slice %412 {offsets = [0, 128], sizes = [8, 64], strides = [1, 1]} : vector<8x256xf32> to vector<8x64xf32>
    %420 = math.tanh %419 : vector<8x64xf32>
    %421 = vector.extract_strided_slice %412 {offsets = [0, 192], sizes = [8, 64], strides = [1, 1]} : vector<8x256xf32> to vector<8x64xf32>
    %422 = arith.negf %421 : vector<8x64xf32>
    %423 = math.exp %422 : vector<8x64xf32>
    %cst_127 = arith.constant 1.000000e+00 : f32
    %424 = vector.broadcast %cst_127 : f32 to vector<8x64xf32>
    %425 = arith.addf %424, %423 : vector<8x64xf32>
    %426 = arith.divf %424, %425 : vector<8x64xf32>
    %427 = vector.extract_strided_slice %412 {offsets = [0, 64], sizes = [8, 64], strides = [1, 1]} : vector<8x256xf32> to vector<8x64xf32>
    %428 = arith.negf %427 : vector<8x64xf32>
    %429 = math.exp %428 : vector<8x64xf32>
    %cst_128 = arith.constant 1.000000e+00 : f32
    %430 = vector.broadcast %cst_128 : f32 to vector<8x64xf32>
    %431 = arith.addf %430, %429 : vector<8x64xf32>
    %432 = arith.divf %430, %431 : vector<8x64xf32>
    %433 = arith.mulf %432, %398 : vector<8x64xf32>
    %434 = arith.mulf %418, %420 : vector<8x64xf32>
    %435 = arith.addf %433, %434 : vector<8x64xf32>
    %436 = math.tanh %435 : vector<8x64xf32>
    %437 = arith.mulf %426, %436 : vector<8x64xf32>
    %438 = vector.extract_strided_slice %12 {offsets = [7, 0, 0], sizes = [1, 8, 64], strides = [1, 1, 1]} : vector<8x8x64xf32> to vector<1x8x64xf32>
    %439 = vector.shape_cast %438 : vector<1x8x64xf32> to vector<8x64xf32>
    %440 = arith.mulf %439, %437 : vector<8x64xf32>
    %441 = vector.extract_strided_slice %440 {offsets = [0, 0], sizes = [8, 32], strides = [1, 1]} : vector<8x64xf32> to vector<8x32xf32>
    %c7_129 = arith.constant 7 : index
    %c0_130 = arith.constant 0 : index
    %c0_131 = arith.constant 0 : index
    %442 = vector.load %arg16[%c7_129, %c0_130, %c0_131] : memref<8x8x64xf32, #tpu.memory_space<vmem>>, vector<1x8x32xf32>
    %443 = vector.shape_cast %442 : vector<1x8x32xf32> to vector<8x32xf32>
    %444 = vector.shape_cast %441 : vector<8x32xf32> to vector<1x8x32xf32>
    tpu.vector_store %arg16[%c7_129, %c0_130, %c0_131], %444 {strides = array<i32>} : memref<8x8x64xf32, #tpu.memory_space<vmem>>, vector<1x8x32xf32>,
    %445 = vector.extract_strided_slice %440 {offsets = [0, 32], sizes = [8, 32], strides = [1, 1]} : vector<8x64xf32> to vector<8x32xf32>
    %c0_132 = arith.constant 0 : index
    %c0_133 = arith.constant 0 : index
    %c32_134 = arith.constant 32 : index
    %446 = vector.load %arg16[%c0_132, %c0_133, %c32_134] : memref<8x8x64xf32, #tpu.memory_space<vmem>>, vector<1x8x32xf32>
    %447 = vector.shape_cast %446 : vector<1x8x32xf32> to vector<8x32xf32>
    %448 = vector.shape_cast %445 : vector<8x32xf32> to vector<1x8x32xf32>
    tpu.vector_store %arg16[%c0_132, %c0_133, %c32_134], %448 {strides = array<i32>} : memref<8x8x64xf32, #tpu.memory_space<vmem>>, vector<1x8x32xf32>,
    %c0_135 = arith.constant 0 : index
    %c0_136 = arith.constant 0 : index
    %449 = vector.load %arg6[%c0_135, %c0_136] : memref<64x256xf32, #tpu.memory_space<vmem>>, vector<64x256xf32>
    %c0_137 = arith.constant 0 : index
    %c0_138 = arith.constant 0 : index
    %450 = vector.load %arg8[%c0_137, %c0_138] : memref<1x256xf32, #tpu.memory_space<vmem>>, vector<1x256xf32>
    %c0_139 = arith.constant 0 : index
    %c0_140 = arith.constant 0 : index
    %c0_141 = arith.constant 0 : index
    %451 = vector.load %arg16[%c0_139, %c0_140, %c0_141] : memref<8x8x64xf32, #tpu.memory_space<vmem>>, vector<1x8x64xf32>
    %452 = vector.shape_cast %451 : vector<1x8x64xf32> to vector<8x64xf32>
    %cst_142 = arith.constant dense<0.000000e+00> : vector<8x256xf32>
    %453 = tpu.matmul %452, %449, %cst_142 {dimension_numbers = #tpu.dot_dimension_numbers<[1], [0], [0], [1], [0, 0, 1, 1], [], []>} : vector<8x64xf32>, vector<64x256xf32>, vector<8x256xf32> -> vector<8x256xf32>
    %454 = vector.broadcast %450 : vector<1x256xf32> to vector<8x256xf32>
    %455 = arith.addf %453, %454 : vector<8x256xf32>
    %c1_143 = arith.constant 1 : index
    %c0_144 = arith.constant 0 : index
    %c0_145 = arith.constant 0 : index
    %456 = vector.load %arg16[%c1_143, %c0_144, %c0_145] : memref<8x8x64xf32, #tpu.memory_space<vmem>>, vector<1x8x64xf32>
    %457 = vector.shape_cast %456 : vector<1x8x64xf32> to vector<8x64xf32>
    %cst_146 = arith.constant dense<0.000000e+00> : vector<8x256xf32>
    %458 = tpu.matmul %457, %449, %cst_146 {dimension_numbers = #tpu.dot_dimension_numbers<[1], [0], [0], [1], [0, 0, 1, 1], [], []>} : vector<8x64xf32>, vector<64x256xf32>, vector<8x256xf32> -> vector<8x256xf32>
    %459 = vector.broadcast %450 : vector<1x256xf32> to vector<8x256xf32>
    %460 = arith.addf %458, %459 : vector<8x256xf32>
    %c2_147 = arith.constant 2 : index
    %c0_148 = arith.constant 0 : index
    %c0_149 = arith.constant 0 : index
    %461 = vector.load %arg16[%c2_147, %c0_148, %c0_149] : memref<8x8x64xf32, #tpu.memory_space<vmem>>, vector<1x8x64xf32>
    %462 = vector.shape_cast %461 : vector<1x8x64xf32> to vector<8x64xf32>
    %cst_150 = arith.constant dense<0.000000e+00> : vector<8x256xf32>
    %463 = tpu.matmul %462, %449, %cst_150 {dimension_numbers = #tpu.dot_dimension_numbers<[1], [0], [0], [1], [0, 0, 1, 1], [], []>} : vector<8x64xf32>, vector<64x256xf32>, vector<8x256xf32> -> vector<8x256xf32>
    %464 = vector.broadcast %450 : vector<1x256xf32> to vector<8x256xf32>
    %465 = arith.addf %463, %464 : vector<8x256xf32>
    %c3_151 = arith.constant 3 : index
    %c0_152 = arith.constant 0 : index
    %c0_153 = arith.constant 0 : index
    %466 = vector.load %arg16[%c3_151, %c0_152, %c0_153] : memref<8x8x64xf32, #tpu.memory_space<vmem>>, vector<1x8x64xf32>
    %467 = vector.shape_cast %466 : vector<1x8x64xf32> to vector<8x64xf32>
    %cst_154 = arith.constant dense<0.000000e+00> : vector<8x256xf32>
    %468 = tpu.matmul %467, %449, %cst_154 {dimension_numbers = #tpu.dot_dimension_numbers<[1], [0], [0], [1], [0, 0, 1, 1], [], []>} : vector<8x64xf32>, vector<64x256xf32>, vector<8x256xf32> -> vector<8x256xf32>
    %469 = vector.broadcast %450 : vector<1x256xf32> to vector<8x256xf32>
    %470 = arith.addf %468, %469 : vector<8x256xf32>
    %c4_155 = arith.constant 4 : index
    %c0_156 = arith.constant 0 : index
    %c0_157 = arith.constant 0 : index
    %471 = vector.load %arg16[%c4_155, %c0_156, %c0_157] : memref<8x8x64xf32, #tpu.memory_space<vmem>>, vector<1x8x64xf32>
    %472 = vector.shape_cast %471 : vector<1x8x64xf32> to vector<8x64xf32>
    %cst_158 = arith.constant dense<0.000000e+00> : vector<8x256xf32>
    %473 = tpu.matmul %472, %449, %cst_158 {dimension_numbers = #tpu.dot_dimension_numbers<[1], [0], [0], [1], [0, 0, 1, 1], [], []>} : vector<8x64xf32>, vector<64x256xf32>, vector<8x256xf32> -> vector<8x256xf32>
    %474 = vector.broadcast %450 : vector<1x256xf32> to vector<8x256xf32>
    %475 = arith.addf %473, %474 : vector<8x256xf32>
    %c5_159 = arith.constant 5 : index
    %c0_160 = arith.constant 0 : index
    %c0_161 = arith.constant 0 : index
    %476 = vector.load %arg16[%c5_159, %c0_160, %c0_161] : memref<8x8x64xf32, #tpu.memory_space<vmem>>, vector<1x8x64xf32>
    %477 = vector.shape_cast %476 : vector<1x8x64xf32> to vector<8x64xf32>
    %cst_162 = arith.constant dense<0.000000e+00> : vector<8x256xf32>
    %478 = tpu.matmul %477, %449, %cst_162 {dimension_numbers = #tpu.dot_dimension_numbers<[1], [0], [0], [1], [0, 0, 1, 1], [], []>} : vector<8x64xf32>, vector<64x256xf32>, vector<8x256xf32> -> vector<8x256xf32>
    %479 = vector.broadcast %450 : vector<1x256xf32> to vector<8x256xf32>
    %480 = arith.addf %478, %479 : vector<8x256xf32>
    %c6_163 = arith.constant 6 : index
    %c0_164 = arith.constant 0 : index
    %c0_165 = arith.constant 0 : index
    %481 = vector.load %arg16[%c6_163, %c0_164, %c0_165] : memref<8x8x64xf32, #tpu.memory_space<vmem>>, vector<1x8x64xf32>
    %482 = vector.shape_cast %481 : vector<1x8x64xf32> to vector<8x64xf32>
    %cst_166 = arith.constant dense<0.000000e+00> : vector<8x256xf32>
    %483 = tpu.matmul %482, %449, %cst_166 {dimension_numbers = #tpu.dot_dimension_numbers<[1], [0], [0], [1], [0, 0, 1, 1], [], []>} : vector<8x64xf32>, vector<64x256xf32>, vector<8x256xf32> -> vector<8x256xf32>
    %484 = vector.broadcast %450 : vector<1x256xf32> to vector<8x256xf32>
    %485 = arith.addf %483, %484 : vector<8x256xf32>
    %c7_167 = arith.constant 7 : index
    %c0_168 = arith.constant 0 : index
    %c0_169 = arith.constant 0 : index
    %486 = vector.load %arg16[%c7_167, %c0_168, %c0_169] : memref<8x8x64xf32, #tpu.memory_space<vmem>>, vector<1x8x64xf32>
    %487 = vector.shape_cast %486 : vector<1x8x64xf32> to vector<8x64xf32>
    %cst_170 = arith.constant dense<0.000000e+00> : vector<8x256xf32>
    %488 = tpu.matmul %487, %449, %cst_170 {dimension_numbers = #tpu.dot_dimension_numbers<[1], [0], [0], [1], [0, 0, 1, 1], [], []>} : vector<8x64xf32>, vector<64x256xf32>, vector<8x256xf32> -> vector<8x256xf32>
    %489 = vector.broadcast %450 : vector<1x256xf32> to vector<8x256xf32>
    %490 = arith.addf %488, %489 : vector<8x256xf32>
    %491 = arith.select %33, %455, %490 : vector<8x256xi1>, vector<8x256xf32>
    %c0_171 = arith.constant 0 : index
    %c0_172 = arith.constant 0 : index
    %c0_173 = arith.constant 0 : index
    %492 = vector.load %arg15[%c0_171, %c0_172, %c0_173] : memref<8x8x256xf32, #tpu.memory_space<vmem>>, vector<1x8x256xf32>
    %493 = vector.shape_cast %492 : vector<1x8x256xf32> to vector<8x256xf32>
    %494 = vector.shape_cast %491 : vector<8x256xf32> to vector<1x8x256xf32>
    tpu.vector_store %arg15[%c0_171, %c0_172, %c0_173], %494 {strides = array<i32>} : memref<8x8x256xf32, #tpu.memory_space<vmem>>, vector<1x8x256xf32>,
    %495 = arith.select %33, %460, %485 : vector<8x256xi1>, vector<8x256xf32>
    %c1_174 = arith.constant 1 : index
    %c0_175 = arith.constant 0 : index
    %c0_176 = arith.constant 0 : index
    %496 = vector.load %arg15[%c1_174, %c0_175, %c0_176] : memref<8x8x256xf32, #tpu.memory_space<vmem>>, vector<1x8x256xf32>
    %497 = vector.shape_cast %496 : vector<1x8x256xf32> to vector<8x256xf32>
    %498 = vector.shape_cast %495 : vector<8x256xf32> to vector<1x8x256xf32>
    tpu.vector_store %arg15[%c1_174, %c0_175, %c0_176], %498 {strides = array<i32>} : memref<8x8x256xf32, #tpu.memory_space<vmem>>, vector<1x8x256xf32>,
    %499 = arith.select %33, %465, %480 : vector<8x256xi1>, vector<8x256xf32>
    %c2_177 = arith.constant 2 : index
    %c0_178 = arith.constant 0 : index
    %c0_179 = arith.constant 0 : index
    %500 = vector.load %arg15[%c2_177, %c0_178, %c0_179] : memref<8x8x256xf32, #tpu.memory_space<vmem>>, vector<1x8x256xf32>
    %501 = vector.shape_cast %500 : vector<1x8x256xf32> to vector<8x256xf32>
    %502 = vector.shape_cast %499 : vector<8x256xf32> to vector<1x8x256xf32>
    tpu.vector_store %arg15[%c2_177, %c0_178, %c0_179], %502 {strides = array<i32>} : memref<8x8x256xf32, #tpu.memory_space<vmem>>, vector<1x8x256xf32>,
    %503 = arith.select %33, %470, %475 : vector<8x256xi1>, vector<8x256xf32>
    %c3_180 = arith.constant 3 : index
    %c0_181 = arith.constant 0 : index
    %c0_182 = arith.constant 0 : index
    %504 = vector.load %arg15[%c3_180, %c0_181, %c0_182] : memref<8x8x256xf32, #tpu.memory_space<vmem>>, vector<1x8x256xf32>
    %505 = vector.shape_cast %504 : vector<1x8x256xf32> to vector<8x256xf32>
    %506 = vector.shape_cast %503 : vector<8x256xf32> to vector<1x8x256xf32>
    tpu.vector_store %arg15[%c3_180, %c0_181, %c0_182], %506 {strides = array<i32>} : memref<8x8x256xf32, #tpu.memory_space<vmem>>, vector<1x8x256xf32>,
    %507 = arith.select %33, %475, %470 : vector<8x256xi1>, vector<8x256xf32>
    %c4_183 = arith.constant 4 : index
    %c0_184 = arith.constant 0 : index
    %c0_185 = arith.constant 0 : index
    %508 = vector.load %arg15[%c4_183, %c0_184, %c0_185] : memref<8x8x256xf32, #tpu.memory_space<vmem>>, vector<1x8x256xf32>
    %509 = vector.shape_cast %508 : vector<1x8x256xf32> to vector<8x256xf32>
    %510 = vector.shape_cast %507 : vector<8x256xf32> to vector<1x8x256xf32>
    tpu.vector_store %arg15[%c4_183, %c0_184, %c0_185], %510 {strides = array<i32>} : memref<8x8x256xf32, #tpu.memory_space<vmem>>, vector<1x8x256xf32>,
    %511 = arith.select %33, %480, %465 : vector<8x256xi1>, vector<8x256xf32>
    %c5_186 = arith.constant 5 : index
    %c0_187 = arith.constant 0 : index
    %c0_188 = arith.constant 0 : index
    %512 = vector.load %arg15[%c5_186, %c0_187, %c0_188] : memref<8x8x256xf32, #tpu.memory_space<vmem>>, vector<1x8x256xf32>
    %513 = vector.shape_cast %512 : vector<1x8x256xf32> to vector<8x256xf32>
    %514 = vector.shape_cast %511 : vector<8x256xf32> to vector<1x8x256xf32>
    tpu.vector_store %arg15[%c5_186, %c0_187, %c0_188], %514 {strides = array<i32>} : memref<8x8x256xf32, #tpu.memory_space<vmem>>, vector<1x8x256xf32>,
    %515 = arith.select %33, %485, %460 : vector<8x256xi1>, vector<8x256xf32>
    %c6_189 = arith.constant 6 : index
    %c0_190 = arith.constant 0 : index
    %c0_191 = arith.constant 0 : index
    %516 = vector.load %arg15[%c6_189, %c0_190, %c0_191] : memref<8x8x256xf32, #tpu.memory_space<vmem>>, vector<1x8x256xf32>
    %517 = vector.shape_cast %516 : vector<1x8x256xf32> to vector<8x256xf32>
    %518 = vector.shape_cast %515 : vector<8x256xf32> to vector<1x8x256xf32>
    tpu.vector_store %arg15[%c6_189, %c0_190, %c0_191], %518 {strides = array<i32>} : memref<8x8x256xf32, #tpu.memory_space<vmem>>, vector<1x8x256xf32>,
    %519 = arith.select %33, %490, %455 : vector<8x256xi1>, vector<8x256xf32>
    %c7_192 = arith.constant 7 : index
    %c0_193 = arith.constant 0 : index
    %c0_194 = arith.constant 0 : index
    %520 = vector.load %arg15[%c7_192, %c0_193, %c0_194] : memref<8x8x256xf32, #tpu.memory_space<vmem>>, vector<1x8x256xf32>
    %521 = vector.shape_cast %520 : vector<1x8x256xf32> to vector<8x256xf32>
    %522 = vector.shape_cast %519 : vector<8x256xf32> to vector<1x8x256xf32>
    tpu.vector_store %arg15[%c7_192, %c0_193, %c0_194], %522 {strides = array<i32>} : memref<8x8x256xf32, #tpu.memory_space<vmem>>, vector<1x8x256xf32>,
    %c0_195 = arith.constant 0 : index
    %c0_196 = arith.constant 0 : index
    %523 = vector.load %arg7[%c0_195, %c0_196] : memref<64x256xf32, #tpu.memory_space<vmem>>, vector<64x256xf32>
    %c0_197 = arith.constant 0 : index
    %c0_198 = arith.constant 0 : index
    %c0_199 = arith.constant 0 : index
    %524 = vector.load %arg15[%c0_197, %c0_198, %c0_199] : memref<8x8x256xf32, #tpu.memory_space<vmem>>, vector<1x8x256xf32>
    %525 = vector.shape_cast %524 : vector<1x8x256xf32> to vector<8x256xf32>
    %526 = vector.extract_strided_slice %525 {offsets = [0, 0], sizes = [8, 64], strides = [1, 1]} : vector<8x256xf32> to vector<8x64xf32>
    %527 = arith.negf %526 : vector<8x64xf32>
    %528 = math.exp %527 : vector<8x64xf32>
    %cst_200 = arith.constant 1.000000e+00 : f32
    %529 = vector.broadcast %cst_200 : f32 to vector<8x64xf32>
    %530 = arith.addf %529, %528 : vector<8x64xf32>
    %531 = arith.divf %529, %530 : vector<8x64xf32>
    %532 = vector.extract_strided_slice %525 {offsets = [0, 128], sizes = [8, 64], strides = [1, 1]} : vector<8x256xf32> to vector<8x64xf32>
    %533 = math.tanh %532 : vector<8x64xf32>
    %534 = vector.extract_strided_slice %525 {offsets = [0, 192], sizes = [8, 64], strides = [1, 1]} : vector<8x256xf32> to vector<8x64xf32>
    %535 = arith.negf %534 : vector<8x64xf32>
    %536 = math.exp %535 : vector<8x64xf32>
    %cst_201 = arith.constant 1.000000e+00 : f32
    %537 = vector.broadcast %cst_201 : f32 to vector<8x64xf32>
    %538 = arith.addf %537, %536 : vector<8x64xf32>
    %539 = arith.divf %537, %538 : vector<8x64xf32>
    %540 = arith.mulf %531, %533 : vector<8x64xf32>
    %541 = math.tanh %540 : vector<8x64xf32>
    %542 = arith.mulf %539, %541 : vector<8x64xf32>
    %543 = vector.extract_strided_slice %12 {offsets = [0, 0, 0], sizes = [1, 8, 64], strides = [1, 1, 1]} : vector<8x8x64xf32> to vector<1x8x64xf32>
    %544 = vector.shape_cast %543 : vector<1x8x64xf32> to vector<8x64xf32>
    %545 = arith.mulf %544, %542 : vector<8x64xf32>
    %546 = arith.mulf %544, %540 : vector<8x64xf32>
    %547 = vector.extract_strided_slice %545 {offsets = [0, 0], sizes = [8, 32], strides = [1, 1]} : vector<8x64xf32> to vector<8x32xf32>
    %c0_202 = arith.constant 0 : index
    %c0_203 = arith.constant 0 : index
    %c0_204 = arith.constant 0 : index
    %548 = vector.load %arg16[%c0_202, %c0_203, %c0_204] : memref<8x8x64xf32, #tpu.memory_space<vmem>>, vector<1x8x32xf32>
    %549 = vector.shape_cast %548 : vector<1x8x32xf32> to vector<8x32xf32>
    %550 = vector.shape_cast %547 : vector<8x32xf32> to vector<1x8x32xf32>
    tpu.vector_store %arg16[%c0_202, %c0_203, %c0_204], %550 {strides = array<i32>} : memref<8x8x64xf32, #tpu.memory_space<vmem>>, vector<1x8x32xf32>,
    %551 = vector.extract_strided_slice %545 {offsets = [0, 32], sizes = [8, 32], strides = [1, 1]} : vector<8x64xf32> to vector<8x32xf32>
    %c7_205 = arith.constant 7 : index
    %c0_206 = arith.constant 0 : index
    %c32_207 = arith.constant 32 : index
    %552 = vector.load %arg16[%c7_205, %c0_206, %c32_207] : memref<8x8x64xf32, #tpu.memory_space<vmem>>, vector<1x8x32xf32>
    %553 = vector.shape_cast %552 : vector<1x8x32xf32> to vector<8x32xf32>
    %554 = vector.shape_cast %551 : vector<8x32xf32> to vector<1x8x32xf32>
    tpu.vector_store %arg16[%c7_205, %c0_206, %c32_207], %554 {strides = array<i32>} : memref<8x8x64xf32, #tpu.memory_space<vmem>>, vector<1x8x32xf32>,
    %c1_208 = arith.constant 1 : index
    %c0_209 = arith.constant 0 : index
    %c0_210 = arith.constant 0 : index
    %555 = vector.load %arg15[%c1_208, %c0_209, %c0_210] : memref<8x8x256xf32, #tpu.memory_space<vmem>>, vector<1x8x256xf32>
    %556 = vector.shape_cast %555 : vector<1x8x256xf32> to vector<8x256xf32>
    %cst_211 = arith.constant dense<0.000000e+00> : vector<8x256xf32>
    %557 = tpu.matmul %545, %523, %cst_211 {dimension_numbers = #tpu.dot_dimension_numbers<[1], [0], [0], [1], [0, 0, 1, 1], [], []>} : vector<8x64xf32>, vector<64x256xf32>, vector<8x256xf32> -> vector<8x256xf32>
    %558 = arith.addf %556, %557 : vector<8x256xf32>
    %559 = vector.extract_strided_slice %558 {offsets = [0, 0], sizes = [8, 64], strides = [1, 1]} : vector<8x256xf32> to vector<8x64xf32>
    %560 = arith.negf %559 : vector<8x64xf32>
    %561 = math.exp %560 : vector<8x64xf32>
    %cst_212 = arith.constant 1.000000e+00 : f32
    %562 = vector.broadcast %cst_212 : f32 to vector<8x64xf32>
    %563 = arith.addf %562, %561 : vector<8x64xf32>
    %564 = arith.divf %562, %563 : vector<8x64xf32>
    %565 = vector.extract_strided_slice %558 {offsets = [0, 128], sizes = [8, 64], strides = [1, 1]} : vector<8x256xf32> to vector<8x64xf32>
    %566 = math.tanh %565 : vector<8x64xf32>
    %567 = vector.extract_strided_slice %558 {offsets = [0, 192], sizes = [8, 64], strides = [1, 1]} : vector<8x256xf32> to vector<8x64xf32>
    %568 = arith.negf %567 : vector<8x64xf32>
    %569 = math.exp %568 : vector<8x64xf32>
    %cst_213 = arith.constant 1.000000e+00 : f32
    %570 = vector.broadcast %cst_213 : f32 to vector<8x64xf32>
    %571 = arith.addf %570, %569 : vector<8x64xf32>
    %572 = arith.divf %570, %571 : vector<8x64xf32>
    %573 = vector.extract_strided_slice %558 {offsets = [0, 64], sizes = [8, 64], strides = [1, 1]} : vector<8x256xf32> to vector<8x64xf32>
    %574 = arith.negf %573 : vector<8x64xf32>
    %575 = math.exp %574 : vector<8x64xf32>
    %cst_214 = arith.constant 1.000000e+00 : f32
    %576 = vector.broadcast %cst_214 : f32 to vector<8x64xf32>
    %577 = arith.addf %576, %575 : vector<8x64xf32>
    %578 = arith.divf %576, %577 : vector<8x64xf32>
    %579 = arith.mulf %578, %546 : vector<8x64xf32>
    %580 = arith.mulf %564, %566 : vector<8x64xf32>
    %581 = arith.addf %579, %580 : vector<8x64xf32>
    %582 = math.tanh %581 : vector<8x64xf32>
    %583 = arith.mulf %572, %582 : vector<8x64xf32>
    %584 = vector.extract_strided_slice %12 {offsets = [1, 0, 0], sizes = [1, 8, 64], strides = [1, 1, 1]} : vector<8x8x64xf32> to vector<1x8x64xf32>
    %585 = vector.shape_cast %584 : vector<1x8x64xf32> to vector<8x64xf32>
    %586 = vector.extract_strided_slice %14 {offsets = [1, 0, 0], sizes = [1, 8, 64], strides = [1, 1, 1]} : vector<8x8x64xf32> to vector<1x8x64xf32>
    %587 = vector.shape_cast %586 : vector<1x8x64xf32> to vector<8x64xf32>
    %588 = arith.mulf %585, %583 : vector<8x64xf32>
    %589 = arith.mulf %585, %581 : vector<8x64xf32>
    %590 = arith.mulf %587, %546 : vector<8x64xf32>
    %591 = arith.addf %589, %590 : vector<8x64xf32>
    %592 = arith.mulf %587, %545 : vector<8x64xf32>
    %593 = arith.addf %588, %592 : vector<8x64xf32>
    %594 = vector.extract_strided_slice %588 {offsets = [0, 0], sizes = [8, 32], strides = [1, 1]} : vector<8x64xf32> to vector<8x32xf32>
    %c1_215 = arith.constant 1 : index
    %c0_216 = arith.constant 0 : index
    %c0_217 = arith.constant 0 : index
    %595 = vector.load %arg16[%c1_215, %c0_216, %c0_217] : memref<8x8x64xf32, #tpu.memory_space<vmem>>, vector<1x8x32xf32>
    %596 = vector.shape_cast %595 : vector<1x8x32xf32> to vector<8x32xf32>
    %597 = vector.shape_cast %594 : vector<8x32xf32> to vector<1x8x32xf32>
    tpu.vector_store %arg16[%c1_215, %c0_216, %c0_217], %597 {strides = array<i32>} : memref<8x8x64xf32, #tpu.memory_space<vmem>>, vector<1x8x32xf32>,
    %598 = vector.extract_strided_slice %588 {offsets = [0, 32], sizes = [8, 32], strides = [1, 1]} : vector<8x64xf32> to vector<8x32xf32>
    %c6_218 = arith.constant 6 : index
    %c0_219 = arith.constant 0 : index
    %c32_220 = arith.constant 32 : index
    %599 = vector.load %arg16[%c6_218, %c0_219, %c32_220] : memref<8x8x64xf32, #tpu.memory_space<vmem>>, vector<1x8x32xf32>
    %600 = vector.shape_cast %599 : vector<1x8x32xf32> to vector<8x32xf32>
    %601 = vector.shape_cast %598 : vector<8x32xf32> to vector<1x8x32xf32>
    tpu.vector_store %arg16[%c6_218, %c0_219, %c32_220], %601 {strides = array<i32>} : memref<8x8x64xf32, #tpu.memory_space<vmem>>, vector<1x8x32xf32>,
    %c2_221 = arith.constant 2 : index
    %c0_222 = arith.constant 0 : index
    %c0_223 = arith.constant 0 : index
    %602 = vector.load %arg15[%c2_221, %c0_222, %c0_223] : memref<8x8x256xf32, #tpu.memory_space<vmem>>, vector<1x8x256xf32>
    %603 = vector.shape_cast %602 : vector<1x8x256xf32> to vector<8x256xf32>
    %cst_224 = arith.constant dense<0.000000e+00> : vector<8x256xf32>
    %604 = tpu.matmul %593, %523, %cst_224 {dimension_numbers = #tpu.dot_dimension_numbers<[1], [0], [0], [1], [0, 0, 1, 1], [], []>} : vector<8x64xf32>, vector<64x256xf32>, vector<8x256xf32> -> vector<8x256xf32>
    %605 = arith.addf %603, %604 : vector<8x256xf32>
    %606 = vector.extract_strided_slice %605 {offsets = [0, 0], sizes = [8, 64], strides = [1, 1]} : vector<8x256xf32> to vector<8x64xf32>
    %607 = arith.negf %606 : vector<8x64xf32>
    %608 = math.exp %607 : vector<8x64xf32>
    %cst_225 = arith.constant 1.000000e+00 : f32
    %609 = vector.broadcast %cst_225 : f32 to vector<8x64xf32>
    %610 = arith.addf %609, %608 : vector<8x64xf32>
    %611 = arith.divf %609, %610 : vector<8x64xf32>
    %612 = vector.extract_strided_slice %605 {offsets = [0, 128], sizes = [8, 64], strides = [1, 1]} : vector<8x256xf32> to vector<8x64xf32>
    %613 = math.tanh %612 : vector<8x64xf32>
    %614 = vector.extract_strided_slice %605 {offsets = [0, 192], sizes = [8, 64], strides = [1, 1]} : vector<8x256xf32> to vector<8x64xf32>
    %615 = arith.negf %614 : vector<8x64xf32>
    %616 = math.exp %615 : vector<8x64xf32>
    %cst_226 = arith.constant 1.000000e+00 : f32
    %617 = vector.broadcast %cst_226 : f32 to vector<8x64xf32>
    %618 = arith.addf %617, %616 : vector<8x64xf32>
    %619 = arith.divf %617, %618 : vector<8x64xf32>
    %620 = vector.extract_strided_slice %605 {offsets = [0, 64], sizes = [8, 64], strides = [1, 1]} : vector<8x256xf32> to vector<8x64xf32>
    %621 = arith.negf %620 : vector<8x64xf32>
    %622 = math.exp %621 : vector<8x64xf32>
    %cst_227 = arith.constant 1.000000e+00 : f32
    %623 = vector.broadcast %cst_227 : f32 to vector<8x64xf32>
    %624 = arith.addf %623, %622 : vector<8x64xf32>
    %625 = arith.divf %623, %624 : vector<8x64xf32>
    %626 = arith.mulf %625, %591 : vector<8x64xf32>
    %627 = arith.mulf %611, %613 : vector<8x64xf32>
    %628 = arith.addf %626, %627 : vector<8x64xf32>
    %629 = math.tanh %628 : vector<8x64xf32>
    %630 = arith.mulf %619, %629 : vector<8x64xf32>
    %631 = vector.extract_strided_slice %12 {offsets = [2, 0, 0], sizes = [1, 8, 64], strides = [1, 1, 1]} : vector<8x8x64xf32> to vector<1x8x64xf32>
    %632 = vector.shape_cast %631 : vector<1x8x64xf32> to vector<8x64xf32>
    %633 = vector.extract_strided_slice %14 {offsets = [2, 0, 0], sizes = [1, 8, 64], strides = [1, 1, 1]} : vector<8x8x64xf32> to vector<1x8x64xf32>
    %634 = vector.shape_cast %633 : vector<1x8x64xf32> to vector<8x64xf32>
    %635 = arith.mulf %632, %630 : vector<8x64xf32>
    %636 = arith.mulf %632, %628 : vector<8x64xf32>
    %637 = arith.mulf %634, %591 : vector<8x64xf32>
    %638 = arith.addf %636, %637 : vector<8x64xf32>
    %639 = arith.mulf %634, %593 : vector<8x64xf32>
    %640 = arith.addf %635, %639 : vector<8x64xf32>
    %641 = vector.extract_strided_slice %635 {offsets = [0, 0], sizes = [8, 32], strides = [1, 1]} : vector<8x64xf32> to vector<8x32xf32>
    %c2_228 = arith.constant 2 : index
    %c0_229 = arith.constant 0 : index
    %c0_230 = arith.constant 0 : index
    %642 = vector.load %arg16[%c2_228, %c0_229, %c0_230] : memref<8x8x64xf32, #tpu.memory_space<vmem>>, vector<1x8x32xf32>
    %643 = vector.shape_cast %642 : vector<1x8x32xf32> to vector<8x32xf32>
    %644 = vector.shape_cast %641 : vector<8x32xf32> to vector<1x8x32xf32>
    tpu.vector_store %arg16[%c2_228, %c0_229, %c0_230], %644 {strides = array<i32>} : memref<8x8x64xf32, #tpu.memory_space<vmem>>, vector<1x8x32xf32>,
    %645 = vector.extract_strided_slice %635 {offsets = [0, 32], sizes = [8, 32], strides = [1, 1]} : vector<8x64xf32> to vector<8x32xf32>
    %c5_231 = arith.constant 5 : index
    %c0_232 = arith.constant 0 : index
    %c32_233 = arith.constant 32 : index
    %646 = vector.load %arg16[%c5_231, %c0_232, %c32_233] : memref<8x8x64xf32, #tpu.memory_space<vmem>>, vector<1x8x32xf32>
    %647 = vector.shape_cast %646 : vector<1x8x32xf32> to vector<8x32xf32>
    %648 = vector.shape_cast %645 : vector<8x32xf32> to vector<1x8x32xf32>
    tpu.vector_store %arg16[%c5_231, %c0_232, %c32_233], %648 {strides = array<i32>} : memref<8x8x64xf32, #tpu.memory_space<vmem>>, vector<1x8x32xf32>,
    %c3_234 = arith.constant 3 : index
    %c0_235 = arith.constant 0 : index
    %c0_236 = arith.constant 0 : index
    %649 = vector.load %arg15[%c3_234, %c0_235, %c0_236] : memref<8x8x256xf32, #tpu.memory_space<vmem>>, vector<1x8x256xf32>
    %650 = vector.shape_cast %649 : vector<1x8x256xf32> to vector<8x256xf32>
    %cst_237 = arith.constant dense<0.000000e+00> : vector<8x256xf32>
    %651 = tpu.matmul %640, %523, %cst_237 {dimension_numbers = #tpu.dot_dimension_numbers<[1], [0], [0], [1], [0, 0, 1, 1], [], []>} : vector<8x64xf32>, vector<64x256xf32>, vector<8x256xf32> -> vector<8x256xf32>
    %652 = arith.addf %650, %651 : vector<8x256xf32>
    %653 = vector.extract_strided_slice %652 {offsets = [0, 0], sizes = [8, 64], strides = [1, 1]} : vector<8x256xf32> to vector<8x64xf32>
    %654 = arith.negf %653 : vector<8x64xf32>
    %655 = math.exp %654 : vector<8x64xf32>
    %cst_238 = arith.constant 1.000000e+00 : f32
    %656 = vector.broadcast %cst_238 : f32 to vector<8x64xf32>
    %657 = arith.addf %656, %655 : vector<8x64xf32>
    %658 = arith.divf %656, %657 : vector<8x64xf32>
    %659 = vector.extract_strided_slice %652 {offsets = [0, 128], sizes = [8, 64], strides = [1, 1]} : vector<8x256xf32> to vector<8x64xf32>
    %660 = math.tanh %659 : vector<8x64xf32>
    %661 = vector.extract_strided_slice %652 {offsets = [0, 192], sizes = [8, 64], strides = [1, 1]} : vector<8x256xf32> to vector<8x64xf32>
    %662 = arith.negf %661 : vector<8x64xf32>
    %663 = math.exp %662 : vector<8x64xf32>
    %cst_239 = arith.constant 1.000000e+00 : f32
    %664 = vector.broadcast %cst_239 : f32 to vector<8x64xf32>
    %665 = arith.addf %664, %663 : vector<8x64xf32>
    %666 = arith.divf %664, %665 : vector<8x64xf32>
    %667 = vector.extract_strided_slice %652 {offsets = [0, 64], sizes = [8, 64], strides = [1, 1]} : vector<8x256xf32> to vector<8x64xf32>
    %668 = arith.negf %667 : vector<8x64xf32>
    %669 = math.exp %668 : vector<8x64xf32>
    %cst_240 = arith.constant 1.000000e+00 : f32
    %670 = vector.broadcast %cst_240 : f32 to vector<8x64xf32>
    %671 = arith.addf %670, %669 : vector<8x64xf32>
    %672 = arith.divf %670, %671 : vector<8x64xf32>
    %673 = arith.mulf %672, %638 : vector<8x64xf32>
    %674 = arith.mulf %658, %660 : vector<8x64xf32>
    %675 = arith.addf %673, %674 : vector<8x64xf32>
    %676 = math.tanh %675 : vector<8x64xf32>
    %677 = arith.mulf %666, %676 : vector<8x64xf32>
    %678 = vector.extract_strided_slice %12 {offsets = [3, 0, 0], sizes = [1, 8, 64], strides = [1, 1, 1]} : vector<8x8x64xf32> to vector<1x8x64xf32>
    %679 = vector.shape_cast %678 : vector<1x8x64xf32> to vector<8x64xf32>
    %680 = vector.extract_strided_slice %14 {offsets = [3, 0, 0], sizes = [1, 8, 64], strides = [1, 1, 1]} : vector<8x8x64xf32> to vector<1x8x64xf32>
    %681 = vector.shape_cast %680 : vector<1x8x64xf32> to vector<8x64xf32>
    %682 = arith.mulf %679, %677 : vector<8x64xf32>
    %683 = arith.mulf %679, %675 : vector<8x64xf32>
    %684 = arith.mulf %681, %638 : vector<8x64xf32>
    %685 = arith.addf %683, %684 : vector<8x64xf32>
    %686 = arith.mulf %681, %640 : vector<8x64xf32>
    %687 = arith.addf %682, %686 : vector<8x64xf32>
    %688 = vector.extract_strided_slice %682 {offsets = [0, 0], sizes = [8, 32], strides = [1, 1]} : vector<8x64xf32> to vector<8x32xf32>
    %c3_241 = arith.constant 3 : index
    %c0_242 = arith.constant 0 : index
    %c0_243 = arith.constant 0 : index
    %689 = vector.load %arg16[%c3_241, %c0_242, %c0_243] : memref<8x8x64xf32, #tpu.memory_space<vmem>>, vector<1x8x32xf32>
    %690 = vector.shape_cast %689 : vector<1x8x32xf32> to vector<8x32xf32>
    %691 = vector.shape_cast %688 : vector<8x32xf32> to vector<1x8x32xf32>
    tpu.vector_store %arg16[%c3_241, %c0_242, %c0_243], %691 {strides = array<i32>} : memref<8x8x64xf32, #tpu.memory_space<vmem>>, vector<1x8x32xf32>,
    %692 = vector.extract_strided_slice %682 {offsets = [0, 32], sizes = [8, 32], strides = [1, 1]} : vector<8x64xf32> to vector<8x32xf32>
    %c4_244 = arith.constant 4 : index
    %c0_245 = arith.constant 0 : index
    %c32_246 = arith.constant 32 : index
    %693 = vector.load %arg16[%c4_244, %c0_245, %c32_246] : memref<8x8x64xf32, #tpu.memory_space<vmem>>, vector<1x8x32xf32>
    %694 = vector.shape_cast %693 : vector<1x8x32xf32> to vector<8x32xf32>
    %695 = vector.shape_cast %692 : vector<8x32xf32> to vector<1x8x32xf32>
    tpu.vector_store %arg16[%c4_244, %c0_245, %c32_246], %695 {strides = array<i32>} : memref<8x8x64xf32, #tpu.memory_space<vmem>>, vector<1x8x32xf32>,
    %c4_247 = arith.constant 4 : index
    %c0_248 = arith.constant 0 : index
    %c0_249 = arith.constant 0 : index
    %696 = vector.load %arg15[%c4_247, %c0_248, %c0_249] : memref<8x8x256xf32, #tpu.memory_space<vmem>>, vector<1x8x256xf32>
    %697 = vector.shape_cast %696 : vector<1x8x256xf32> to vector<8x256xf32>
    %cst_250 = arith.constant dense<0.000000e+00> : vector<8x256xf32>
    %698 = tpu.matmul %687, %523, %cst_250 {dimension_numbers = #tpu.dot_dimension_numbers<[1], [0], [0], [1], [0, 0, 1, 1], [], []>} : vector<8x64xf32>, vector<64x256xf32>, vector<8x256xf32> -> vector<8x256xf32>
    %699 = arith.addf %697, %698 : vector<8x256xf32>
    %700 = vector.extract_strided_slice %699 {offsets = [0, 0], sizes = [8, 64], strides = [1, 1]} : vector<8x256xf32> to vector<8x64xf32>
    %701 = arith.negf %700 : vector<8x64xf32>
    %702 = math.exp %701 : vector<8x64xf32>
    %cst_251 = arith.constant 1.000000e+00 : f32
    %703 = vector.broadcast %cst_251 : f32 to vector<8x64xf32>
    %704 = arith.addf %703, %702 : vector<8x64xf32>
    %705 = arith.divf %703, %704 : vector<8x64xf32>
    %706 = vector.extract_strided_slice %699 {offsets = [0, 128], sizes = [8, 64], strides = [1, 1]} : vector<8x256xf32> to vector<8x64xf32>
    %707 = math.tanh %706 : vector<8x64xf32>
    %708 = vector.extract_strided_slice %699 {offsets = [0, 192], sizes = [8, 64], strides = [1, 1]} : vector<8x256xf32> to vector<8x64xf32>
    %709 = arith.negf %708 : vector<8x64xf32>
    %710 = math.exp %709 : vector<8x64xf32>
    %cst_252 = arith.constant 1.000000e+00 : f32
    %711 = vector.broadcast %cst_252 : f32 to vector<8x64xf32>
    %712 = arith.addf %711, %710 : vector<8x64xf32>
    %713 = arith.divf %711, %712 : vector<8x64xf32>
    %714 = vector.extract_strided_slice %699 {offsets = [0, 64], sizes = [8, 64], strides = [1, 1]} : vector<8x256xf32> to vector<8x64xf32>
    %715 = arith.negf %714 : vector<8x64xf32>
    %716 = math.exp %715 : vector<8x64xf32>
    %cst_253 = arith.constant 1.000000e+00 : f32
    %717 = vector.broadcast %cst_253 : f32 to vector<8x64xf32>
    %718 = arith.addf %717, %716 : vector<8x64xf32>
    %719 = arith.divf %717, %718 : vector<8x64xf32>
    %720 = arith.mulf %719, %685 : vector<8x64xf32>
    %721 = arith.mulf %705, %707 : vector<8x64xf32>
    %722 = arith.addf %720, %721 : vector<8x64xf32>
    %723 = math.tanh %722 : vector<8x64xf32>
    %724 = arith.mulf %713, %723 : vector<8x64xf32>
    %725 = vector.extract_strided_slice %12 {offsets = [4, 0, 0], sizes = [1, 8, 64], strides = [1, 1, 1]} : vector<8x8x64xf32> to vector<1x8x64xf32>
    %726 = vector.shape_cast %725 : vector<1x8x64xf32> to vector<8x64xf32>
    %727 = vector.extract_strided_slice %14 {offsets = [4, 0, 0], sizes = [1, 8, 64], strides = [1, 1, 1]} : vector<8x8x64xf32> to vector<1x8x64xf32>
    %728 = vector.shape_cast %727 : vector<1x8x64xf32> to vector<8x64xf32>
    %729 = arith.mulf %726, %724 : vector<8x64xf32>
    %730 = arith.mulf %726, %722 : vector<8x64xf32>
    %731 = arith.mulf %728, %685 : vector<8x64xf32>
    %732 = arith.addf %730, %731 : vector<8x64xf32>
    %733 = arith.mulf %728, %687 : vector<8x64xf32>
    %734 = arith.addf %729, %733 : vector<8x64xf32>
    %735 = vector.extract_strided_slice %729 {offsets = [0, 0], sizes = [8, 32], strides = [1, 1]} : vector<8x64xf32> to vector<8x32xf32>
    %c4_254 = arith.constant 4 : index
    %c0_255 = arith.constant 0 : index
    %c0_256 = arith.constant 0 : index
    %736 = vector.load %arg16[%c4_254, %c0_255, %c0_256] : memref<8x8x64xf32, #tpu.memory_space<vmem>>, vector<1x8x32xf32>
    %737 = vector.shape_cast %736 : vector<1x8x32xf32> to vector<8x32xf32>
    %738 = vector.shape_cast %735 : vector<8x32xf32> to vector<1x8x32xf32>
    tpu.vector_store %arg16[%c4_254, %c0_255, %c0_256], %738 {strides = array<i32>} : memref<8x8x64xf32, #tpu.memory_space<vmem>>, vector<1x8x32xf32>,
    %739 = vector.extract_strided_slice %729 {offsets = [0, 32], sizes = [8, 32], strides = [1, 1]} : vector<8x64xf32> to vector<8x32xf32>
    %c3_257 = arith.constant 3 : index
    %c0_258 = arith.constant 0 : index
    %c32_259 = arith.constant 32 : index
    %740 = vector.load %arg16[%c3_257, %c0_258, %c32_259] : memref<8x8x64xf32, #tpu.memory_space<vmem>>, vector<1x8x32xf32>
    %741 = vector.shape_cast %740 : vector<1x8x32xf32> to vector<8x32xf32>
    %742 = vector.shape_cast %739 : vector<8x32xf32> to vector<1x8x32xf32>
    tpu.vector_store %arg16[%c3_257, %c0_258, %c32_259], %742 {strides = array<i32>} : memref<8x8x64xf32, #tpu.memory_space<vmem>>, vector<1x8x32xf32>,
    %c5_260 = arith.constant 5 : index
    %c0_261 = arith.constant 0 : index
    %c0_262 = arith.constant 0 : index
    %743 = vector.load %arg15[%c5_260, %c0_261, %c0_262] : memref<8x8x256xf32, #tpu.memory_space<vmem>>, vector<1x8x256xf32>
    %744 = vector.shape_cast %743 : vector<1x8x256xf32> to vector<8x256xf32>
    %cst_263 = arith.constant dense<0.000000e+00> : vector<8x256xf32>
    %745 = tpu.matmul %734, %523, %cst_263 {dimension_numbers = #tpu.dot_dimension_numbers<[1], [0], [0], [1], [0, 0, 1, 1], [], []>} : vector<8x64xf32>, vector<64x256xf32>, vector<8x256xf32> -> vector<8x256xf32>
    %746 = arith.addf %744, %745 : vector<8x256xf32>
    %747 = vector.extract_strided_slice %746 {offsets = [0, 0], sizes = [8, 64], strides = [1, 1]} : vector<8x256xf32> to vector<8x64xf32>
    %748 = arith.negf %747 : vector<8x64xf32>
    %749 = math.exp %748 : vector<8x64xf32>
    %cst_264 = arith.constant 1.000000e+00 : f32
    %750 = vector.broadcast %cst_264 : f32 to vector<8x64xf32>
    %751 = arith.addf %750, %749 : vector<8x64xf32>
    %752 = arith.divf %750, %751 : vector<8x64xf32>
    %753 = vector.extract_strided_slice %746 {offsets = [0, 128], sizes = [8, 64], strides = [1, 1]} : vector<8x256xf32> to vector<8x64xf32>
    %754 = math.tanh %753 : vector<8x64xf32>
    %755 = vector.extract_strided_slice %746 {offsets = [0, 192], sizes = [8, 64], strides = [1, 1]} : vector<8x256xf32> to vector<8x64xf32>
    %756 = arith.negf %755 : vector<8x64xf32>
    %757 = math.exp %756 : vector<8x64xf32>
    %cst_265 = arith.constant 1.000000e+00 : f32
    %758 = vector.broadcast %cst_265 : f32 to vector<8x64xf32>
    %759 = arith.addf %758, %757 : vector<8x64xf32>
    %760 = arith.divf %758, %759 : vector<8x64xf32>
    %761 = vector.extract_strided_slice %746 {offsets = [0, 64], sizes = [8, 64], strides = [1, 1]} : vector<8x256xf32> to vector<8x64xf32>
    %762 = arith.negf %761 : vector<8x64xf32>
    %763 = math.exp %762 : vector<8x64xf32>
    %cst_266 = arith.constant 1.000000e+00 : f32
    %764 = vector.broadcast %cst_266 : f32 to vector<8x64xf32>
    %765 = arith.addf %764, %763 : vector<8x64xf32>
    %766 = arith.divf %764, %765 : vector<8x64xf32>
    %767 = arith.mulf %766, %732 : vector<8x64xf32>
    %768 = arith.mulf %752, %754 : vector<8x64xf32>
    %769 = arith.addf %767, %768 : vector<8x64xf32>
    %770 = math.tanh %769 : vector<8x64xf32>
    %771 = arith.mulf %760, %770 : vector<8x64xf32>
    %772 = vector.extract_strided_slice %12 {offsets = [5, 0, 0], sizes = [1, 8, 64], strides = [1, 1, 1]} : vector<8x8x64xf32> to vector<1x8x64xf32>
    %773 = vector.shape_cast %772 : vector<1x8x64xf32> to vector<8x64xf32>
    %774 = vector.extract_strided_slice %14 {offsets = [5, 0, 0], sizes = [1, 8, 64], strides = [1, 1, 1]} : vector<8x8x64xf32> to vector<1x8x64xf32>
    %775 = vector.shape_cast %774 : vector<1x8x64xf32> to vector<8x64xf32>
    %776 = arith.mulf %773, %771 : vector<8x64xf32>
    %777 = arith.mulf %773, %769 : vector<8x64xf32>
    %778 = arith.mulf %775, %732 : vector<8x64xf32>
    %779 = arith.addf %777, %778 : vector<8x64xf32>
    %780 = arith.mulf %775, %734 : vector<8x64xf32>
    %781 = arith.addf %776, %780 : vector<8x64xf32>
    %782 = vector.extract_strided_slice %776 {offsets = [0, 0], sizes = [8, 32], strides = [1, 1]} : vector<8x64xf32> to vector<8x32xf32>
    %c5_267 = arith.constant 5 : index
    %c0_268 = arith.constant 0 : index
    %c0_269 = arith.constant 0 : index
    %783 = vector.load %arg16[%c5_267, %c0_268, %c0_269] : memref<8x8x64xf32, #tpu.memory_space<vmem>>, vector<1x8x32xf32>
    %784 = vector.shape_cast %783 : vector<1x8x32xf32> to vector<8x32xf32>
    %785 = vector.shape_cast %782 : vector<8x32xf32> to vector<1x8x32xf32>
    tpu.vector_store %arg16[%c5_267, %c0_268, %c0_269], %785 {strides = array<i32>} : memref<8x8x64xf32, #tpu.memory_space<vmem>>, vector<1x8x32xf32>,
    %786 = vector.extract_strided_slice %776 {offsets = [0, 32], sizes = [8, 32], strides = [1, 1]} : vector<8x64xf32> to vector<8x32xf32>
    %c2_270 = arith.constant 2 : index
    %c0_271 = arith.constant 0 : index
    %c32_272 = arith.constant 32 : index
    %787 = vector.load %arg16[%c2_270, %c0_271, %c32_272] : memref<8x8x64xf32, #tpu.memory_space<vmem>>, vector<1x8x32xf32>
    %788 = vector.shape_cast %787 : vector<1x8x32xf32> to vector<8x32xf32>
    %789 = vector.shape_cast %786 : vector<8x32xf32> to vector<1x8x32xf32>
    tpu.vector_store %arg16[%c2_270, %c0_271, %c32_272], %789 {strides = array<i32>} : memref<8x8x64xf32, #tpu.memory_space<vmem>>, vector<1x8x32xf32>,
    %c6_273 = arith.constant 6 : index
    %c0_274 = arith.constant 0 : index
    %c0_275 = arith.constant 0 : index
    %790 = vector.load %arg15[%c6_273, %c0_274, %c0_275] : memref<8x8x256xf32, #tpu.memory_space<vmem>>, vector<1x8x256xf32>
    %791 = vector.shape_cast %790 : vector<1x8x256xf32> to vector<8x256xf32>
    %cst_276 = arith.constant dense<0.000000e+00> : vector<8x256xf32>
    %792 = tpu.matmul %781, %523, %cst_276 {dimension_numbers = #tpu.dot_dimension_numbers<[1], [0], [0], [1], [0, 0, 1, 1], [], []>} : vector<8x64xf32>, vector<64x256xf32>, vector<8x256xf32> -> vector<8x256xf32>
    %793 = arith.addf %791, %792 : vector<8x256xf32>
    %794 = vector.extract_strided_slice %793 {offsets = [0, 0], sizes = [8, 64], strides = [1, 1]} : vector<8x256xf32> to vector<8x64xf32>
    %795 = arith.negf %794 : vector<8x64xf32>
    %796 = math.exp %795 : vector<8x64xf32>
    %cst_277 = arith.constant 1.000000e+00 : f32
    %797 = vector.broadcast %cst_277 : f32 to vector<8x64xf32>
    %798 = arith.addf %797, %796 : vector<8x64xf32>
    %799 = arith.divf %797, %798 : vector<8x64xf32>
    %800 = vector.extract_strided_slice %793 {offsets = [0, 128], sizes = [8, 64], strides = [1, 1]} : vector<8x256xf32> to vector<8x64xf32>
    %801 = math.tanh %800 : vector<8x64xf32>
    %802 = vector.extract_strided_slice %793 {offsets = [0, 192], sizes = [8, 64], strides = [1, 1]} : vector<8x256xf32> to vector<8x64xf32>
    %803 = arith.negf %802 : vector<8x64xf32>
    %804 = math.exp %803 : vector<8x64xf32>
    %cst_278 = arith.constant 1.000000e+00 : f32
    %805 = vector.broadcast %cst_278 : f32 to vector<8x64xf32>
    %806 = arith.addf %805, %804 : vector<8x64xf32>
    %807 = arith.divf %805, %806 : vector<8x64xf32>
    %808 = vector.extract_strided_slice %793 {offsets = [0, 64], sizes = [8, 64], strides = [1, 1]} : vector<8x256xf32> to vector<8x64xf32>
    %809 = arith.negf %808 : vector<8x64xf32>
    %810 = math.exp %809 : vector<8x64xf32>
    %cst_279 = arith.constant 1.000000e+00 : f32
    %811 = vector.broadcast %cst_279 : f32 to vector<8x64xf32>
    %812 = arith.addf %811, %810 : vector<8x64xf32>
    %813 = arith.divf %811, %812 : vector<8x64xf32>
    %814 = arith.mulf %813, %779 : vector<8x64xf32>
    %815 = arith.mulf %799, %801 : vector<8x64xf32>
    %816 = arith.addf %814, %815 : vector<8x64xf32>
    %817 = math.tanh %816 : vector<8x64xf32>
    %818 = arith.mulf %807, %817 : vector<8x64xf32>
    %819 = vector.extract_strided_slice %12 {offsets = [6, 0, 0], sizes = [1, 8, 64], strides = [1, 1, 1]} : vector<8x8x64xf32> to vector<1x8x64xf32>
    %820 = vector.shape_cast %819 : vector<1x8x64xf32> to vector<8x64xf32>
    %821 = vector.extract_strided_slice %14 {offsets = [6, 0, 0], sizes = [1, 8, 64], strides = [1, 1, 1]} : vector<8x8x64xf32> to vector<1x8x64xf32>
    %822 = vector.shape_cast %821 : vector<1x8x64xf32> to vector<8x64xf32>
    %823 = arith.mulf %820, %818 : vector<8x64xf32>
    %824 = arith.mulf %820, %816 : vector<8x64xf32>
    %825 = arith.mulf %822, %779 : vector<8x64xf32>
    %826 = arith.addf %824, %825 : vector<8x64xf32>
    %827 = arith.mulf %822, %781 : vector<8x64xf32>
    %828 = arith.addf %823, %827 : vector<8x64xf32>
    %829 = vector.extract_strided_slice %823 {offsets = [0, 0], sizes = [8, 32], strides = [1, 1]} : vector<8x64xf32> to vector<8x32xf32>
    %c6_280 = arith.constant 6 : index
    %c0_281 = arith.constant 0 : index
    %c0_282 = arith.constant 0 : index
    %830 = vector.load %arg16[%c6_280, %c0_281, %c0_282] : memref<8x8x64xf32, #tpu.memory_space<vmem>>, vector<1x8x32xf32>
    %831 = vector.shape_cast %830 : vector<1x8x32xf32> to vector<8x32xf32>
    %832 = vector.shape_cast %829 : vector<8x32xf32> to vector<1x8x32xf32>
    tpu.vector_store %arg16[%c6_280, %c0_281, %c0_282], %832 {strides = array<i32>} : memref<8x8x64xf32, #tpu.memory_space<vmem>>, vector<1x8x32xf32>,
    %833 = vector.extract_strided_slice %823 {offsets = [0, 32], sizes = [8, 32], strides = [1, 1]} : vector<8x64xf32> to vector<8x32xf32>
    %c1_283 = arith.constant 1 : index
    %c0_284 = arith.constant 0 : index
    %c32_285 = arith.constant 32 : index
    %834 = vector.load %arg16[%c1_283, %c0_284, %c32_285] : memref<8x8x64xf32, #tpu.memory_space<vmem>>, vector<1x8x32xf32>
    %835 = vector.shape_cast %834 : vector<1x8x32xf32> to vector<8x32xf32>
    %836 = vector.shape_cast %833 : vector<8x32xf32> to vector<1x8x32xf32>
    tpu.vector_store %arg16[%c1_283, %c0_284, %c32_285], %836 {strides = array<i32>} : memref<8x8x64xf32, #tpu.memory_space<vmem>>, vector<1x8x32xf32>,
    %c7_286 = arith.constant 7 : index
    %c0_287 = arith.constant 0 : index
    %c0_288 = arith.constant 0 : index
    %837 = vector.load %arg15[%c7_286, %c0_287, %c0_288] : memref<8x8x256xf32, #tpu.memory_space<vmem>>, vector<1x8x256xf32>
    %838 = vector.shape_cast %837 : vector<1x8x256xf32> to vector<8x256xf32>
    %cst_289 = arith.constant dense<0.000000e+00> : vector<8x256xf32>
    %839 = tpu.matmul %828, %523, %cst_289 {dimension_numbers = #tpu.dot_dimension_numbers<[1], [0], [0], [1], [0, 0, 1, 1], [], []>} : vector<8x64xf32>, vector<64x256xf32>, vector<8x256xf32> -> vector<8x256xf32>
    %840 = arith.addf %838, %839 : vector<8x256xf32>
    %841 = vector.extract_strided_slice %840 {offsets = [0, 0], sizes = [8, 64], strides = [1, 1]} : vector<8x256xf32> to vector<8x64xf32>
    %842 = arith.negf %841 : vector<8x64xf32>
    %843 = math.exp %842 : vector<8x64xf32>
    %cst_290 = arith.constant 1.000000e+00 : f32
    %844 = vector.broadcast %cst_290 : f32 to vector<8x64xf32>
    %845 = arith.addf %844, %843 : vector<8x64xf32>
    %846 = arith.divf %844, %845 : vector<8x64xf32>
    %847 = vector.extract_strided_slice %840 {offsets = [0, 128], sizes = [8, 64], strides = [1, 1]} : vector<8x256xf32> to vector<8x64xf32>
    %848 = math.tanh %847 : vector<8x64xf32>
    %849 = vector.extract_strided_slice %840 {offsets = [0, 192], sizes = [8, 64], strides = [1, 1]} : vector<8x256xf32> to vector<8x64xf32>
    %850 = arith.negf %849 : vector<8x64xf32>
    %851 = math.exp %850 : vector<8x64xf32>
    %cst_291 = arith.constant 1.000000e+00 : f32
    %852 = vector.broadcast %cst_291 : f32 to vector<8x64xf32>
    %853 = arith.addf %852, %851 : vector<8x64xf32>
    %854 = arith.divf %852, %853 : vector<8x64xf32>
    %855 = vector.extract_strided_slice %840 {offsets = [0, 64], sizes = [8, 64], strides = [1, 1]} : vector<8x256xf32> to vector<8x64xf32>
    %856 = arith.negf %855 : vector<8x64xf32>
    %857 = math.exp %856 : vector<8x64xf32>
    %cst_292 = arith.constant 1.000000e+00 : f32
    %858 = vector.broadcast %cst_292 : f32 to vector<8x64xf32>
    %859 = arith.addf %858, %857 : vector<8x64xf32>
    %860 = arith.divf %858, %859 : vector<8x64xf32>
    %861 = arith.mulf %860, %826 : vector<8x64xf32>
    %862 = arith.mulf %846, %848 : vector<8x64xf32>
    %863 = arith.addf %861, %862 : vector<8x64xf32>
    %864 = math.tanh %863 : vector<8x64xf32>
    %865 = arith.mulf %854, %864 : vector<8x64xf32>
    %866 = vector.extract_strided_slice %12 {offsets = [7, 0, 0], sizes = [1, 8, 64], strides = [1, 1, 1]} : vector<8x8x64xf32> to vector<1x8x64xf32>
    %867 = vector.shape_cast %866 : vector<1x8x64xf32> to vector<8x64xf32>
    %868 = arith.mulf %867, %865 : vector<8x64xf32>
    %869 = vector.extract_strided_slice %868 {offsets = [0, 0], sizes = [8, 32], strides = [1, 1]} : vector<8x64xf32> to vector<8x32xf32>
    %c7_293 = arith.constant 7 : index
    %c0_294 = arith.constant 0 : index
    %c0_295 = arith.constant 0 : index
    %870 = vector.load %arg16[%c7_293, %c0_294, %c0_295] : memref<8x8x64xf32, #tpu.memory_space<vmem>>, vector<1x8x32xf32>
    %871 = vector.shape_cast %870 : vector<1x8x32xf32> to vector<8x32xf32>
    %872 = vector.shape_cast %869 : vector<8x32xf32> to vector<1x8x32xf32>
    tpu.vector_store %arg16[%c7_293, %c0_294, %c0_295], %872 {strides = array<i32>} : memref<8x8x64xf32, #tpu.memory_space<vmem>>, vector<1x8x32xf32>,
    %873 = vector.extract_strided_slice %868 {offsets = [0, 32], sizes = [8, 32], strides = [1, 1]} : vector<8x64xf32> to vector<8x32xf32>
    %c0_296 = arith.constant 0 : index
    %c0_297 = arith.constant 0 : index
    %c32_298 = arith.constant 32 : index
    %874 = vector.load %arg16[%c0_296, %c0_297, %c32_298] : memref<8x8x64xf32, #tpu.memory_space<vmem>>, vector<1x8x32xf32>
    %875 = vector.shape_cast %874 : vector<1x8x32xf32> to vector<8x32xf32>
    %876 = vector.shape_cast %873 : vector<8x32xf32> to vector<1x8x32xf32>
    tpu.vector_store %arg16[%c0_296, %c0_297, %c32_298], %876 {strides = array<i32>} : memref<8x8x64xf32, #tpu.memory_space<vmem>>, vector<1x8x32xf32>,
    %c0_299 = arith.constant 0 : index
    %c0_300 = arith.constant 0 : index
    %c0_301 = arith.constant 0 : index
    %877 = vector.load %arg16[%c0_299, %c0_300, %c0_301] : memref<8x8x64xf32, #tpu.memory_space<vmem>>, vector<8x8x64xf32>
    %878 = math.tanh %877 : vector<8x8x64xf32>
    %c0_302 = arith.constant 0 : index
    %c0_303 = arith.constant 0 : index
    %879 = vector.load %arg9[%c0_302, %c0_303] : memref<1x64xf32, #tpu.memory_space<vmem>>, vector<1x64xf32>
    %880 = vector.shape_cast %879 : vector<1x64xf32> to vector<1x1x64xf32>
    %881 = vector.broadcast %880 : vector<1x1x64xf32> to vector<8x8x64xf32>
    %882 = arith.mulf %878, %881 : vector<8x8x64xf32>
    %cst_304 = arith.constant dense<0.000000e+00> : vector<8x8xf32>
    %883 = vector.multi_reduction <add>, %882, %cst_304 [2] : vector<8x8x64xf32> to vector<8x8xf32>
    %884 = vector.shape_cast %883 : vector<8x8xf32> to vector<8x8x1xf32>
    %c0_305 = arith.constant 0 : index
    %c0_306 = arith.constant 0 : index
    %885 = vector.load %arg10[%c0_305, %c0_306] : memref<1x1xf32, #tpu.memory_space<vmem>>, vector<1x1xf32>
    %886 = vector.shape_cast %885 : vector<1x1xf32> to vector<1x1x1xf32>
    %887 = vector.broadcast %886 : vector<1x1x1xf32> to vector<8x8x1xf32>
    %888 = arith.addf %884, %887 : vector<8x8x1xf32>
    %cst_307 = arith.constant dense<0xFF800000> : vector<8x1xf32>
    %889 = vector.multi_reduction <maximumf>, %888, %cst_307 [0] : vector<8x8x1xf32> to vector<8x1xf32>
    %890 = vector.shape_cast %889 : vector<8x1xf32> to vector<1x8x1xf32>
    %891 = vector.broadcast %890 : vector<1x8x1xf32> to vector<8x8x1xf32>
    %892 = arith.subf %888, %891 : vector<8x8x1xf32>
    %893 = math.exp %892 : vector<8x8x1xf32>
    %cst_308 = arith.constant dense<0.000000e+00> : vector<8x1xf32>
    %894 = vector.multi_reduction <add>, %893, %cst_308 [0] : vector<8x8x1xf32> to vector<8x1xf32>
    %895 = vector.shape_cast %894 : vector<8x1xf32> to vector<1x8x1xf32>
    %896 = vector.broadcast %895 : vector<1x8x1xf32> to vector<8x8x1xf32>
    %897 = arith.divf %893, %896 : vector<8x8x1xf32>
    %898 = vector.broadcast %897 : vector<8x8x1xf32> to vector<8x8x64xf32>
    %899 = arith.mulf %898, %878 : vector<8x8x64xf32>
    %cst_309 = arith.constant dense<0.000000e+00> : vector<8x64xf32>
    %900 = vector.multi_reduction <add>, %899, %cst_309 [0] : vector<8x8x64xf32> to vector<8x64xf32>
    %c0_310 = arith.constant 0 : index
    %c0_311 = arith.constant 0 : index
    %901 = vector.load %arg11[%c0_310, %c0_311] : memref<64x3xf32, #tpu.memory_space<vmem>>, vector<64x3xf32>
    %cst_312 = arith.constant dense<0.000000e+00> : vector<8x3xf32>
    %902 = tpu.matmul %900, %901, %cst_312 {dimension_numbers = #tpu.dot_dimension_numbers<[1], [0], [0], [1], [0, 0, 1, 1], [], []>} : vector<8x64xf32>, vector<64x3xf32>, vector<8x3xf32> -> vector<8x3xf32>
    %c0_313 = arith.constant 0 : index
    %c0_314 = arith.constant 0 : index
    %903 = vector.load %arg12[%c0_313, %c0_314] : memref<1x3xf32, #tpu.memory_space<vmem>>, vector<1x3xf32>
    %904 = vector.broadcast %903 : vector<1x3xf32> to vector<8x3xf32>
    %905 = arith.addf %902, %904 : vector<8x3xf32>
    %c0_315 = arith.constant 0 : index
    %c0_316 = arith.constant 0 : index
    %906 = vector.load %arg13[%c0_315, %c0_316] : memref<8x3xf32, #tpu.memory_space<vmem>>, vector<8x3xf32>
    tpu.vector_store %arg13[%c0_315, %c0_316], %905 {strides = array<i32>} : memref<8x3xf32, #tpu.memory_space<vmem>>, vector<8x3xf32>,
    %907 = tpu.iota {dimensions = array<i32: 0>} : vector<8x8x8xi32>
    %908 = tpu.iota {dimensions = array<i32: 2>} : vector<8x8x8xi32>
    %909 = arith.cmpi eq, %907, %908 : vector<8x8x8xi32>
    %cst_317 = arith.constant 0.000000e+00 : f32
    %910 = vector.shape_cast %897 : vector<8x8x1xf32> to vector<8x8x1xf32>
    %911 = vector.broadcast %910 : vector<8x8x1xf32> to vector<8x8x8xf32>
    %912 = vector.broadcast %cst_317 : f32 to vector<8x8x8xf32>
    %913 = arith.select %909, %911, %912 : vector<8x8x8xi1>, vector<8x8x8xf32>
    %cst_318 = arith.constant dense<0.000000e+00> : vector<8x8xf32>
    %914 = vector.multi_reduction <add>, %913, %cst_318 [0] : vector<8x8x8xf32> to vector<8x8xf32>
    %c0_319 = arith.constant 0 : index
    %c0_320 = arith.constant 0 : index
    %915 = vector.load %arg14[%c0_319, %c0_320] : memref<8x8xf32, #tpu.memory_space<vmem>>, vector<8x8xf32>
    tpu.vector_store %arg14[%c0_319, %c0_320], %914 {strides = array<i32>} : memref<8x8xf32, #tpu.memory_space<vmem>>, vector<8x8xf32>,
    return
  }
}

</mosaic_0001>

<llo_original>
// kernel: rnn_forward.1
$region0: #{rnn_forward.1}
  #allocation0 [shape = 'u32[]', space=smem, size = 0x4, offset = 0x4, fixed_abs, tag = 'smem constant byte address 0x4 - core index']
  #allocation1 [shape = 'u32[144,128]{1,0:T(1,128)}', space=vmem, size = 0x12000, scoped, tag = 'internal scratch']
  #allocation2 [shape = 'f32[8,8,256]{2,1,0:T(8,128)}', space=vmem, size = 0x10000, scoped, tag = 'scratch operand']
  #allocation3 [shape = 'f32[8,8,64]{2,1,0:T(8,128)}', space=vmem, size = 0x8000, scoped, tag = 'scratch operand']
  #allocation4 [shape = 'f32[1,1]{1,0:T(1,128)S(1)}', space=vmem, size = 0x200, scoped, tag = 'scoped memory for rnn_forward.1']
  %s0 = inlined_call_operand.vmem [shape: f32[56,16], index: 0, kind: input, shape index: {}]
  %s1 = inlined_call_operand.vmem [shape: s32[64,1], index: 1, kind: input, shape index: {}]
  %s2 = inlined_call_operand.vmem [shape: s32[8,1], index: 2, kind: input, shape index: {}]
  %s3 = inlined_call_operand.vmem [shape: f32[16,256], index: 3, kind: input, shape index: {}]
  %s4 = inlined_call_operand.vmem [shape: f32[64,256], index: 4, kind: input, shape index: {}]
  %s5 = inlined_call_operand.vmem [shape: f32[1,256], index: 5, kind: input, shape index: {}]
  %s6 = inlined_call_operand.vmem [shape: f32[64,256], index: 6, kind: input, shape index: {}]
  %s7 = inlined_call_operand.vmem [shape: f32[64,256], index: 7, kind: input, shape index: {}]
  %s8 = inlined_call_operand.vmem [shape: f32[1,256], index: 8, kind: input, shape index: {}]
  %s9 = inlined_call_operand.vmem [shape: f32[1,64], index: 9, kind: input, shape index: {}]
  %s10 = inlined_call_operand.<no memory space> [shape: f32[1,1], index: 10, kind: input, shape index: {}]
  %s11 = inlined_call_operand.vmem [shape: f32[64,3], index: 11, kind: input, shape index: {}]
  %s12 = inlined_call_operand.vmem [shape: f32[1,3], index: 12, kind: input, shape index: {}]
  %s13 = inlined_call_operand.vmem [shape: f32[8,3], index: 13, kind: output, shape index: {0}]
  %s14 = inlined_call_operand.vmem [shape: f32[8,8], index: 14, kind: output, shape index: {1}]
  %15 = xla_tuple %s13, %s14
  %s16 = sld [smem:[#allocation0]]
  $region70: #{rnn_forward.1} parent=0
    _
  %s18 = ssub.s32 1, %s16
  %s19 = scalar_select 0, %s18, %s16
  %v20 = vstv %s10
  %21 = vst [vmem:[#allocation4] sm:$0x1] %v20
  // Predicated region
  $region2: #{rnn_forward.1} parent=0 // pred_check
    _
  $region3: #{rnn_forward.1} parent=0 // pred_check_branch
    %23 = sbr.rel (0) target = $region5
  $region4: #{rnn_forward.1} parent=0 // pred_region
    _
  $region5: #{rnn_forward.1} parent=0 // pred_fallthru
    _
  // Predicated region
  $region6: #{rnn_forward.1} parent=0 // pred_check
    _
  $region7: #{rnn_forward.1} parent=0 // pred_check_branch
    %25 = sbr.rel (0) target = $region9
  $region8: #{rnn_forward.1} parent=0 // pred_region
    _
  $region9: #{rnn_forward.1} parent=0 // pred_fallthru
    _
  // Predicated region
  $region10: #{rnn_forward.1} parent=0 // pred_check
    _
  $region11: #{rnn_forward.1} parent=0 // pred_check_branch
    %27 = sbr.rel (0) target = $region13
  $region12: #{rnn_forward.1} parent=0 // pred_region
    _
  $region13: #{rnn_forward.1} parent=0 // pred_fallthru
    _
  // Predicated region
  $region14: #{rnn_forward.1} parent=0 // pred_check
    _
  $region15: #{rnn_forward.1} parent=0 // pred_check_branch
    %29 = sbr.rel (0) target = $region17
  $region16: #{rnn_forward.1} parent=0 // pred_region
    _
  $region17: #{rnn_forward.1} parent=0 // pred_fallthru
    _
  // Predicated region
  $region18: #{rnn_forward.1} parent=0 // pred_check
    _
  $region19: #{rnn_forward.1} parent=0 // pred_check_branch
    %31 = sbr.rel (0) target = $region21
  $region20: #{rnn_forward.1} parent=0 // pred_region
    _
  $region21: #{rnn_forward.1} parent=0 // pred_fallthru
    _
  // Predicated region
  $region22: #{rnn_forward.1} parent=0 // pred_check
    _
  $region23: #{rnn_forward.1} parent=0 // pred_check_branch
    %33 = sbr.rel (0) target = $region25
  $region24: #{rnn_forward.1} parent=0 // pred_region
    _
  $region25: #{rnn_forward.1} parent=0 // pred_fallthru
    _
  // Predicated region
  $region26: #{rnn_forward.1} parent=0 // pred_check
    _
  $region27: #{rnn_forward.1} parent=0 // pred_check_branch
    %35 = sbr.rel (0) target = $region29
  $region28: #{rnn_forward.1} parent=0 // pred_region
    _
  $region29: #{rnn_forward.1} parent=0 // pred_fallthru
    _
  // Predicated region
  $region30: #{rnn_forward.1} parent=0 // pred_check
    _
  $region31: #{rnn_forward.1} parent=0 // pred_check_branch
    %37 = sbr.rel (0) target = $region33
  $region32: #{rnn_forward.1} parent=0 // pred_region
    _
  $region33: #{rnn_forward.1} parent=0 // pred_fallthru
    _
  // Predicated region
  $region34: #{rnn_forward.1} parent=0 // pred_check
    _
  $region35: #{rnn_forward.1} parent=0 // pred_check_branch
    %39 = sbr.rel (0) target = $region37
  $region36: #{rnn_forward.1} parent=0 // pred_region
    _
  $region37: #{rnn_forward.1} parent=0 // pred_fallthru
    _
  // Predicated region
  $region38: #{rnn_forward.1} parent=0 // pred_check
    _
  $region39: #{rnn_forward.1} parent=0 // pred_check_branch
    %41 = sbr.rel (0) target = $region41
  $region40: #{rnn_forward.1} parent=0 // pred_region
    _
  $region41: #{rnn_forward.1} parent=0 // pred_fallthru
    _
  // Predicated region
  $region42: #{rnn_forward.1} parent=0 // pred_check
    _
  $region43: #{rnn_forward.1} parent=0 // pred_check_branch
    %43 = sbr.rel (0) target = $region45
  $region44: #{rnn_forward.1} parent=0 // pred_region
    _
  $region45: #{rnn_forward.1} parent=0 // pred_fallthru
    _
  // Predicated region
  $region46: #{rnn_forward.1} parent=0 // pred_check
    _
  $region47: #{rnn_forward.1} parent=0 // pred_check_branch
    %45 = sbr.rel (0) target = $region49
  $region48: #{rnn_forward.1} parent=0 // pred_region
    _
  $region49: #{rnn_forward.1} parent=0 // pred_fallthru
    _
  // Predicated region
  $region50: #{rnn_forward.1} parent=0 // pred_check
    _
  $region51: #{rnn_forward.1} parent=0 // pred_check_branch
    %47 = sbr.rel (0) target = $region53
  $region52: #{rnn_forward.1} parent=0 // pred_region
    _
  $region53: #{rnn_forward.1} parent=0 // pred_fallthru
    _
  %v48 = vld [vmem:[%s2] sm:$0xff]
  %v49 = vlaneseq
  %v50 = vand.u32 %v49, 127
  %vm51 = vcmp.lt.s32.totalorder %v50, 32
  %v52 = vsel %vm51, 0, 7
  %v53 = vsel %vm51, 1, 6
  %v54 = vsel %vm51, 2, 5
  %v55 = vsel %vm51, 3, 4
  %v56 = vsel %vm51, 4, 3
  %v57 = vsel %vm51, 5, 2
  %v58 = vsel %vm51, 6, 1
  %v59 = vsel %vm51, 7, 0
  %60 = vset.pattern.permute.xlu0 0
  %61 = vperm.xlu0 %60, %v48
  %v62 = vpop.permute.xlu0 %61
  %vm63 = vcmp.lt.s32.totalorder %v52, %v62
  %vm64 = vcmp.lt.s32.totalorder %v53, %v62
  %vm65 = vcmp.lt.s32.totalorder %v54, %v62
  %vm66 = vcmp.lt.s32.totalorder %v55, %v62
  %vm67 = vcmp.lt.s32.totalorder %v56, %v62
  %vm68 = vcmp.lt.s32.totalorder %v57, %v62
  %vm69 = vcmp.lt.s32.totalorder %v58, %v62
  %vm70 = vcmp.lt.s32.totalorder %v59, %v62
  %v71 = vsel %vm63, 1, 0
  %v72 = vsel %vm64, 1, 0
  %v73 = vsel %vm65, 1, 0
  %v74 = vsel %vm66, 1, 0
  %v75 = vsel %vm67, 1, 0
  %v76 = vsel %vm68, 1, 0
  %v77 = vsel %vm69, 1, 0
  %v78 = vsel %vm70, 1, 0
  %v79 = vcvt.s32.f32 %v71
  %v80 = vcvt.s32.f32 %v72
  %v81 = vcvt.s32.f32 %v73
  %v82 = vcvt.s32.f32 %v74
  %v83 = vcvt.s32.f32 %v75
  %v84 = vcvt.s32.f32 %v76
  %v85 = vcvt.s32.f32 %v77
  %v86 = vcvt.s32.f32 %v78
  %v87 = vsub.f32 1.0, %v80
  %v88 = vsub.f32 1.0, %v81
  %v89 = vsub.f32 1.0, %v82
  %v90 = vsub.f32 1.0, %v83
  %v91 = vsub.f32 1.0, %v84
  %v92 = vsub.f32 1.0, %v85
  %v93 = vadd.s32 %v50, 128
  %vm94 = vcmp.lt.s32.totalorder %v50, 0
  %v95 = vsub.s32 0, %v50
  %v96 = vsel %vm94, %v95, %v50
  %v97 = vshrl.u32 %v96, 6
  %v98 = vand.u32 %v96, 63
  %v99 = vsub.s32 0, %v98
  %v100 = vsel %vm94, %v99, %v98
  %vm101 = vcmp.lt.s32.totalorder %v93, 0
  %v102 = vsub.s32 0, %v93
  %v103 = vsel %vm101, %v102, %v93
  %v104 = vshrl.u32 %v103, 6
  %v105 = vand.u32 %v103, 63
  %v106 = vsub.s32 0, %v105
  %v107 = vsel %vm101, %v106, %v105
  %vm108 = vcmp.ne.s32.totalorder %v100, 0
  %vm109 = vcmp.ne.s32.totalorder %v107, 0
  %vm110 = vcmp.lt.s32.totalorder %v100, 0
  %vm111 = vcmp.lt.s32.totalorder %v107, 0
  %vm112 = vmand %vm110, %vm108
  %vm113 = vmand %vm111, %vm109
  %v114 = vadd.s32 %v100, 64
  %v115 = vadd.s32 %v107, 64
  %v116 = vsel %vm112, %v114, %v100
  %v117 = vsel %vm113, %v115, %v107
  %vm118 = vcmp.lt.s32.totalorder %v116, 32
  %vm119 = vcmp.lt.s32.totalorder %v117, 32
  %v120 = vld [vmem:[%s1] sm:$0xff]
  %v121 = vld [vmem:[%s1 + $0x8] sm:$0xff]
  %v122 = vld [vmem:[%s1 + $0x10] sm:$0xff]
  %v123 = vld [vmem:[%s1 + $0x18] sm:$0xff]
  %v124 = vld [vmem:[%s1 + $0x20] sm:$0xff]
  %v125 = vld [vmem:[%s1 + $0x28] sm:$0xff]
  %v126 = vld [vmem:[%s1 + $0x30] sm:$0xff]
  %v127 = vld [vmem:[%s1 + $0x38] sm:$0xff]
  %128 = vset.pattern.permute.xlu0 0
  %129 = vperm.xlu0 %128, %v120
  %v130 = vpop.permute.xlu0 %129
  %131 = vset.pattern.permute.xlu0 0
  %132 = vperm.xlu0 %131, %v121
  %v133 = vpop.permute.xlu0 %132
  %134 = vset.pattern.permute.xlu0 0
  %135 = vperm.xlu0 %134, %v122
  %v136 = vpop.permute.xlu0 %135
  %137 = vset.pattern.permute.xlu0 0
  %138 = vperm.xlu0 %137, %v123
  %v139 = vpop.permute.xlu0 %138
  %140 = vset.pattern.permute.xlu0 0
  %141 = vperm.xlu0 %140, %v124
  %v142 = vpop.permute.xlu0 %141
  %143 = vset.pattern.permute.xlu0 0
  %144 = vperm.xlu0 %143, %v125
  %v145 = vpop.permute.xlu0 %144
  %146 = vset.pattern.permute.xlu0 0
  %147 = vperm.xlu0 %146, %v126
  %v148 = vpop.permute.xlu0 %147
  %149 = vset.pattern.permute.xlu0 0
  %150 = vperm.xlu0 %149, %v127
  %v151 = vpop.permute.xlu0 %150
  %vm152 = vcmp.eq.s32.totalorder %v50, %v130
  %vm153 = vcmp.eq.s32.totalorder %v50, %v133
  %vm154 = vcmp.eq.s32.totalorder %v50, %v136
  %vm155 = vcmp.eq.s32.totalorder %v50, %v139
  %vm156 = vcmp.eq.s32.totalorder %v50, %v142
  %vm157 = vcmp.eq.s32.totalorder %v50, %v145
  %vm158 = vcmp.eq.s32.totalorder %v50, %v148
  %vm159 = vcmp.eq.s32.totalorder %v50, %v151
  %v160 = vsel %vm152, 1, 0
  %v161 = vsel %vm153, 1, 0
  %v162 = vsel %vm154, 1, 0
  %v163 = vsel %vm155, 1, 0
  %v164 = vsel %vm156, 1, 0
  %v165 = vsel %vm157, 1, 0
  %v166 = vsel %vm158, 1, 0
  %v167 = vsel %vm159, 1, 0
  %v168 = vcvt.s32.f32 %v160
  %v169 = vcvt.s32.f32 %v161
  %v170 = vcvt.s32.f32 %v162
  %v171 = vcvt.s32.f32 %v163
  %v172 = vcvt.s32.f32 %v164
  %v173 = vcvt.s32.f32 %v165
  %v174 = vcvt.s32.f32 %v166
  %v175 = vcvt.s32.f32 %v167
  %v176 = vld [vmem:[%s0] sm:$0xff]
  %v177 = vld [vmem:[%s0 + $0x8] sm:$0xff]
  %v178 = vld [vmem:[%s0 + $0x10] sm:$0xff]
  %v179 = vld [vmem:[%s0 + $0x18] sm:$0xff]
  %v180 = vld [vmem:[%s0 + $0x20] sm:$0xff]
  %v181 = vld [vmem:[%s0 + $0x28] sm:$0xff]
  %v182 = vld [vmem:[%s0 + $0x30] sm:$0xff]
  %vm183 = vcmask 457728
  %v185 = vsel %vm183, %v168, 0
  %v188 = vsel %vm183, %v169, 0
  %v191 = vsel %vm183, %v170, 0
  %v194 = vsel %vm183, %v171, 0
  %v197 = vsel %vm183, %v172, 0
  %v200 = vsel %vm183, %v173, 0
  %v203 = vsel %vm183, %v174, 0
  %v206 = vsel %vm183, %v175, 0
  %208 = vmatprep.subr.mxu0 0.0
  %209 = vmatpush1.msra.mxu0 0.0
  %210 = vmatprep.subr.mxu0 0.0
  %211 = vmatpush1.msra.mxu0 0.0
  %212 = vmatprep.subr.mxu0 0.0
  %213 = vmatpush1.msra.mxu0 0.0
  %214 = vmatprep.subr.mxu0 0.0
  %215 = vmatpush1.msra.mxu0 0.0
  %216 = vmatprep.subr.mxu0 0.0
  %217 = vmatpush1.msra.mxu0 0.0
  %218 = vmatprep.subr.mxu0 0.0
  %219 = vmatpush1.msra.mxu0 0.0
  %220 = vmatprep.subr.mxu0 0.0
  %221 = vmatpush1.msra.mxu0 0.0
  %222 = vmatprep.subr.mxu0 0.0
  %223 = vmatpush1.msra.mxu0 0.0
  %224 = vmatprep.subr.mxu0 0.0
  %225 = vmatpush1.msra.mxu0 0.0
  %226 = vmatprep.subr.mxu0 0.0
  %227 = vmatpush1.msra.mxu0 %v182
  %228 = vmatprep.subr.mxu0 0.0
  %229 = vmatpush1.msra.mxu0 %v181
  %230 = vmatprep.subr.mxu0 0.0
  %231 = vmatpush1.msra.mxu0 %v180
  %232 = vmatprep.subr.mxu0 0.0
  %233 = vmatpush1.msra.mxu0 %v179
  %234 = vmatprep.subr.mxu0 0.0
  %235 = vmatpush1.msra.mxu0 %v178
  %236 = vmatprep.subr.mxu0 0.0
  %237 = vmatpush1.msra.mxu0 %v177
  %238 = vmatprep.subr.mxu0 0.0
  %239 = vmatpush1.msra.mxu0 %v176
  %240 = vmatprep.subr.mxu0 0.0
  %241 = vmatpush2.msra.mxu0 0.0
  %242 = vmatprep.subr.mxu0 0.0
  %243 = vmatpush2.msra.mxu0 0.0
  %244 = vmatprep.subr.mxu0 0.0
  %245 = vmatpush2.msra.mxu0 0.0
  %246 = vmatprep.subr.mxu0 0.0
  %247 = vmatpush2.msra.mxu0 0.0
  %248 = vmatprep.subr.mxu0 0.0
  %249 = vmatpush2.msra.mxu0 0.0
  %250 = vmatprep.subr.mxu0 0.0
  %251 = vmatpush2.msra.mxu0 0.0
  %252 = vmatprep.subr.mxu0 0.0
  %253 = vmatpush2.msra.mxu0 0.0
  %254 = vmatprep.subr.mxu0 0.0
  %255 = vmatpush2.msra.mxu0 0.0
  %256 = vmatprep.subr.mxu0 0.0
  %257 = vmatpush2.msra.mxu0 0.0
  %258 = vmatprep.subr.mxu0 0.0
  %259 = vmatpush2.msra.mxu0 0.0
  %260 = vmatprep.subr.mxu0 0.0
  %261 = vmatpush2.msra.mxu0 0.0
  %262 = vmatprep.subr.mxu0 0.0
  %263 = vmatpush2.msra.mxu0 0.0
  %264 = vmatprep.subr.mxu0 0.0
  %265 = vmatpush2.msra.mxu0 0.0
  %266 = vmatprep.subr.mxu0 0.0
  %267 = vmatpush2.msra.mxu0 0.0
  %268 = vmatprep.subr.mxu0 0.0
  %269 = vmatpush2.msra.mxu0 0.0
  %270 = vmatprep.subr.mxu0 0.0
  %271 = vmatpush2.msra.mxu0 0.0
  %272 = vmatprep.mubr.f32.mxu0 0.0
  %273 = vmatmul.mubr.f32.gmra.mxu0 %v185
  %v274 = vpop.f32.mrf.mxu0
  %v275 = vadd.f32 0.0, %v274
  %v276 = vpop.f32.mrf.mxu0
  %277 = vmatprep.mubr.f32.mxu0 0.0
  %278 = vmatmul.mubr.f32.gmra.mxu0 %v188
  %v279 = vpop.f32.mrf.mxu0
  %v280 = vadd.f32 0.0, %v279
  %v281 = vpop.f32.mrf.mxu0
  %282 = vmatprep.mubr.f32.mxu0 0.0
  %283 = vmatmul.mubr.f32.gmra.mxu0 %v191
  %v284 = vpop.f32.mrf.mxu0
  %v285 = vadd.f32 0.0, %v284
  %v286 = vpop.f32.mrf.mxu0
  %287 = vmatprep.mubr.f32.mxu0 0.0
  %288 = vmatmul.mubr.f32.gmra.mxu0 %v194
  %v289 = vpop.f32.mrf.mxu0
  %v290 = vadd.f32 0.0, %v289
  %v291 = vpop.f32.mrf.mxu0
  %292 = vmatprep.mubr.f32.mxu0 0.0
  %293 = vmatmul.mubr.f32.gmra.mxu0 %v197
  %v294 = vpop.f32.mrf.mxu0
  %v295 = vadd.f32 0.0, %v294
  %v296 = vpop.f32.mrf.mxu0
  %297 = vmatprep.mubr.f32.mxu0 0.0
  %298 = vmatmul.mubr.f32.gmra.mxu0 %v200
  %v299 = vpop.f32.mrf.mxu0
  %v300 = vadd.f32 0.0, %v299
  %v301 = vpop.f32.mrf.mxu0
  %302 = vmatprep.mubr.f32.mxu0 0.0
  %303 = vmatmul.mubr.f32.gmra.mxu0 %v203
  %v304 = vpop.f32.mrf.mxu0
  %v305 = vadd.f32 0.0, %v304
  %v306 = vpop.f32.mrf.mxu0
  %307 = vmatprep.mubr.f32.mxu0 0.0
  %308 = vmatmul.mubr.f32.gmra.mxu0 %v206
  %v309 = vpop.f32.mrf.mxu0
  %v310 = vadd.f32 0.0, %v309
  %v311 = vpop.f32.mrf.mxu0
  %312 = vdwg.mxu0
  %v313 = vld [vmem:[%s3] sm:$0xff]
  %v314 = vld [vmem:[%s3 + $0x8] sm:$0xff]
  %v315 = vld [vmem:[%s3 + $0x10] sm:$0xff]
  %v316 = vld [vmem:[%s3 + $0x18] sm:$0xff]
  %v317 = vld [vmem:[%s5] sm:$0x3]
  %v319 = vlaneseq
  %v320 = vshrl.u32 %v319, 7
  %v321 = vsub.s32 0, %v320
  %v322 = vrot.slane %v317, %v321
  %v323 = vlaneseq
  %v324 = vshrl.u32 %v323, 7
  %v325 = vsub.s32 1, %v324
  %v326 = vrot.slane %v317, %v325
  %vm329 = vcmask 130048
  %v331 = vsel %vm329, %v275, 0
  %v334 = vsel %vm329, %v280, 0
  %v337 = vsel %vm329, %v285, 0
  %v340 = vsel %vm329, %v290, 0
  %v343 = vsel %vm329, %v295, 0
  %v346 = vsel %vm329, %v300, 0
  %v349 = vsel %vm329, %v305, 0
  %v352 = vsel %vm329, %v310, 0
  %354 = vmatprep.subr.mxu0 0.0
  %355 = vmatpush1.msra.mxu0 0.0
  %356 = vmatprep.subr.mxu0 0.0
  %357 = vmatpush1.msra.mxu0 0.0
  %358 = vmatprep.subr.mxu0 0.0
  %359 = vmatpush1.msra.mxu0 0.0
  %360 = vmatprep.subr.mxu0 0.0
  %361 = vmatpush1.msra.mxu0 0.0
  %362 = vmatprep.subr.mxu0 0.0
  %363 = vmatpush1.msra.mxu0 0.0
  %364 = vmatprep.subr.mxu0 0.0
  %365 = vmatpush1.msra.mxu0 0.0
  %366 = vmatprep.subr.mxu0 0.0
  %367 = vmatpush1.msra.mxu0 0.0
  %368 = vmatprep.subr.mxu0 0.0
  %369 = vmatpush1.msra.mxu0 0.0
  %370 = vmatprep.subr.mxu0 0.0
  %371 = vmatpush1.msra.mxu0 0.0
  %372 = vmatprep.subr.mxu0 0.0
  %373 = vmatpush1.msra.mxu0 0.0
  %374 = vmatprep.subr.mxu0 0.0
  %375 = vmatpush1.msra.mxu0 0.0
  %376 = vmatprep.subr.mxu0 0.0
  %377 = vmatpush1.msra.mxu0 0.0
  %378 = vmatprep.subr.mxu0 0.0
  %379 = vmatpush1.msra.mxu0 0.0
  %380 = vmatprep.subr.mxu0 0.0
  %381 = vmatpush1.msra.mxu0 0.0
  %382 = vmatprep.subr.mxu0 %v316
  %383 = vmatpush1.msra.mxu0 %v315
  %384 = vmatprep.subr.mxu0 %v314
  %385 = vmatpush1.msra.mxu0 %v313
  %386 = vmatprep.subr.mxu0 0.0
  %387 = vmatpush2.msra.mxu0 0.0
  %388 = vmatprep.subr.mxu0 0.0
  %389 = vmatpush2.msra.mxu0 0.0
  %390 = vmatprep.subr.mxu0 0.0
  %391 = vmatpush2.msra.mxu0 0.0
  %392 = vmatprep.subr.mxu0 0.0
  %393 = vmatpush2.msra.mxu0 0.0
  %394 = vmatprep.subr.mxu0 0.0
  %395 = vmatpush2.msra.mxu0 0.0
  %396 = vmatprep.subr.mxu0 0.0
  %397 = vmatpush2.msra.mxu0 0.0
  %398 = vmatprep.subr.mxu0 0.0
  %399 = vmatpush2.msra.mxu0 0.0
  %400 = vmatprep.subr.mxu0 0.0
  %401 = vmatpush2.msra.mxu0 0.0
  %402 = vmatprep.subr.mxu0 0.0
  %403 = vmatpush2.msra.mxu0 0.0
  %404 = vmatprep.subr.mxu0 0.0
  %405 = vmatpush2.msra.mxu0 0.0
  %406 = vmatprep.subr.mxu0 0.0
  %407 = vmatpush2.msra.mxu0 0.0
  %408 = vmatprep.subr.mxu0 0.0
  %409 = vmatpush2.msra.mxu0 0.0
  %410 = vmatprep.subr.mxu0 0.0
  %411 = vmatpush2.msra.mxu0 0.0
  %412 = vmatprep.subr.mxu0 0.0
  %413 = vmatpush2.msra.mxu0 0.0
  %414 = vmatprep.subr.mxu0 0.0
  %415 = vmatpush2.msra.mxu0 0.0
  %416 = vmatprep.subr.mxu0 0.0
  %417 = vmatpush2.msra.mxu0 0.0
  %418 = vmatprep.mubr.f32.mxu0 0.0
  %419 = vmatmul.mubr.f32.gmra.mxu0 %v331
  %v420 = vpop.f32.mrf.mxu0
  %v421 = vadd.f32 %v322, %v420
  %v422 = vpop.f32.mrf.mxu0
  %v423 = vadd.f32 %v326, %v422
  %424 = vmatprep.mubr.f32.mxu0 0.0
  %425 = vmatmul.mubr.f32.gmra.mxu0 %v334
  %v426 = vpop.f32.mrf.mxu0
  %v427 = vadd.f32 %v322, %v426
  %v428 = vpop.f32.mrf.mxu0
  %v429 = vadd.f32 %v326, %v428
  %430 = vmatprep.mubr.f32.mxu0 0.0
  %431 = vmatmul.mubr.f32.gmra.mxu0 %v337
  %v432 = vpop.f32.mrf.mxu0
  %v433 = vadd.f32 %v322, %v432
  %v434 = vpop.f32.mrf.mxu0
  %v435 = vadd.f32 %v326, %v434
  %436 = vmatprep.mubr.f32.mxu0 0.0
  %437 = vmatmul.mubr.f32.gmra.mxu0 %v340
  %v438 = vpop.f32.mrf.mxu0
  %v439 = vadd.f32 %v322, %v438
  %v440 = vpop.f32.mrf.mxu0
  %v441 = vadd.f32 %v326, %v440
  %442 = vmatprep.mubr.f32.mxu0 0.0
  %443 = vmatmul.mubr.f32.gmra.mxu0 %v343
  %v444 = vpop.f32.mrf.mxu0
  %v445 = vadd.f32 %v322, %v444
  %v446 = vpop.f32.mrf.mxu0
  %v447 = vadd.f32 %v326, %v446
  %448 = vmatprep.mubr.f32.mxu0 0.0
  %449 = vmatmul.mubr.f32.gmra.mxu0 %v346
  %v450 = vpop.f32.mrf.mxu0
  %v451 = vadd.f32 %v322, %v450
  %v452 = vpop.f32.mrf.mxu0
  %v453 = vadd.f32 %v326, %v452
  %454 = vmatprep.mubr.f32.mxu0 0.0
  %455 = vmatmul.mubr.f32.gmra.mxu0 %v349
  %v456 = vpop.f32.mrf.mxu0
  %v457 = vadd.f32 %v322, %v456
  %v458 = vpop.f32.mrf.mxu0
  %v459 = vadd.f32 %v326, %v458
  %460 = vmatprep.mubr.f32.mxu0 0.0
  %461 = vmatmul.mubr.f32.gmra.mxu0 %v352
  %v462 = vpop.f32.mrf.mxu0
  %v463 = vadd.f32 %v322, %v462
  %v464 = vpop.f32.mrf.mxu0
  %v465 = vadd.f32 %v326, %v464
  %466 = vdwg.mxu0
  %v467 = vsel %vm118, %v421, %v463
  %v468 = vsel %vm119, %v423, %v465
  %469 = vst [vmem:[#allocation2] sm:$0xff] %v467
  %470 = vst [vmem:[#allocation2 + $0x8] sm:$0xff] %v468
  %v471 = vsel %vm118, %v427, %v457
  %v472 = vsel %vm119, %v429, %v459
  %s473 = scalar_lea.vmem [#allocation2], 16
  %474 = vst [vmem:[%s473] sm:$0xff] %v471
  %475 = vst [vmem:[%s473 + $0x8] sm:$0xff] %v472
  %v476 = vsel %vm118, %v433, %v451
  %v477 = vsel %vm119, %v435, %v453
  %s478 = scalar_lea.vmem [#allocation2], 32
  %479 = vst [vmem:[%s478] sm:$0xff] %v476
  %480 = vst [vmem:[%s478 + $0x8] sm:$0xff] %v477
  %v481 = vsel %vm118, %v439, %v445
  %v482 = vsel %vm119, %v441, %v447
  %s483 = scalar_lea.vmem [#allocation2], 48
  %484 = vst [vmem:[%s483] sm:$0xff] %v481
  %485 = vst [vmem:[%s483 + $0x8] sm:$0xff] %v482
  %v486 = vsel %vm118, %v445, %v439
  %v487 = vsel %vm119, %v447, %v441
  %s488 = scalar_lea.vmem [#allocation2], 64
  %489 = vst [vmem:[%s488] sm:$0xff] %v486
  %490 = vst [vmem:[%s488 + $0x8] sm:$0xff] %v487
  %v491 = vsel %vm118, %v451, %v433
  %v492 = vsel %vm119, %v453, %v435
  %s493 = scalar_lea.vmem [#allocation2], 80
  %494 = vst [vmem:[%s493] sm:$0xff] %v491
  %495 = vst [vmem:[%s493 + $0x8] sm:$0xff] %v492
  %v496 = vsel %vm118, %v457, %v427
  %v497 = vsel %vm119, %v459, %v429
  %s498 = scalar_lea.vmem [#allocation2], 96
  %499 = vst [vmem:[%s498] sm:$0xff] %v496
  %500 = vst [vmem:[%s498 + $0x8] sm:$0xff] %v497
  %v501 = vsel %vm118, %v463, %v421
  %v502 = vsel %vm119, %v465, %v423
  %s503 = scalar_lea.vmem [#allocation2], 112
  %504 = vst [vmem:[%s503] sm:$0xff] %v501
  %505 = vst [vmem:[%s503 + $0x8] sm:$0xff] %v502
  %v506 = vld [vmem:[%s4] sm:$0xff]
  %v507 = vld [vmem:[%s4 + $0x8] sm:$0xff]
  %v508 = vld [vmem:[%s4 + $0x10] sm:$0xff]
  %v509 = vld [vmem:[%s4 + $0x18] sm:$0xff]
  %v510 = vld [vmem:[%s4 + $0x20] sm:$0xff]
  %v511 = vld [vmem:[%s4 + $0x28] sm:$0xff]
  %v512 = vld [vmem:[%s4 + $0x30] sm:$0xff]
  %v513 = vld [vmem:[%s4 + $0x38] sm:$0xff]
  %v514 = vld [vmem:[%s4 + $0x40] sm:$0xff]
  %v515 = vld [vmem:[%s4 + $0x48] sm:$0xff]
  %v516 = vld [vmem:[%s4 + $0x50] sm:$0xff]
  %v517 = vld [vmem:[%s4 + $0x58] sm:$0xff]
  %v518 = vld [vmem:[%s4 + $0x60] sm:$0xff]
  %v519 = vld [vmem:[%s4 + $0x68] sm:$0xff]
  %v520 = vld [vmem:[%s4 + $0x70] sm:$0xff]
  %v521 = vld [vmem:[%s4 + $0x78] sm:$0xff]
  %v522 = vld [vmem:[#allocation2] sm:$0xff]
  %v523 = vld [vmem:[#allocation2 + $0x8] sm:$0xff]
  %v524 = vxor.u32 %v522, 2147483648
  %v525 = vmul.f32 %v524, 1.442695
  %v526 = vpow.pop %v525
  %v527 = vadd.f32 %v526, 1.0
  %v528 = vrcp.pop %v527
  %v529 = vmul.f32 1.0, %v528
  %v530 = vtanh.pop %v523
  %v531 = vxor.u32 %v523, 2147483648
  %v532 = vmul.f32 %v531, 1.442695
  %v533 = vpow.pop %v532
  %v534 = vadd.f32 %v533, 1.0
  %v535 = vrcp.pop %v534
  %v536 = vmul.f32 1.0, %v535
  %v537 = vmul.f32 %v529, %v530
  %v538 = vtanh.pop %v537
  %540 = vrot.lane.b32.xlu0 %v538, 64
  %v541 = vpop.permute.xlu0 %540
  %v543 = vmul.f32 %v536, %v541
  %545 = vrot.lane.b32.xlu0 %v543, 64
  %v546 = vpop.permute.xlu0 %545
  %v548 = vmul.f32 %v79, %v546
  %v549 = vmul.f32 %v79, %v537
  %vm550 = vcmask 261120
  %551 = vst.msk [vmem:[#allocation3] sm:$0xff] %vm550, %v548
  %s552 = scalar_lea.vmem [#allocation3], 56
  %vm553 = vcmask 523520
  %554 = vst.msk [vmem:[%s552] sm:$0xff] %vm553, %v548
  %v555 = vld [vmem:[%s473] sm:$0xff]
  %v556 = vld [vmem:[%s473 + $0x8] sm:$0xff]
  %vm557 = vcmask 523264
  %v559 = vsel %vm557, %v548, 0
  %561 = vmatprep.subr.mxu0 0.0
  %562 = vmatpush1.msra.mxu0 0.0
  %563 = vmatprep.subr.mxu0 0.0
  %564 = vmatpush1.msra.mxu0 0.0
  %565 = vmatprep.subr.mxu0 0.0
  %566 = vmatpush1.msra.mxu0 0.0
  %567 = vmatprep.subr.mxu0 0.0
  %568 = vmatpush1.msra.mxu0 0.0
  %569 = vmatprep.subr.mxu0 0.0
  %570 = vmatpush1.msra.mxu0 0.0
  %571 = vmatprep.subr.mxu0 0.0
  %572 = vmatpush1.msra.mxu0 0.0
  %573 = vmatprep.subr.mxu0 0.0
  %574 = vmatpush1.msra.mxu0 0.0
  %575 = vmatprep.subr.mxu0 0.0
  %576 = vmatpush1.msra.mxu0 0.0
  %577 = vmatprep.subr.mxu0 %v521
  %578 = vmatpush1.msra.mxu0 %v520
  %579 = vmatprep.subr.mxu0 %v519
  %580 = vmatpush1.msra.mxu0 %v518
  %581 = vmatprep.subr.mxu0 %v517
  %582 = vmatpush1.msra.mxu0 %v516
  %583 = vmatprep.subr.mxu0 %v515
  %584 = vmatpush1.msra.mxu0 %v514
  %585 = vmatprep.subr.mxu0 %v513
  %586 = vmatpush1.msra.mxu0 %v512
  %587 = vmatprep.subr.mxu0 %v511
  %588 = vmatpush1.msra.mxu0 %v510
  %589 = vmatprep.subr.mxu0 %v509
  %590 = vmatpush1.msra.mxu0 %v508
  %591 = vmatprep.subr.mxu0 %v507
  %592 = vmatpush1.msra.mxu0 %v506
  %593 = vmatprep.subr.mxu0 0.0
  %594 = vmatpush2.msra.mxu0 0.0
  %595 = vmatprep.subr.mxu0 0.0
  %596 = vmatpush2.msra.mxu0 0.0
  %597 = vmatprep.subr.mxu0 0.0
  %598 = vmatpush2.msra.mxu0 0.0
  %599 = vmatprep.subr.mxu0 0.0
  %600 = vmatpush2.msra.mxu0 0.0
  %601 = vmatprep.subr.mxu0 0.0
  %602 = vmatpush2.msra.mxu0 0.0
  %603 = vmatprep.subr.mxu0 0.0
  %604 = vmatpush2.msra.mxu0 0.0
  %605 = vmatprep.subr.mxu0 0.0
  %606 = vmatpush2.msra.mxu0 0.0
  %607 = vmatprep.subr.mxu0 0.0
  %608 = vmatpush2.msra.mxu0 0.0
  %609 = vmatprep.subr.mxu0 0.0
  %610 = vmatpush2.msra.mxu0 0.0
  %611 = vmatprep.subr.mxu0 0.0
  %612 = vmatpush2.msra.mxu0 0.0
  %613 = vmatprep.subr.mxu0 0.0
  %614 = vmatpush2.msra.mxu0 0.0
  %615 = vmatprep.subr.mxu0 0.0
  %616 = vmatpush2.msra.mxu0 0.0
  %617 = vmatprep.subr.mxu0 0.0
  %618 = vmatpush2.msra.mxu0 0.0
  %619 = vmatprep.subr.mxu0 0.0
  %620 = vmatpush2.msra.mxu0 0.0
  %621 = vmatprep.subr.mxu0 0.0
  %622 = vmatpush2.msra.mxu0 0.0
  %623 = vmatprep.subr.mxu0 0.0
  %624 = vmatpush2.msra.mxu0 0.0
  %625 = vmatprep.mubr.f32.mxu0 0.0
  %626 = vmatmul.mubr.f32.gmra.mxu0 %v559
  %v627 = vpop.f32.mrf.mxu0
  %v628 = vadd.f32 0.0, %v627
  %v629 = vpop.f32.mrf.mxu0
  %v630 = vadd.f32 0.0, %v629
  %631 = vdwg.mxu0
  %v632 = vadd.f32 %v555, %v628
  %v633 = vadd.f32 %v556, %v630
  %v634 = vxor.u32 %v632, 2147483648
  %v635 = vmul.f32 %v634, 1.442695
  %v636 = vpow.pop %v635
  %v637 = vadd.f32 %v636, 1.0
  %v638 = vrcp.pop %v637
  %v639 = vmul.f32 1.0, %v638
  %v640 = vtanh.pop %v633
  %v641 = vxor.u32 %v633, 2147483648
  %v642 = vmul.f32 %v641, 1.442695
  %v643 = vpow.pop %v642
  %v644 = vadd.f32 %v643, 1.0
  %v645 = vrcp.pop %v644
  %v646 = vmul.f32 1.0, %v645
  %648 = vrot.lane.b32.xlu0 %v549, 64
  %v649 = vpop.permute.xlu0 %648
  %v651 = vmul.f32 %v639, %v649
  %v652 = vmul.f32 %v639, %v640
  %654 = vrot.lane.b32.xlu0 %v652, 64
  %v655 = vpop.permute.xlu0 %654
  %v657 = vadd.f32 %v651, %v655
  %v658 = vtanh.pop %v657
  %v659 = vmul.f32 %v646, %v658
  %661 = vrot.lane.b32.xlu0 %v659, 64
  %v662 = vpop.permute.xlu0 %661
  %v664 = vmul.f32 %v80, %v662
  %666 = vrot.lane.b32.xlu0 %v657, 64
  %v667 = vpop.permute.xlu0 %666
  %v669 = vmul.f32 %v80, %v667
  %v670 = vmul.f32 %v87, %v549
  %v671 = vadd.f32 %v669, %v670
  %v672 = vmul.f32 %v87, %v548
  %v673 = vadd.f32 %v664, %v672
  %s674 = scalar_lea.vmem [#allocation3], 8
  %675 = vst.msk [vmem:[%s674] sm:$0xff] %vm550, %v664
  %s676 = scalar_lea.vmem [#allocation3], 48
  %677 = vst.msk [vmem:[%s676] sm:$0xff] %vm553, %v664
  %v678 = vld [vmem:[%s478] sm:$0xff]
  %v679 = vld [vmem:[%s478 + $0x8] sm:$0xff]
  %v681 = vsel %vm557, %v673, 0
  %683 = vmatprep.subr.mxu0 0.0
  %684 = vmatpush1.msra.mxu0 0.0
  %685 = vmatprep.subr.mxu0 0.0
  %686 = vmatpush1.msra.mxu0 0.0
  %687 = vmatprep.subr.mxu0 0.0
  %688 = vmatpush1.msra.mxu0 0.0
  %689 = vmatprep.subr.mxu0 0.0
  %690 = vmatpush1.msra.mxu0 0.0
  %691 = vmatprep.subr.mxu0 0.0
  %692 = vmatpush1.msra.mxu0 0.0
  %693 = vmatprep.subr.mxu0 0.0
  %694 = vmatpush1.msra.mxu0 0.0
  %695 = vmatprep.subr.mxu0 0.0
  %696 = vmatpush1.msra.mxu0 0.0
  %697 = vmatprep.subr.mxu0 0.0
  %698 = vmatpush1.msra.mxu0 0.0
  %699 = vmatprep.subr.mxu0 %v521
  %700 = vmatpush1.msra.mxu0 %v520
  %701 = vmatprep.subr.mxu0 %v519
  %702 = vmatpush1.msra.mxu0 %v518
  %703 = vmatprep.subr.mxu0 %v517
  %704 = vmatpush1.msra.mxu0 %v516
  %705 = vmatprep.subr.mxu0 %v515
  %706 = vmatpush1.msra.mxu0 %v514
  %707 = vmatprep.subr.mxu0 %v513
  %708 = vmatpush1.msra.mxu0 %v512
  %709 = vmatprep.subr.mxu0 %v511
  %710 = vmatpush1.msra.mxu0 %v510
  %711 = vmatprep.subr.mxu0 %v509
  %712 = vmatpush1.msra.mxu0 %v508
  %713 = vmatprep.subr.mxu0 %v507
  %714 = vmatpush1.msra.mxu0 %v506
  %715 = vmatprep.subr.mxu0 0.0
  %716 = vmatpush2.msra.mxu0 0.0
  %717 = vmatprep.subr.mxu0 0.0
  %718 = vmatpush2.msra.mxu0 0.0
  %719 = vmatprep.subr.mxu0 0.0
  %720 = vmatpush2.msra.mxu0 0.0
  %721 = vmatprep.subr.mxu0 0.0
  %722 = vmatpush2.msra.mxu0 0.0
  %723 = vmatprep.subr.mxu0 0.0
  %724 = vmatpush2.msra.mxu0 0.0
  %725 = vmatprep.subr.mxu0 0.0
  %726 = vmatpush2.msra.mxu0 0.0
  %727 = vmatprep.subr.mxu0 0.0
  %728 = vmatpush2.msra.mxu0 0.0
  %729 = vmatprep.subr.mxu0 0.0
  %730 = vmatpush2.msra.mxu0 0.0
  %731 = vmatprep.subr.mxu0 0.0
  %732 = vmatpush2.msra.mxu0 0.0
  %733 = vmatprep.subr.mxu0 0.0
  %734 = vmatpush2.msra.mxu0 0.0
  %735 = vmatprep.subr.mxu0 0.0
  %736 = vmatpush2.msra.mxu0 0.0
  %737 = vmatprep.subr.mxu0 0.0
  %738 = vmatpush2.msra.mxu0 0.0
  %739 = vmatprep.subr.mxu0 0.0
  %740 = vmatpush2.msra.mxu0 0.0
  %741 = vmatprep.subr.mxu0 0.0
  %742 = vmatpush2.msra.mxu0 0.0
  %743 = vmatprep.subr.mxu0 0.0
  %744 = vmatpush2.msra.mxu0 0.0
  %745 = vmatprep.subr.mxu0 0.0
  %746 = vmatpush2.msra.mxu0 0.0
  %747 = vmatprep.mubr.f32.mxu0 0.0
  %748 = vmatmul.mubr.f32.gmra.mxu0 %v681
  %v749 = vpop.f32.mrf.mxu0
  %v750 = vadd.f32 0.0, %v749
  %v751 = vpop.f32.mrf.mxu0
  %v752 = vadd.f32 0.0, %v751
  %753 = vdwg.mxu0
  %v754 = vadd.f32 %v678, %v750
  %v755 = vadd.f32 %v679, %v752
  %v756 = vxor.u32 %v754, 2147483648
  %v757 = vmul.f32 %v756, 1.442695
  %v758 = vpow.pop %v757
  %v759 = vadd.f32 %v758, 1.0
  %v760 = vrcp.pop %v759
  %v761 = vmul.f32 1.0, %v760
  %v762 = vtanh.pop %v755
  %v763 = vxor.u32 %v755, 2147483648
  %v764 = vmul.f32 %v763, 1.442695
  %v765 = vpow.pop %v764
  %v766 = vadd.f32 %v765, 1.0
  %v767 = vrcp.pop %v766
  %v768 = vmul.f32 1.0, %v767
  %770 = vrot.lane.b32.xlu0 %v671, 64
  %v771 = vpop.permute.xlu0 %770
  %v773 = vmul.f32 %v761, %v771
  %v774 = vmul.f32 %v761, %v762
  %776 = vrot.lane.b32.xlu0 %v774, 64
  %v777 = vpop.permute.xlu0 %776
  %v779 = vadd.f32 %v773, %v777
  %v780 = vtanh.pop %v779
  %v781 = vmul.f32 %v768, %v780
  %783 = vrot.lane.b32.xlu0 %v781, 64
  %v784 = vpop.permute.xlu0 %783
  %v786 = vmul.f32 %v81, %v784
  %788 = vrot.lane.b32.xlu0 %v779, 64
  %v789 = vpop.permute.xlu0 %788
  %v791 = vmul.f32 %v81, %v789
  %v792 = vmul.f32 %v88, %v671
  %v793 = vadd.f32 %v791, %v792
  %v794 = vmul.f32 %v88, %v673
  %v795 = vadd.f32 %v786, %v794
  %s796 = scalar_lea.vmem [#allocation3], 16
  %797 = vst.msk [vmem:[%s796] sm:$0xff] %vm550, %v786
  %s798 = scalar_lea.vmem [#allocation3], 40
  %799 = vst.msk [vmem:[%s798] sm:$0xff] %vm553, %v786
  %v800 = vld [vmem:[%s483] sm:$0xff]
  %v801 = vld [vmem:[%s483 + $0x8] sm:$0xff]
  %v803 = vsel %vm557, %v795, 0
  %805 = vmatprep.subr.mxu0 0.0
  %806 = vmatpush1.msra.mxu0 0.0
  %807 = vmatprep.subr.mxu0 0.0
  %808 = vmatpush1.msra.mxu0 0.0
  %809 = vmatprep.subr.mxu0 0.0
  %810 = vmatpush1.msra.mxu0 0.0
  %811 = vmatprep.subr.mxu0 0.0
  %812 = vmatpush1.msra.mxu0 0.0
  %813 = vmatprep.subr.mxu0 0.0
  %814 = vmatpush1.msra.mxu0 0.0
  %815 = vmatprep.subr.mxu0 0.0
  %816 = vmatpush1.msra.mxu0 0.0
  %817 = vmatprep.subr.mxu0 0.0
  %818 = vmatpush1.msra.mxu0 0.0
  %819 = vmatprep.subr.mxu0 0.0
  %820 = vmatpush1.msra.mxu0 0.0
  %821 = vmatprep.subr.mxu0 %v521
  %822 = vmatpush1.msra.mxu0 %v520
  %823 = vmatprep.subr.mxu0 %v519
  %824 = vmatpush1.msra.mxu0 %v518
  %825 = vmatprep.subr.mxu0 %v517
  %826 = vmatpush1.msra.mxu0 %v516
  %827 = vmatprep.subr.mxu0 %v515
  %828 = vmatpush1.msra.mxu0 %v514
  %829 = vmatprep.subr.mxu0 %v513
  %830 = vmatpush1.msra.mxu0 %v512
  %831 = vmatprep.subr.mxu0 %v511
  %832 = vmatpush1.msra.mxu0 %v510
  %833 = vmatprep.subr.mxu0 %v509
  %834 = vmatpush1.msra.mxu0 %v508
  %835 = vmatprep.subr.mxu0 %v507
  %836 = vmatpush1.msra.mxu0 %v506
  %837 = vmatprep.subr.mxu0 0.0
  %838 = vmatpush2.msra.mxu0 0.0
  %839 = vmatprep.subr.mxu0 0.0
  %840 = vmatpush2.msra.mxu0 0.0
  %841 = vmatprep.subr.mxu0 0.0
  %842 = vmatpush2.msra.mxu0 0.0
  %843 = vmatprep.subr.mxu0 0.0
  %844 = vmatpush2.msra.mxu0 0.0
  %845 = vmatprep.subr.mxu0 0.0
  %846 = vmatpush2.msra.mxu0 0.0
  %847 = vmatprep.subr.mxu0 0.0
  %848 = vmatpush2.msra.mxu0 0.0
  %849 = vmatprep.subr.mxu0 0.0
  %850 = vmatpush2.msra.mxu0 0.0
  %851 = vmatprep.subr.mxu0 0.0
  %852 = vmatpush2.msra.mxu0 0.0
  %853 = vmatprep.subr.mxu0 0.0
  %854 = vmatpush2.msra.mxu0 0.0
  %855 = vmatprep.subr.mxu0 0.0
  %856 = vmatpush2.msra.mxu0 0.0
  %857 = vmatprep.subr.mxu0 0.0
  %858 = vmatpush2.msra.mxu0 0.0
  %859 = vmatprep.subr.mxu0 0.0
  %860 = vmatpush2.msra.mxu0 0.0
  %861 = vmatprep.subr.mxu0 0.0
  %862 = vmatpush2.msra.mxu0 0.0
  %863 = vmatprep.subr.mxu0 0.0
  %864 = vmatpush2.msra.mxu0 0.0
  %865 = vmatprep.subr.mxu0 0.0
  %866 = vmatpush2.msra.mxu0 0.0
  %867 = vmatprep.subr.mxu0 0.0
  %868 = vmatpush2.msra.mxu0 0.0
  %869 = vmatprep.mubr.f32.mxu0 0.0
  %870 = vmatmul.mubr.f32.gmra.mxu0 %v803
  %v871 = vpop.f32.mrf.mxu0
  %v872 = vadd.f32 0.0, %v871
  %v873 = vpop.f32.mrf.mxu0
  %v874 = vadd.f32 0.0, %v873
  %875 = vdwg.mxu0
  %v876 = vadd.f32 %v800, %v872
  %v877 = vadd.f32 %v801, %v874
  %v878 = vxor.u32 %v876, 2147483648
  %v879 = vmul.f32 %v878, 1.442695
  %v880 = vpow.pop %v879
  %v881 = vadd.f32 %v880, 1.0
  %v882 = vrcp.pop %v881
  %v883 = vmul.f32 1.0, %v882
  %v884 = vtanh.pop %v877
  %v885 = vxor.u32 %v877, 2147483648
  %v886 = vmul.f32 %v885, 1.442695
  %v887 = vpow.pop %v886
  %v888 = vadd.f32 %v887, 1.0
  %v889 = vrcp.pop %v888
  %v890 = vmul.f32 1.0, %v889
  %892 = vrot.lane.b32.xlu0 %v793, 64
  %v893 = vpop.permute.xlu0 %892
  %v895 = vmul.f32 %v883, %v893
  %v896 = vmul.f32 %v883, %v884
  %898 = vrot.lane.b32.xlu0 %v896, 64
  %v899 = vpop.permute.xlu0 %898
  %v901 = vadd.f32 %v895, %v899
  %v902 = vtanh.pop %v901
  %v903 = vmul.f32 %v890, %v902
  %905 = vrot.lane.b32.xlu0 %v903, 64
  %v906 = vpop.permute.xlu0 %905
  %v908 = vmul.f32 %v82, %v906
  %910 = vrot.lane.b32.xlu0 %v901, 64
  %v911 = vpop.permute.xlu0 %910
  %v913 = vmul.f32 %v82, %v911
  %v914 = vmul.f32 %v89, %v793
  %v915 = vadd.f32 %v913, %v914
  %v916 = vmul.f32 %v89, %v795
  %v917 = vadd.f32 %v908, %v916
  %s918 = scalar_lea.vmem [#allocation3], 24
  %919 = vst.msk [vmem:[%s918] sm:$0xff] %vm550, %v908
  %s920 = scalar_lea.vmem [#allocation3], 32
  %921 = vst.msk [vmem:[%s920] sm:$0xff] %vm553, %v908
  %v922 = vld [vmem:[%s488] sm:$0xff]
  %v923 = vld [vmem:[%s488 + $0x8] sm:$0xff]
  %v925 = vsel %vm557, %v917, 0
  %927 = vmatprep.subr.mxu0 0.0
  %928 = vmatpush1.msra.mxu0 0.0
  %929 = vmatprep.subr.mxu0 0.0
  %930 = vmatpush1.msra.mxu0 0.0
  %931 = vmatprep.subr.mxu0 0.0
  %932 = vmatpush1.msra.mxu0 0.0
  %933 = vmatprep.subr.mxu0 0.0
  %934 = vmatpush1.msra.mxu0 0.0
  %935 = vmatprep.subr.mxu0 0.0
  %936 = vmatpush1.msra.mxu0 0.0
  %937 = vmatprep.subr.mxu0 0.0
  %938 = vmatpush1.msra.mxu0 0.0
  %939 = vmatprep.subr.mxu0 0.0
  %940 = vmatpush1.msra.mxu0 0.0
  %941 = vmatprep.subr.mxu0 0.0
  %942 = vmatpush1.msra.mxu0 0.0
  %943 = vmatprep.subr.mxu0 %v521
  %944 = vmatpush1.msra.mxu0 %v520
  %945 = vmatprep.subr.mxu0 %v519
  %946 = vmatpush1.msra.mxu0 %v518
  %947 = vmatprep.subr.mxu0 %v517
  %948 = vmatpush1.msra.mxu0 %v516
  %949 = vmatprep.subr.mxu0 %v515
  %950 = vmatpush1.msra.mxu0 %v514
  %951 = vmatprep.subr.mxu0 %v513
  %952 = vmatpush1.msra.mxu0 %v512
  %953 = vmatprep.subr.mxu0 %v511
  %954 = vmatpush1.msra.mxu0 %v510
  %955 = vmatprep.subr.mxu0 %v509
  %956 = vmatpush1.msra.mxu0 %v508
  %957 = vmatprep.subr.mxu0 %v507
  %958 = vmatpush1.msra.mxu0 %v506
  %959 = vmatprep.subr.mxu0 0.0
  %960 = vmatpush2.msra.mxu0 0.0
  %961 = vmatprep.subr.mxu0 0.0
  %962 = vmatpush2.msra.mxu0 0.0
  %963 = vmatprep.subr.mxu0 0.0
  %964 = vmatpush2.msra.mxu0 0.0
  %965 = vmatprep.subr.mxu0 0.0
  %966 = vmatpush2.msra.mxu0 0.0
  %967 = vmatprep.subr.mxu0 0.0
  %968 = vmatpush2.msra.mxu0 0.0
  %969 = vmatprep.subr.mxu0 0.0
  %970 = vmatpush2.msra.mxu0 0.0
  %971 = vmatprep.subr.mxu0 0.0
  %972 = vmatpush2.msra.mxu0 0.0
  %973 = vmatprep.subr.mxu0 0.0
  %974 = vmatpush2.msra.mxu0 0.0
  %975 = vmatprep.subr.mxu0 0.0
  %976 = vmatpush2.msra.mxu0 0.0
  %977 = vmatprep.subr.mxu0 0.0
  %978 = vmatpush2.msra.mxu0 0.0
  %979 = vmatprep.subr.mxu0 0.0
  %980 = vmatpush2.msra.mxu0 0.0
  %981 = vmatprep.subr.mxu0 0.0
  %982 = vmatpush2.msra.mxu0 0.0
  %983 = vmatprep.subr.mxu0 0.0
  %984 = vmatpush2.msra.mxu0 0.0
  %985 = vmatprep.subr.mxu0 0.0
  %986 = vmatpush2.msra.mxu0 0.0
  %987 = vmatprep.subr.mxu0 0.0
  %988 = vmatpush2.msra.mxu0 0.0
  %989 = vmatprep.subr.mxu0 0.0
  %990 = vmatpush2.msra.mxu0 0.0
  %991 = vmatprep.mubr.f32.mxu0 0.0
  %992 = vmatmul.mubr.f32.gmra.mxu0 %v925
  %v993 = vpop.f32.mrf.mxu0
  %v994 = vadd.f32 0.0, %v993
  %v995 = vpop.f32.mrf.mxu0
  %v996 = vadd.f32 0.0, %v995
  %997 = vdwg.mxu0
  %v998 = vadd.f32 %v922, %v994
  %v999 = vadd.f32 %v923, %v996
  %v1000 = vxor.u32 %v998, 2147483648
  %v1001 = vmul.f32 %v1000, 1.442695
  %v1002 = vpow.pop %v1001
  %v1003 = vadd.f32 %v1002, 1.0
  %v1004 = vrcp.pop %v1003
  %v1005 = vmul.f32 1.0, %v1004
  %v1006 = vtanh.pop %v999
  %v1007 = vxor.u32 %v999, 2147483648
  %v1008 = vmul.f32 %v1007, 1.442695
  %v1009 = vpow.pop %v1008
  %v1010 = vadd.f32 %v1009, 1.0
  %v1011 = vrcp.pop %v1010
  %v1012 = vmul.f32 1.0, %v1011
  %1014 = vrot.lane.b32.xlu0 %v915, 64
  %v1015 = vpop.permute.xlu0 %1014
  %v1017 = vmul.f32 %v1005, %v1015
  %v1018 = vmul.f32 %v1005, %v1006
  %1020 = vrot.lane.b32.xlu0 %v1018, 64
  %v1021 = vpop.permute.xlu0 %1020
  %v1023 = vadd.f32 %v1017, %v1021
  %v1024 = vtanh.pop %v1023
  %v1025 = vmul.f32 %v1012, %v1024
  %1027 = vrot.lane.b32.xlu0 %v1025, 64
  %v1028 = vpop.permute.xlu0 %1027
  %v1030 = vmul.f32 %v83, %v1028
  %1032 = vrot.lane.b32.xlu0 %v1023, 64
  %v1033 = vpop.permute.xlu0 %1032
  %v1035 = vmul.f32 %v83, %v1033
  %v1036 = vmul.f32 %v90, %v915
  %v1037 = vadd.f32 %v1035, %v1036
  %v1038 = vmul.f32 %v90, %v917
  %v1039 = vadd.f32 %v1030, %v1038
  %1040 = vst.msk [vmem:[%s920] sm:$0xff] %vm550, %v1030
  %1041 = vst.msk [vmem:[%s918] sm:$0xff] %vm553, %v1030
  %v1042 = vld [vmem:[%s493] sm:$0xff]
  %v1043 = vld [vmem:[%s493 + $0x8] sm:$0xff]
  %v1045 = vsel %vm557, %v1039, 0
  %1047 = vmatprep.subr.mxu0 0.0
  %1048 = vmatpush1.msra.mxu0 0.0
  %1049 = vmatprep.subr.mxu0 0.0
  %1050 = vmatpush1.msra.mxu0 0.0
  %1051 = vmatprep.subr.mxu0 0.0
  %1052 = vmatpush1.msra.mxu0 0.0
  %1053 = vmatprep.subr.mxu0 0.0
  %1054 = vmatpush1.msra.mxu0 0.0
  %1055 = vmatprep.subr.mxu0 0.0
  %1056 = vmatpush1.msra.mxu0 0.0
  %1057 = vmatprep.subr.mxu0 0.0
  %1058 = vmatpush1.msra.mxu0 0.0
  %1059 = vmatprep.subr.mxu0 0.0
  %1060 = vmatpush1.msra.mxu0 0.0
  %1061 = vmatprep.subr.mxu0 0.0
  %1062 = vmatpush1.msra.mxu0 0.0
  %1063 = vmatprep.subr.mxu0 %v521
  %1064 = vmatpush1.msra.mxu0 %v520
  %1065 = vmatprep.subr.mxu0 %v519
  %1066 = vmatpush1.msra.mxu0 %v518
  %1067 = vmatprep.subr.mxu0 %v517
  %1068 = vmatpush1.msra.mxu0 %v516
  %1069 = vmatprep.subr.mxu0 %v515
  %1070 = vmatpush1.msra.mxu0 %v514
  %1071 = vmatprep.subr.mxu0 %v513
  %1072 = vmatpush1.msra.mxu0 %v512
  %1073 = vmatprep.subr.mxu0 %v511
  %1074 = vmatpush1.msra.mxu0 %v510
  %1075 = vmatprep.subr.mxu0 %v509
  %1076 = vmatpush1.msra.mxu0 %v508
  %1077 = vmatprep.subr.mxu0 %v507
  %1078 = vmatpush1.msra.mxu0 %v506
  %1079 = vmatprep.subr.mxu0 0.0
  %1080 = vmatpush2.msra.mxu0 0.0
  %1081 = vmatprep.subr.mxu0 0.0
  %1082 = vmatpush2.msra.mxu0 0.0
  %1083 = vmatprep.subr.mxu0 0.0
  %1084 = vmatpush2.msra.mxu0 0.0
  %1085 = vmatprep.subr.mxu0 0.0
  %1086 = vmatpush2.msra.mxu0 0.0
  %1087 = vmatprep.subr.mxu0 0.0
  %1088 = vmatpush2.msra.mxu0 0.0
  %1089 = vmatprep.subr.mxu0 0.0
  %1090 = vmatpush2.msra.mxu0 0.0
  %1091 = vmatprep.subr.mxu0 0.0
  %1092 = vmatpush2.msra.mxu0 0.0
  %1093 = vmatprep.subr.mxu0 0.0
  %1094 = vmatpush2.msra.mxu0 0.0
  %1095 = vmatprep.subr.mxu0 0.0
  %1096 = vmatpush2.msra.mxu0 0.0
  %1097 = vmatprep.subr.mxu0 0.0
  %1098 = vmatpush2.msra.mxu0 0.0
  %1099 = vmatprep.subr.mxu0 0.0
  %1100 = vmatpush2.msra.mxu0 0.0
  %1101 = vmatprep.subr.mxu0 0.0
  %1102 = vmatpush2.msra.mxu0 0.0
  %1103 = vmatprep.subr.mxu0 0.0
  %1104 = vmatpush2.msra.mxu0 0.0
  %1105 = vmatprep.subr.mxu0 0.0
  %1106 = vmatpush2.msra.mxu0 0.0
  %1107 = vmatprep.subr.mxu0 0.0
  %1108 = vmatpush2.msra.mxu0 0.0
  %1109 = vmatprep.subr.mxu0 0.0
  %1110 = vmatpush2.msra.mxu0 0.0
  %1111 = vmatprep.mubr.f32.mxu0 0.0
  %1112 = vmatmul.mubr.f32.gmra.mxu0 %v1045
  %v1113 = vpop.f32.mrf.mxu0
  %v1114 = vadd.f32 0.0, %v1113
  %v1115 = vpop.f32.mrf.mxu0
  %v1116 = vadd.f32 0.0, %v1115
  %1117 = vdwg.mxu0
  %v1118 = vadd.f32 %v1042, %v1114
  %v1119 = vadd.f32 %v1043, %v1116
  %v1120 = vxor.u32 %v1118, 2147483648
  %v1121 = vmul.f32 %v1120, 1.442695
  %v1122 = vpow.pop %v1121
  %v1123 = vadd.f32 %v1122, 1.0
  %v1124 = vrcp.pop %v1123
  %v1125 = vmul.f32 1.0, %v1124
  %v1126 = vtanh.pop %v1119
  %v1127 = vxor.u32 %v1119, 2147483648
  %v1128 = vmul.f32 %v1127, 1.442695
  %v1129 = vpow.pop %v1128
  %v1130 = vadd.f32 %v1129, 1.0
  %v1131 = vrcp.pop %v1130
  %v1132 = vmul.f32 1.0, %v1131
  %1134 = vrot.lane.b32.xlu0 %v1037, 64
  %v1135 = vpop.permute.xlu0 %1134
  %v1137 = vmul.f32 %v1125, %v1135
  %v1138 = vmul.f32 %v1125, %v1126
  %1140 = vrot.lane.b32.xlu0 %v1138, 64
  %v1141 = vpop.permute.xlu0 %1140
  %v1143 = vadd.f32 %v1137, %v1141
  %v1144 = vtanh.pop %v1143
  %v1145 = vmul.f32 %v1132, %v1144
  %1147 = vrot.lane.b32.xlu0 %v1145, 64
  %v1148 = vpop.permute.xlu0 %1147
  %v1150 = vmul.f32 %v84, %v1148
  %1152 = vrot.lane.b32.xlu0 %v1143, 64
  %v1153 = vpop.permute.xlu0 %1152
  %v1155 = vmul.f32 %v84, %v1153
  %v1156 = vmul.f32 %v91, %v1037
  %v1157 = vadd.f32 %v1155, %v1156
  %v1158 = vmul.f32 %v91, %v1039
  %v1159 = vadd.f32 %v1150, %v1158
  %1160 = vst.msk [vmem:[%s798] sm:$0xff] %vm550, %v1150
  %1161 = vst.msk [vmem:[%s796] sm:$0xff] %vm553, %v1150
  %v1162 = vld [vmem:[%s498] sm:$0xff]
  %v1163 = vld [vmem:[%s498 + $0x8] sm:$0xff]
  %v1165 = vsel %vm557, %v1159, 0
  %1167 = vmatprep.subr.mxu0 0.0
  %1168 = vmatpush1.msra.mxu0 0.0
  %1169 = vmatprep.subr.mxu0 0.0
  %1170 = vmatpush1.msra.mxu0 0.0
  %1171 = vmatprep.subr.mxu0 0.0
  %1172 = vmatpush1.msra.mxu0 0.0
  %1173 = vmatprep.subr.mxu0 0.0
  %1174 = vmatpush1.msra.mxu0 0.0
  %1175 = vmatprep.subr.mxu0 0.0
  %1176 = vmatpush1.msra.mxu0 0.0
  %1177 = vmatprep.subr.mxu0 0.0
  %1178 = vmatpush1.msra.mxu0 0.0
  %1179 = vmatprep.subr.mxu0 0.0
  %1180 = vmatpush1.msra.mxu0 0.0
  %1181 = vmatprep.subr.mxu0 0.0
  %1182 = vmatpush1.msra.mxu0 0.0
  %1183 = vmatprep.subr.mxu0 %v521
  %1184 = vmatpush1.msra.mxu0 %v520
  %1185 = vmatprep.subr.mxu0 %v519
  %1186 = vmatpush1.msra.mxu0 %v518
  %1187 = vmatprep.subr.mxu0 %v517
  %1188 = vmatpush1.msra.mxu0 %v516
  %1189 = vmatprep.subr.mxu0 %v515
  %1190 = vmatpush1.msra.mxu0 %v514
  %1191 = vmatprep.subr.mxu0 %v513
  %1192 = vmatpush1.msra.mxu0 %v512
  %1193 = vmatprep.subr.mxu0 %v511
  %1194 = vmatpush1.msra.mxu0 %v510
  %1195 = vmatprep.subr.mxu0 %v509
  %1196 = vmatpush1.msra.mxu0 %v508
  %1197 = vmatprep.subr.mxu0 %v507
  %1198 = vmatpush1.msra.mxu0 %v506
  %1199 = vmatprep.subr.mxu0 0.0
  %1200 = vmatpush2.msra.mxu0 0.0
  %1201 = vmatprep.subr.mxu0 0.0
  %1202 = vmatpush2.msra.mxu0 0.0
  %1203 = vmatprep.subr.mxu0 0.0
  %1204 = vmatpush2.msra.mxu0 0.0
  %1205 = vmatprep.subr.mxu0 0.0
  %1206 = vmatpush2.msra.mxu0 0.0
  %1207 = vmatprep.subr.mxu0 0.0
  %1208 = vmatpush2.msra.mxu0 0.0
  %1209 = vmatprep.subr.mxu0 0.0
  %1210 = vmatpush2.msra.mxu0 0.0
  %1211 = vmatprep.subr.mxu0 0.0
  %1212 = vmatpush2.msra.mxu0 0.0
  %1213 = vmatprep.subr.mxu0 0.0
  %1214 = vmatpush2.msra.mxu0 0.0
  %1215 = vmatprep.subr.mxu0 0.0
  %1216 = vmatpush2.msra.mxu0 0.0
  %1217 = vmatprep.subr.mxu0 0.0
  %1218 = vmatpush2.msra.mxu0 0.0
  %1219 = vmatprep.subr.mxu0 0.0
  %1220 = vmatpush2.msra.mxu0 0.0
  %1221 = vmatprep.subr.mxu0 0.0
  %1222 = vmatpush2.msra.mxu0 0.0
  %1223 = vmatprep.subr.mxu0 0.0
  %1224 = vmatpush2.msra.mxu0 0.0
  %1225 = vmatprep.subr.mxu0 0.0
  %1226 = vmatpush2.msra.mxu0 0.0
  %1227 = vmatprep.subr.mxu0 0.0
  %1228 = vmatpush2.msra.mxu0 0.0
  %1229 = vmatprep.subr.mxu0 0.0
  %1230 = vmatpush2.msra.mxu0 0.0
  %1231 = vmatprep.mubr.f32.mxu0 0.0
  %1232 = vmatmul.mubr.f32.gmra.mxu0 %v1165
  %v1233 = vpop.f32.mrf.mxu0
  %v1234 = vadd.f32 0.0, %v1233
  %v1235 = vpop.f32.mrf.mxu0
  %v1236 = vadd.f32 0.0, %v1235
  %1237 = vdwg.mxu0
  %v1238 = vadd.f32 %v1162, %v1234
  %v1239 = vadd.f32 %v1163, %v1236
  %v1240 = vxor.u32 %v1238, 2147483648
  %v1241 = vmul.f32 %v1240, 1.442695
  %v1242 = vpow.pop %v1241
  %v1243 = vadd.f32 %v1242, 1.0
  %v1244 = vrcp.pop %v1243
  %v1245 = vmul.f32 1.0, %v1244
  %v1246 = vtanh.pop %v1239
  %v1247 = vxor.u32 %v1239, 2147483648
  %v1248 = vmul.f32 %v1247, 1.442695
  %v1249 = vpow.pop %v1248
  %v1250 = vadd.f32 %v1249, 1.0
  %v1251 = vrcp.pop %v1250
  %v1252 = vmul.f32 1.0, %v1251
  %1254 = vrot.lane.b32.xlu0 %v1157, 64
  %v1255 = vpop.permute.xlu0 %1254
  %v1257 = vmul.f32 %v1245, %v1255
  %v1258 = vmul.f32 %v1245, %v1246
  %1260 = vrot.lane.b32.xlu0 %v1258, 64
  %v1261 = vpop.permute.xlu0 %1260
  %v1263 = vadd.f32 %v1257, %v1261
  %v1264 = vtanh.pop %v1263
  %v1265 = vmul.f32 %v1252, %v1264
  %1267 = vrot.lane.b32.xlu0 %v1265, 64
  %v1268 = vpop.permute.xlu0 %1267
  %v1270 = vmul.f32 %v85, %v1268
  %1272 = vrot.lane.b32.xlu0 %v1263, 64
  %v1273 = vpop.permute.xlu0 %1272
  %v1275 = vmul.f32 %v85, %v1273
  %v1276 = vmul.f32 %v92, %v1157
  %v1277 = vadd.f32 %v1275, %v1276
  %v1278 = vmul.f32 %v92, %v1159
  %v1279 = vadd.f32 %v1270, %v1278
  %1280 = vst.msk [vmem:[%s676] sm:$0xff] %vm550, %v1270
  %1281 = vst.msk [vmem:[%s674] sm:$0xff] %vm553, %v1270
  %v1282 = vld [vmem:[%s503] sm:$0xff]
  %v1283 = vld [vmem:[%s503 + $0x8] sm:$0xff]
  %v1285 = vsel %vm557, %v1279, 0
  %1287 = vmatprep.subr.mxu0 0.0
  %1288 = vmatpush1.msra.mxu0 0.0
  %1289 = vmatprep.subr.mxu0 0.0
  %1290 = vmatpush1.msra.mxu0 0.0
  %1291 = vmatprep.subr.mxu0 0.0
  %1292 = vmatpush1.msra.mxu0 0.0
  %1293 = vmatprep.subr.mxu0 0.0
  %1294 = vmatpush1.msra.mxu0 0.0
  %1295 = vmatprep.subr.mxu0 0.0
  %1296 = vmatpush1.msra.mxu0 0.0
  %1297 = vmatprep.subr.mxu0 0.0
  %1298 = vmatpush1.msra.mxu0 0.0
  %1299 = vmatprep.subr.mxu0 0.0
  %1300 = vmatpush1.msra.mxu0 0.0
  %1301 = vmatprep.subr.mxu0 0.0
  %1302 = vmatpush1.msra.mxu0 0.0
  %1303 = vmatprep.subr.mxu0 %v521
  %1304 = vmatpush1.msra.mxu0 %v520
  %1305 = vmatprep.subr.mxu0 %v519
  %1306 = vmatpush1.msra.mxu0 %v518
  %1307 = vmatprep.subr.mxu0 %v517
  %1308 = vmatpush1.msra.mxu0 %v516
  %1309 = vmatprep.subr.mxu0 %v515
  %1310 = vmatpush1.msra.mxu0 %v514
  %1311 = vmatprep.subr.mxu0 %v513
  %1312 = vmatpush1.msra.mxu0 %v512
  %1313 = vmatprep.subr.mxu0 %v511
  %1314 = vmatpush1.msra.mxu0 %v510
  %1315 = vmatprep.subr.mxu0 %v509
  %1316 = vmatpush1.msra.mxu0 %v508
  %1317 = vmatprep.subr.mxu0 %v507
  %1318 = vmatpush1.msra.mxu0 %v506
  %1319 = vmatprep.subr.mxu0 0.0
  %1320 = vmatpush2.msra.mxu0 0.0
  %1321 = vmatprep.subr.mxu0 0.0
  %1322 = vmatpush2.msra.mxu0 0.0
  %1323 = vmatprep.subr.mxu0 0.0
  %1324 = vmatpush2.msra.mxu0 0.0
  %1325 = vmatprep.subr.mxu0 0.0
  %1326 = vmatpush2.msra.mxu0 0.0
  %1327 = vmatprep.subr.mxu0 0.0
  %1328 = vmatpush2.msra.mxu0 0.0
  %1329 = vmatprep.subr.mxu0 0.0
  %1330 = vmatpush2.msra.mxu0 0.0
  %1331 = vmatprep.subr.mxu0 0.0
  %1332 = vmatpush2.msra.mxu0 0.0
  %1333 = vmatprep.subr.mxu0 0.0
  %1334 = vmatpush2.msra.mxu0 0.0
  %1335 = vmatprep.subr.mxu0 0.0
  %1336 = vmatpush2.msra.mxu0 0.0
  %1337 = vmatprep.subr.mxu0 0.0
  %1338 = vmatpush2.msra.mxu0 0.0
  %1339 = vmatprep.subr.mxu0 0.0
  %1340 = vmatpush2.msra.mxu0 0.0
  %1341 = vmatprep.subr.mxu0 0.0
  %1342 = vmatpush2.msra.mxu0 0.0
  %1343 = vmatprep.subr.mxu0 0.0
  %1344 = vmatpush2.msra.mxu0 0.0
  %1345 = vmatprep.subr.mxu0 0.0
  %1346 = vmatpush2.msra.mxu0 0.0
  %1347 = vmatprep.subr.mxu0 0.0
  %1348 = vmatpush2.msra.mxu0 0.0
  %1349 = vmatprep.subr.mxu0 0.0
  %1350 = vmatpush2.msra.mxu0 0.0
  %1351 = vmatprep.mubr.f32.mxu0 0.0
  %1352 = vmatmul.mubr.f32.gmra.mxu0 %v1285
  %v1353 = vpop.f32.mrf.mxu0
  %v1354 = vadd.f32 0.0, %v1353
  %v1355 = vpop.f32.mrf.mxu0
  %v1356 = vadd.f32 0.0, %v1355
  %1357 = vdwg.mxu0
  %v1358 = vadd.f32 %v1282, %v1354
  %v1359 = vadd.f32 %v1283, %v1356
  %v1360 = vxor.u32 %v1358, 2147483648
  %v1361 = vmul.f32 %v1360, 1.442695
  %v1362 = vpow.pop %v1361
  %v1363 = vadd.f32 %v1362, 1.0
  %v1364 = vrcp.pop %v1363
  %v1365 = vmul.f32 1.0, %v1364
  %v1366 = vtanh.pop %v1359
  %v1367 = vxor.u32 %v1359, 2147483648
  %v1368 = vmul.f32 %v1367, 1.442695
  %v1369 = vpow.pop %v1368
  %v1370 = vadd.f32 %v1369, 1.0
  %v1371 = vrcp.pop %v1370
  %v1372 = vmul.f32 1.0, %v1371
  %1374 = vrot.lane.b32.xlu0 %v1277, 64
  %v1375 = vpop.permute.xlu0 %1374
  %v1377 = vmul.f32 %v1365, %v1375
  %v1378 = vmul.f32 %v1365, %v1366
  %1380 = vrot.lane.b32.xlu0 %v1378, 64
  %v1381 = vpop.permute.xlu0 %1380
  %v1383 = vadd.f32 %v1377, %v1381
  %v1384 = vtanh.pop %v1383
  %v1385 = vmul.f32 %v1372, %v1384
  %1387 = vrot.lane.b32.xlu0 %v1385, 64
  %v1388 = vpop.permute.xlu0 %1387
  %v1390 = vmul.f32 %v86, %v1388
  %1391 = vst.msk [vmem:[%s552] sm:$0xff] %vm550, %v1390
  %1392 = vst.msk [vmem:[#allocation3] sm:$0xff] %vm553, %v1390
  %v1393 = vld [vmem:[%s6] sm:$0xff]
  %v1394 = vld [vmem:[%s6 + $0x8] sm:$0xff]
  %v1395 = vld [vmem:[%s6 + $0x10] sm:$0xff]
  %v1396 = vld [vmem:[%s6 + $0x18] sm:$0xff]
  %v1397 = vld [vmem:[%s6 + $0x20] sm:$0xff]
  %v1398 = vld [vmem:[%s6 + $0x28] sm:$0xff]
  %v1399 = vld [vmem:[%s6 + $0x30] sm:$0xff]
  %v1400 = vld [vmem:[%s6 + $0x38] sm:$0xff]
  %v1401 = vld [vmem:[%s6 + $0x40] sm:$0xff]
  %v1402 = vld [vmem:[%s6 + $0x48] sm:$0xff]
  %v1403 = vld [vmem:[%s6 + $0x50] sm:$0xff]
  %v1404 = vld [vmem:[%s6 + $0x58] sm:$0xff]
  %v1405 = vld [vmem:[%s6 + $0x60] sm:$0xff]
  %v1406 = vld [vmem:[%s6 + $0x68] sm:$0xff]
  %v1407 = vld [vmem:[%s6 + $0x70] sm:$0xff]
  %v1408 = vld [vmem:[%s6 + $0x78] sm:$0xff]
  %v1409 = vld [vmem:[%s8] sm:$0x3]
  %v1410 = vld [vmem:[#allocation3] sm:$0xff]
  %v1412 = vlaneseq
  %v1413 = vshrl.u32 %v1412, 7
  %v1414 = vsub.s32 0, %v1413
  %v1415 = vrot.slane %v1409, %v1414
  %v1416 = vlaneseq
  %v1417 = vshrl.u32 %v1416, 7
  %v1418 = vsub.s32 1, %v1417
  %v1419 = vrot.slane %v1409, %v1418
  %v1423 = vsel %vm557, %v1410, 0
  %1425 = vmatprep.subr.mxu0 0.0
  %1426 = vmatpush1.msra.mxu0 0.0
  %1427 = vmatprep.subr.mxu0 0.0
  %1428 = vmatpush1.msra.mxu0 0.0
  %1429 = vmatprep.subr.mxu0 0.0
  %1430 = vmatpush1.msra.mxu0 0.0
  %1431 = vmatprep.subr.mxu0 0.0
  %1432 = vmatpush1.msra.mxu0 0.0
  %1433 = vmatprep.subr.mxu0 0.0
  %1434 = vmatpush1.msra.mxu0 0.0
  %1435 = vmatprep.subr.mxu0 0.0
  %1436 = vmatpush1.msra.mxu0 0.0
  %1437 = vmatprep.subr.mxu0 0.0
  %1438 = vmatpush1.msra.mxu0 0.0
  %1439 = vmatprep.subr.mxu0 0.0
  %1440 = vmatpush1.msra.mxu0 0.0
  %1441 = vmatprep.subr.mxu0 %v1408
  %1442 = vmatpush1.msra.mxu0 %v1407
  %1443 = vmatprep.subr.mxu0 %v1406
  %1444 = vmatpush1.msra.mxu0 %v1405
  %1445 = vmatprep.subr.mxu0 %v1404
  %1446 = vmatpush1.msra.mxu0 %v1403
  %1447 = vmatprep.subr.mxu0 %v1402
  %1448 = vmatpush1.msra.mxu0 %v1401
  %1449 = vmatprep.subr.mxu0 %v1400
  %1450 = vmatpush1.msra.mxu0 %v1399
  %1451 = vmatprep.subr.mxu0 %v1398
  %1452 = vmatpush1.msra.mxu0 %v1397
  %1453 = vmatprep.subr.mxu0 %v1396
  %1454 = vmatpush1.msra.mxu0 %v1395
  %1455 = vmatprep.subr.mxu0 %v1394
  %1456 = vmatpush1.msra.mxu0 %v1393
  %1457 = vmatprep.subr.mxu0 0.0
  %1458 = vmatpush2.msra.mxu0 0.0
  %1459 = vmatprep.subr.mxu0 0.0
  %1460 = vmatpush2.msra.mxu0 0.0
  %1461 = vmatprep.subr.mxu0 0.0
  %1462 = vmatpush2.msra.mxu0 0.0
  %1463 = vmatprep.subr.mxu0 0.0
  %1464 = vmatpush2.msra.mxu0 0.0
  %1465 = vmatprep.subr.mxu0 0.0
  %1466 = vmatpush2.msra.mxu0 0.0
  %1467 = vmatprep.subr.mxu0 0.0
  %1468 = vmatpush2.msra.mxu0 0.0
  %1469 = vmatprep.subr.mxu0 0.0
  %1470 = vmatpush2.msra.mxu0 0.0
  %1471 = vmatprep.subr.mxu0 0.0
  %1472 = vmatpush2.msra.mxu0 0.0
  %1473 = vmatprep.subr.mxu0 0.0
  %1474 = vmatpush2.msra.mxu0 0.0
  %1475 = vmatprep.subr.mxu0 0.0
  %1476 = vmatpush2.msra.mxu0 0.0
  %1477 = vmatprep.subr.mxu0 0.0
  %1478 = vmatpush2.msra.mxu0 0.0
  %1479 = vmatprep.subr.mxu0 0.0
  %1480 = vmatpush2.msra.mxu0 0.0
  %1481 = vmatprep.subr.mxu0 0.0
  %1482 = vmatpush2.msra.mxu0 0.0
  %1483 = vmatprep.subr.mxu0 0.0
  %1484 = vmatpush2.msra.mxu0 0.0
  %1485 = vmatprep.subr.mxu0 0.0
  %1486 = vmatpush2.msra.mxu0 0.0
  %1487 = vmatprep.subr.mxu0 0.0
  %1488 = vmatpush2.msra.mxu0 0.0
  %1489 = vmatprep.mubr.f32.mxu0 0.0
  %1490 = vmatmul.mubr.f32.gmra.mxu0 %v1423
  %v1491 = vpop.f32.mrf.mxu0
  %v1492 = vadd.f32 %v1415, %v1491
  %v1493 = vpop.f32.mrf.mxu0
  %v1494 = vadd.f32 %v1419, %v1493
  %1495 = vdwg.mxu0
  %v1496 = vld [vmem:[%s674] sm:$0xff]
  %v1498 = vsel %vm557, %v1496, 0
  %1500 = vmatprep.subr.mxu0 0.0
  %1501 = vmatpush1.msra.mxu0 0.0
  %1502 = vmatprep.subr.mxu0 0.0
  %1503 = vmatpush1.msra.mxu0 0.0
  %1504 = vmatprep.subr.mxu0 0.0
  %1505 = vmatpush1.msra.mxu0 0.0
  %1506 = vmatprep.subr.mxu0 0.0
  %1507 = vmatpush1.msra.mxu0 0.0
  %1508 = vmatprep.subr.mxu0 0.0
  %1509 = vmatpush1.msra.mxu0 0.0
  %1510 = vmatprep.subr.mxu0 0.0
  %1511 = vmatpush1.msra.mxu0 0.0
  %1512 = vmatprep.subr.mxu0 0.0
  %1513 = vmatpush1.msra.mxu0 0.0
  %1514 = vmatprep.subr.mxu0 0.0
  %1515 = vmatpush1.msra.mxu0 0.0
  %1516 = vmatprep.subr.mxu0 %v1408
  %1517 = vmatpush1.msra.mxu0 %v1407
  %1518 = vmatprep.subr.mxu0 %v1406
  %1519 = vmatpush1.msra.mxu0 %v1405
  %1520 = vmatprep.subr.mxu0 %v1404
  %1521 = vmatpush1.msra.mxu0 %v1403
  %1522 = vmatprep.subr.mxu0 %v1402
  %1523 = vmatpush1.msra.mxu0 %v1401
  %1524 = vmatprep.subr.mxu0 %v1400
  %1525 = vmatpush1.msra.mxu0 %v1399
  %1526 = vmatprep.subr.mxu0 %v1398
  %1527 = vmatpush1.msra.mxu0 %v1397
  %1528 = vmatprep.subr.mxu0 %v1396
  %1529 = vmatpush1.msra.mxu0 %v1395
  %1530 = vmatprep.subr.mxu0 %v1394
  %1531 = vmatpush1.msra.mxu0 %v1393
  %1532 = vmatprep.subr.mxu0 0.0
  %1533 = vmatpush2.msra.mxu0 0.0
  %1534 = vmatprep.subr.mxu0 0.0
  %1535 = vmatpush2.msra.mxu0 0.0
  %1536 = vmatprep.subr.mxu0 0.0
  %1537 = vmatpush2.msra.mxu0 0.0
  %1538 = vmatprep.subr.mxu0 0.0
  %1539 = vmatpush2.msra.mxu0 0.0
  %1540 = vmatprep.subr.mxu0 0.0
  %1541 = vmatpush2.msra.mxu0 0.0
  %1542 = vmatprep.subr.mxu0 0.0
  %1543 = vmatpush2.msra.mxu0 0.0
  %1544 = vmatprep.subr.mxu0 0.0
  %1545 = vmatpush2.msra.mxu0 0.0
  %1546 = vmatprep.subr.mxu0 0.0
  %1547 = vmatpush2.msra.mxu0 0.0
  %1548 = vmatprep.subr.mxu0 0.0
  %1549 = vmatpush2.msra.mxu0 0.0
  %1550 = vmatprep.subr.mxu0 0.0
  %1551 = vmatpush2.msra.mxu0 0.0
  %1552 = vmatprep.subr.mxu0 0.0
  %1553 = vmatpush2.msra.mxu0 0.0
  %1554 = vmatprep.subr.mxu0 0.0
  %1555 = vmatpush2.msra.mxu0 0.0
  %1556 = vmatprep.subr.mxu0 0.0
  %1557 = vmatpush2.msra.mxu0 0.0
  %1558 = vmatprep.subr.mxu0 0.0
  %1559 = vmatpush2.msra.mxu0 0.0
  %1560 = vmatprep.subr.mxu0 0.0
  %1561 = vmatpush2.msra.mxu0 0.0
  %1562 = vmatprep.subr.mxu0 0.0
  %1563 = vmatpush2.msra.mxu0 0.0
  %1564 = vmatprep.mubr.f32.mxu0 0.0
  %1565 = vmatmul.mubr.f32.gmra.mxu0 %v1498
  %v1566 = vpop.f32.mrf.mxu0
  %v1567 = vadd.f32 %v1415, %v1566
  %v1568 = vpop.f32.mrf.mxu0
  %v1569 = vadd.f32 %v1419, %v1568
  %1570 = vdwg.mxu0
  %v1571 = vld [vmem:[%s796] sm:$0xff]
  %v1573 = vsel %vm557, %v1571, 0
  %1575 = vmatprep.subr.mxu0 0.0
  %1576 = vmatpush1.msra.mxu0 0.0
  %1577 = vmatprep.subr.mxu0 0.0
  %1578 = vmatpush1.msra.mxu0 0.0
  %1579 = vmatprep.subr.mxu0 0.0
  %1580 = vmatpush1.msra.mxu0 0.0
  %1581 = vmatprep.subr.mxu0 0.0
  %1582 = vmatpush1.msra.mxu0 0.0
  %1583 = vmatprep.subr.mxu0 0.0
  %1584 = vmatpush1.msra.mxu0 0.0
  %1585 = vmatprep.subr.mxu0 0.0
  %1586 = vmatpush1.msra.mxu0 0.0
  %1587 = vmatprep.subr.mxu0 0.0
  %1588 = vmatpush1.msra.mxu0 0.0
  %1589 = vmatprep.subr.mxu0 0.0
  %1590 = vmatpush1.msra.mxu0 0.0
  %1591 = vmatprep.subr.mxu0 %v1408
  %1592 = vmatpush1.msra.mxu0 %v1407
  %1593 = vmatprep.subr.mxu0 %v1406
  %1594 = vmatpush1.msra.mxu0 %v1405
  %1595 = vmatprep.subr.mxu0 %v1404
  %1596 = vmatpush1.msra.mxu0 %v1403
  %1597 = vmatprep.subr.mxu0 %v1402
  %1598 = vmatpush1.msra.mxu0 %v1401
  %1599 = vmatprep.subr.mxu0 %v1400
  %1600 = vmatpush1.msra.mxu0 %v1399
  %1601 = vmatprep.subr.mxu0 %v1398
  %1602 = vmatpush1.msra.mxu0 %v1397
  %1603 = vmatprep.subr.mxu0 %v1396
  %1604 = vmatpush1.msra.mxu0 %v1395
  %1605 = vmatprep.subr.mxu0 %v1394
  %1606 = vmatpush1.msra.mxu0 %v1393
  %1607 = vmatprep.subr.mxu0 0.0
  %1608 = vmatpush2.msra.mxu0 0.0
  %1609 = vmatprep.subr.mxu0 0.0
  %1610 = vmatpush2.msra.mxu0 0.0
  %1611 = vmatprep.subr.mxu0 0.0
  %1612 = vmatpush2.msra.mxu0 0.0
  %1613 = vmatprep.subr.mxu0 0.0
  %1614 = vmatpush2.msra.mxu0 0.0
  %1615 = vmatprep.subr.mxu0 0.0
  %1616 = vmatpush2.msra.mxu0 0.0
  %1617 = vmatprep.subr.mxu0 0.0
  %1618 = vmatpush2.msra.mxu0 0.0
  %1619 = vmatprep.subr.mxu0 0.0
  %1620 = vmatpush2.msra.mxu0 0.0
  %1621 = vmatprep.subr.mxu0 0.0
  %1622 = vmatpush2.msra.mxu0 0.0
  %1623 = vmatprep.subr.mxu0 0.0
  %1624 = vmatpush2.msra.mxu0 0.0
  %1625 = vmatprep.subr.mxu0 0.0
  %1626 = vmatpush2.msra.mxu0 0.0
  %1627 = vmatprep.subr.mxu0 0.0
  %1628 = vmatpush2.msra.mxu0 0.0
  %1629 = vmatprep.subr.mxu0 0.0
  %1630 = vmatpush2.msra.mxu0 0.0
  %1631 = vmatprep.subr.mxu0 0.0
  %1632 = vmatpush2.msra.mxu0 0.0
  %1633 = vmatprep.subr.mxu0 0.0
  %1634 = vmatpush2.msra.mxu0 0.0
  %1635 = vmatprep.subr.mxu0 0.0
  %1636 = vmatpush2.msra.mxu0 0.0
  %1637 = vmatprep.subr.mxu0 0.0
  %1638 = vmatpush2.msra.mxu0 0.0
  %1639 = vmatprep.mubr.f32.mxu0 0.0
  %1640 = vmatmul.mubr.f32.gmra.mxu0 %v1573
  %v1641 = vpop.f32.mrf.mxu0
  %v1642 = vadd.f32 %v1415, %v1641
  %v1643 = vpop.f32.mrf.mxu0
  %v1644 = vadd.f32 %v1419, %v1643
  %1645 = vdwg.mxu0
  %v1646 = vld [vmem:[%s918] sm:$0xff]
  %v1648 = vsel %vm557, %v1646, 0
  %1650 = vmatprep.subr.mxu0 0.0
  %1651 = vmatpush1.msra.mxu0 0.0
  %1652 = vmatprep.subr.mxu0 0.0
  %1653 = vmatpush1.msra.mxu0 0.0
  %1654 = vmatprep.subr.mxu0 0.0
  %1655 = vmatpush1.msra.mxu0 0.0
  %1656 = vmatprep.subr.mxu0 0.0
  %1657 = vmatpush1.msra.mxu0 0.0
  %1658 = vmatprep.subr.mxu0 0.0
  %1659 = vmatpush1.msra.mxu0 0.0
  %1660 = vmatprep.subr.mxu0 0.0
  %1661 = vmatpush1.msra.mxu0 0.0
  %1662 = vmatprep.subr.mxu0 0.0
  %1663 = vmatpush1.msra.mxu0 0.0
  %1664 = vmatprep.subr.mxu0 0.0
  %1665 = vmatpush1.msra.mxu0 0.0
  %1666 = vmatprep.subr.mxu0 %v1408
  %1667 = vmatpush1.msra.mxu0 %v1407
  %1668 = vmatprep.subr.mxu0 %v1406
  %1669 = vmatpush1.msra.mxu0 %v1405
  %1670 = vmatprep.subr.mxu0 %v1404
  %1671 = vmatpush1.msra.mxu0 %v1403
  %1672 = vmatprep.subr.mxu0 %v1402
  %1673 = vmatpush1.msra.mxu0 %v1401
  %1674 = vmatprep.subr.mxu0 %v1400
  %1675 = vmatpush1.msra.mxu0 %v1399
  %1676 = vmatprep.subr.mxu0 %v1398
  %1677 = vmatpush1.msra.mxu0 %v1397
  %1678 = vmatprep.subr.mxu0 %v1396
  %1679 = vmatpush1.msra.mxu0 %v1395
  %1680 = vmatprep.subr.mxu0 %v1394
  %1681 = vmatpush1.msra.mxu0 %v1393
  %1682 = vmatprep.subr.mxu0 0.0
  %1683 = vmatpush2.msra.mxu0 0.0
  %1684 = vmatprep.subr.mxu0 0.0
  %1685 = vmatpush2.msra.mxu0 0.0
  %1686 = vmatprep.subr.mxu0 0.0
  %1687 = vmatpush2.msra.mxu0 0.0
  %1688 = vmatprep.subr.mxu0 0.0
  %1689 = vmatpush2.msra.mxu0 0.0
  %1690 = vmatprep.subr.mxu0 0.0
  %1691 = vmatpush2.msra.mxu0 0.0
  %1692 = vmatprep.subr.mxu0 0.0
  %1693 = vmatpush2.msra.mxu0 0.0
  %1694 = vmatprep.subr.mxu0 0.0
  %1695 = vmatpush2.msra.mxu0 0.0
  %1696 = vmatprep.subr.mxu0 0.0
  %1697 = vmatpush2.msra.mxu0 0.0
  %1698 = vmatprep.subr.mxu0 0.0
  %1699 = vmatpush2.msra.mxu0 0.0
  %1700 = vmatprep.subr.mxu0 0.0
  %1701 = vmatpush2.msra.mxu0 0.0
  %1702 = vmatprep.subr.mxu0 0.0
  %1703 = vmatpush2.msra.mxu0 0.0
  %1704 = vmatprep.subr.mxu0 0.0
  %1705 = vmatpush2.msra.mxu0 0.0
  %1706 = vmatprep.subr.mxu0 0.0
  %1707 = vmatpush2.msra.mxu0 0.0
  %1708 = vmatprep.subr.mxu0 0.0
  %1709 = vmatpush2.msra.mxu0 0.0
  %1710 = vmatprep.subr.mxu0 0.0
  %1711 = vmatpush2.msra.mxu0 0.0
  %1712 = vmatprep.subr.mxu0 0.0
  %1713 = vmatpush2.msra.mxu0 0.0
  %1714 = vmatprep.mubr.f32.mxu0 0.0
  %1715 = vmatmul.mubr.f32.gmra.mxu0 %v1648
  %v1716 = vpop.f32.mrf.mxu0
  %v1717 = vadd.f32 %v1415, %v1716
  %v1718 = vpop.f32.mrf.mxu0
  %v1719 = vadd.f32 %v1419, %v1718
  %1720 = vdwg.mxu0
  %v1721 = vld [vmem:[%s920] sm:$0xff]
  %v1723 = vsel %vm557, %v1721, 0
  %1725 = vmatprep.subr.mxu0 0.0
  %1726 = vmatpush1.msra.mxu0 0.0
  %1727 = vmatprep.subr.mxu0 0.0
  %1728 = vmatpush1.msra.mxu0 0.0
  %1729 = vmatprep.subr.mxu0 0.0
  %1730 = vmatpush1.msra.mxu0 0.0
  %1731 = vmatprep.subr.mxu0 0.0
  %1732 = vmatpush1.msra.mxu0 0.0
  %1733 = vmatprep.subr.mxu0 0.0
  %1734 = vmatpush1.msra.mxu0 0.0
  %1735 = vmatprep.subr.mxu0 0.0
  %1736 = vmatpush1.msra.mxu0 0.0
  %1737 = vmatprep.subr.mxu0 0.0
  %1738 = vmatpush1.msra.mxu0 0.0
  %1739 = vmatprep.subr.mxu0 0.0
  %1740 = vmatpush1.msra.mxu0 0.0
  %1741 = vmatprep.subr.mxu0 %v1408
  %1742 = vmatpush1.msra.mxu0 %v1407
  %1743 = vmatprep.subr.mxu0 %v1406
  %1744 = vmatpush1.msra.mxu0 %v1405
  %1745 = vmatprep.subr.mxu0 %v1404
  %1746 = vmatpush1.msra.mxu0 %v1403
  %1747 = vmatprep.subr.mxu0 %v1402
  %1748 = vmatpush1.msra.mxu0 %v1401
  %1749 = vmatprep.subr.mxu0 %v1400
  %1750 = vmatpush1.msra.mxu0 %v1399
  %1751 = vmatprep.subr.mxu0 %v1398
  %1752 = vmatpush1.msra.mxu0 %v1397
  %1753 = vmatprep.subr.mxu0 %v1396
  %1754 = vmatpush1.msra.mxu0 %v1395
  %1755 = vmatprep.subr.mxu0 %v1394
  %1756 = vmatpush1.msra.mxu0 %v1393
  %1757 = vmatprep.subr.mxu0 0.0
  %1758 = vmatpush2.msra.mxu0 0.0
  %1759 = vmatprep.subr.mxu0 0.0
  %1760 = vmatpush2.msra.mxu0 0.0
  %1761 = vmatprep.subr.mxu0 0.0
  %1762 = vmatpush2.msra.mxu0 0.0
  %1763 = vmatprep.subr.mxu0 0.0
  %1764 = vmatpush2.msra.mxu0 0.0
  %1765 = vmatprep.subr.mxu0 0.0
  %1766 = vmatpush2.msra.mxu0 0.0
  %1767 = vmatprep.subr.mxu0 0.0
  %1768 = vmatpush2.msra.mxu0 0.0
  %1769 = vmatprep.subr.mxu0 0.0
  %1770 = vmatpush2.msra.mxu0 0.0
  %1771 = vmatprep.subr.mxu0 0.0
  %1772 = vmatpush2.msra.mxu0 0.0
  %1773 = vmatprep.subr.mxu0 0.0
  %1774 = vmatpush2.msra.mxu0 0.0
  %1775 = vmatprep.subr.mxu0 0.0
  %1776 = vmatpush2.msra.mxu0 0.0
  %1777 = vmatprep.subr.mxu0 0.0
  %1778 = vmatpush2.msra.mxu0 0.0
  %1779 = vmatprep.subr.mxu0 0.0
  %1780 = vmatpush2.msra.mxu0 0.0
  %1781 = vmatprep.subr.mxu0 0.0
  %1782 = vmatpush2.msra.mxu0 0.0
  %1783 = vmatprep.subr.mxu0 0.0
  %1784 = vmatpush2.msra.mxu0 0.0
  %1785 = vmatprep.subr.mxu0 0.0
  %1786 = vmatpush2.msra.mxu0 0.0
  %1787 = vmatprep.subr.mxu0 0.0
  %1788 = vmatpush2.msra.mxu0 0.0
  %1789 = vmatprep.mubr.f32.mxu0 0.0
  %1790 = vmatmul.mubr.f32.gmra.mxu0 %v1723
  %v1791 = vpop.f32.mrf.mxu0
  %v1792 = vadd.f32 %v1415, %v1791
  %v1793 = vpop.f32.mrf.mxu0
  %v1794 = vadd.f32 %v1419, %v1793
  %1795 = vdwg.mxu0
  %v1796 = vld [vmem:[%s798] sm:$0xff]
  %v1798 = vsel %vm557, %v1796, 0
  %1800 = vmatprep.subr.mxu0 0.0
  %1801 = vmatpush1.msra.mxu0 0.0
  %1802 = vmatprep.subr.mxu0 0.0
  %1803 = vmatpush1.msra.mxu0 0.0
  %1804 = vmatprep.subr.mxu0 0.0
  %1805 = vmatpush1.msra.mxu0 0.0
  %1806 = vmatprep.subr.mxu0 0.0
  %1807 = vmatpush1.msra.mxu0 0.0
  %1808 = vmatprep.subr.mxu0 0.0
  %1809 = vmatpush1.msra.mxu0 0.0
  %1810 = vmatprep.subr.mxu0 0.0
  %1811 = vmatpush1.msra.mxu0 0.0
  %1812 = vmatprep.subr.mxu0 0.0
  %1813 = vmatpush1.msra.mxu0 0.0
  %1814 = vmatprep.subr.mxu0 0.0
  %1815 = vmatpush1.msra.mxu0 0.0
  %1816 = vmatprep.subr.mxu0 %v1408
  %1817 = vmatpush1.msra.mxu0 %v1407
  %1818 = vmatprep.subr.mxu0 %v1406
  %1819 = vmatpush1.msra.mxu0 %v1405
  %1820 = vmatprep.subr.mxu0 %v1404
  %1821 = vmatpush1.msra.mxu0 %v1403
  %1822 = vmatprep.subr.mxu0 %v1402
  %1823 = vmatpush1.msra.mxu0 %v1401
  %1824 = vmatprep.subr.mxu0 %v1400
  %1825 = vmatpush1.msra.mxu0 %v1399
  %1826 = vmatprep.subr.mxu0 %v1398
  %1827 = vmatpush1.msra.mxu0 %v1397
  %1828 = vmatprep.subr.mxu0 %v1396
  %1829 = vmatpush1.msra.mxu0 %v1395
  %1830 = vmatprep.subr.mxu0 %v1394
  %1831 = vmatpush1.msra.mxu0 %v1393
  %1832 = vmatprep.subr.mxu0 0.0
  %1833 = vmatpush2.msra.mxu0 0.0
  %1834 = vmatprep.subr.mxu0 0.0
  %1835 = vmatpush2.msra.mxu0 0.0
  %1836 = vmatprep.subr.mxu0 0.0
  %1837 = vmatpush2.msra.mxu0 0.0
  %1838 = vmatprep.subr.mxu0 0.0
  %1839 = vmatpush2.msra.mxu0 0.0
  %1840 = vmatprep.subr.mxu0 0.0
  %1841 = vmatpush2.msra.mxu0 0.0
  %1842 = vmatprep.subr.mxu0 0.0
  %1843 = vmatpush2.msra.mxu0 0.0
  %1844 = vmatprep.subr.mxu0 0.0
  %1845 = vmatpush2.msra.mxu0 0.0
  %1846 = vmatprep.subr.mxu0 0.0
  %1847 = vmatpush2.msra.mxu0 0.0
  %1848 = vmatprep.subr.mxu0 0.0
  %1849 = vmatpush2.msra.mxu0 0.0
  %1850 = vmatprep.subr.mxu0 0.0
  %1851 = vmatpush2.msra.mxu0 0.0
  %1852 = vmatprep.subr.mxu0 0.0
  %1853 = vmatpush2.msra.mxu0 0.0
  %1854 = vmatprep.subr.mxu0 0.0
  %1855 = vmatpush2.msra.mxu0 0.0
  %1856 = vmatprep.subr.mxu0 0.0
  %1857 = vmatpush2.msra.mxu0 0.0
  %1858 = vmatprep.subr.mxu0 0.0
  %1859 = vmatpush2.msra.mxu0 0.0
  %1860 = vmatprep.subr.mxu0 0.0
  %1861 = vmatpush2.msra.mxu0 0.0
  %1862 = vmatprep.subr.mxu0 0.0
  %1863 = vmatpush2.msra.mxu0 0.0
  %1864 = vmatprep.mubr.f32.mxu0 0.0
  %1865 = vmatmul.mubr.f32.gmra.mxu0 %v1798
  %v1866 = vpop.f32.mrf.mxu0
  %v1867 = vadd.f32 %v1415, %v1866
  %v1868 = vpop.f32.mrf.mxu0
  %v1869 = vadd.f32 %v1419, %v1868
  %1870 = vdwg.mxu0
  %v1871 = vld [vmem:[%s676] sm:$0xff]
  %v1873 = vsel %vm557, %v1871, 0
  %1875 = vmatprep.subr.mxu0 0.0
  %1876 = vmatpush1.msra.mxu0 0.0
  %1877 = vmatprep.subr.mxu0 0.0
  %1878 = vmatpush1.msra.mxu0 0.0
  %1879 = vmatprep.subr.mxu0 0.0
  %1880 = vmatpush1.msra.mxu0 0.0
  %1881 = vmatprep.subr.mxu0 0.0
  %1882 = vmatpush1.msra.mxu0 0.0
  %1883 = vmatprep.subr.mxu0 0.0
  %1884 = vmatpush1.msra.mxu0 0.0
  %1885 = vmatprep.subr.mxu0 0.0
  %1886 = vmatpush1.msra.mxu0 0.0
  %1887 = vmatprep.subr.mxu0 0.0
  %1888 = vmatpush1.msra.mxu0 0.0
  %1889 = vmatprep.subr.mxu0 0.0
  %1890 = vmatpush1.msra.mxu0 0.0
  %1891 = vmatprep.subr.mxu0 %v1408
  %1892 = vmatpush1.msra.mxu0 %v1407
  %1893 = vmatprep.subr.mxu0 %v1406
  %1894 = vmatpush1.msra.mxu0 %v1405
  %1895 = vmatprep.subr.mxu0 %v1404
  %1896 = vmatpush1.msra.mxu0 %v1403
  %1897 = vmatprep.subr.mxu0 %v1402
  %1898 = vmatpush1.msra.mxu0 %v1401
  %1899 = vmatprep.subr.mxu0 %v1400
  %1900 = vmatpush1.msra.mxu0 %v1399
  %1901 = vmatprep.subr.mxu0 %v1398
  %1902 = vmatpush1.msra.mxu0 %v1397
  %1903 = vmatprep.subr.mxu0 %v1396
  %1904 = vmatpush1.msra.mxu0 %v1395
  %1905 = vmatprep.subr.mxu0 %v1394
  %1906 = vmatpush1.msra.mxu0 %v1393
  %1907 = vmatprep.subr.mxu0 0.0
  %1908 = vmatpush2.msra.mxu0 0.0
  %1909 = vmatprep.subr.mxu0 0.0
  %1910 = vmatpush2.msra.mxu0 0.0
  %1911 = vmatprep.subr.mxu0 0.0
  %1912 = vmatpush2.msra.mxu0 0.0
  %1913 = vmatprep.subr.mxu0 0.0
  %1914 = vmatpush2.msra.mxu0 0.0
  %1915 = vmatprep.subr.mxu0 0.0
  %1916 = vmatpush2.msra.mxu0 0.0
  %1917 = vmatprep.subr.mxu0 0.0
  %1918 = vmatpush2.msra.mxu0 0.0
  %1919 = vmatprep.subr.mxu0 0.0
  %1920 = vmatpush2.msra.mxu0 0.0
  %1921 = vmatprep.subr.mxu0 0.0
  %1922 = vmatpush2.msra.mxu0 0.0
  %1923 = vmatprep.subr.mxu0 0.0
  %1924 = vmatpush2.msra.mxu0 0.0
  %1925 = vmatprep.subr.mxu0 0.0
  %1926 = vmatpush2.msra.mxu0 0.0
  %1927 = vmatprep.subr.mxu0 0.0
  %1928 = vmatpush2.msra.mxu0 0.0
  %1929 = vmatprep.subr.mxu0 0.0
  %1930 = vmatpush2.msra.mxu0 0.0
  %1931 = vmatprep.subr.mxu0 0.0
  %1932 = vmatpush2.msra.mxu0 0.0
  %1933 = vmatprep.subr.mxu0 0.0
  %1934 = vmatpush2.msra.mxu0 0.0
  %1935 = vmatprep.subr.mxu0 0.0
  %1936 = vmatpush2.msra.mxu0 0.0
  %1937 = vmatprep.subr.mxu0 0.0
  %1938 = vmatpush2.msra.mxu0 0.0
  %1939 = vmatprep.mubr.f32.mxu0 0.0
  %1940 = vmatmul.mubr.f32.gmra.mxu0 %v1873
  %v1941 = vpop.f32.mrf.mxu0
  %v1942 = vadd.f32 %v1415, %v1941
  %v1943 = vpop.f32.mrf.mxu0
  %v1944 = vadd.f32 %v1419, %v1943
  %1945 = vdwg.mxu0
  %v1946 = vld [vmem:[%s552] sm:$0xff]
  %v1948 = vsel %vm557, %v1946, 0
  %1950 = vmatprep.subr.mxu0 0.0
  %1951 = vmatpush1.msra.mxu0 0.0
  %1952 = vmatprep.subr.mxu0 0.0
  %1953 = vmatpush1.msra.mxu0 0.0
  %1954 = vmatprep.subr.mxu0 0.0
  %1955 = vmatpush1.msra.mxu0 0.0
  %1956 = vmatprep.subr.mxu0 0.0
  %1957 = vmatpush1.msra.mxu0 0.0
  %1958 = vmatprep.subr.mxu0 0.0
  %1959 = vmatpush1.msra.mxu0 0.0
  %1960 = vmatprep.subr.mxu0 0.0
  %1961 = vmatpush1.msra.mxu0 0.0
  %1962 = vmatprep.subr.mxu0 0.0
  %1963 = vmatpush1.msra.mxu0 0.0
  %1964 = vmatprep.subr.mxu0 0.0
  %1965 = vmatpush1.msra.mxu0 0.0
  %1966 = vmatprep.subr.mxu0 %v1408
  %1967 = vmatpush1.msra.mxu0 %v1407
  %1968 = vmatprep.subr.mxu0 %v1406
  %1969 = vmatpush1.msra.mxu0 %v1405
  %1970 = vmatprep.subr.mxu0 %v1404
  %1971 = vmatpush1.msra.mxu0 %v1403
  %1972 = vmatprep.subr.mxu0 %v1402
  %1973 = vmatpush1.msra.mxu0 %v1401
  %1974 = vmatprep.subr.mxu0 %v1400
  %1975 = vmatpush1.msra.mxu0 %v1399
  %1976 = vmatprep.subr.mxu0 %v1398
  %1977 = vmatpush1.msra.mxu0 %v1397
  %1978 = vmatprep.subr.mxu0 %v1396
  %1979 = vmatpush1.msra.mxu0 %v1395
  %1980 = vmatprep.subr.mxu0 %v1394
  %1981 = vmatpush1.msra.mxu0 %v1393
  %1982 = vmatprep.subr.mxu0 0.0
  %1983 = vmatpush2.msra.mxu0 0.0
  %1984 = vmatprep.subr.mxu0 0.0
  %1985 = vmatpush2.msra.mxu0 0.0
  %1986 = vmatprep.subr.mxu0 0.0
  %1987 = vmatpush2.msra.mxu0 0.0
  %1988 = vmatprep.subr.mxu0 0.0
  %1989 = vmatpush2.msra.mxu0 0.0
  %1990 = vmatprep.subr.mxu0 0.0
  %1991 = vmatpush2.msra.mxu0 0.0
  %1992 = vmatprep.subr.mxu0 0.0
  %1993 = vmatpush2.msra.mxu0 0.0
  %1994 = vmatprep.subr.mxu0 0.0
  %1995 = vmatpush2.msra.mxu0 0.0
  %1996 = vmatprep.subr.mxu0 0.0
  %1997 = vmatpush2.msra.mxu0 0.0
  %1998 = vmatprep.subr.mxu0 0.0
  %1999 = vmatpush2.msra.mxu0 0.0
  %2000 = vmatprep.subr.mxu0 0.0
  %2001 = vmatpush2.msra.mxu0 0.0
  %2002 = vmatprep.subr.mxu0 0.0
  %2003 = vmatpush2.msra.mxu0 0.0
  %2004 = vmatprep.subr.mxu0 0.0
  %2005 = vmatpush2.msra.mxu0 0.0
  %2006 = vmatprep.subr.mxu0 0.0
  %2007 = vmatpush2.msra.mxu0 0.0
  %2008 = vmatprep.subr.mxu0 0.0
  %2009 = vmatpush2.msra.mxu0 0.0
  %2010 = vmatprep.subr.mxu0 0.0
  %2011 = vmatpush2.msra.mxu0 0.0
  %2012 = vmatprep.subr.mxu0 0.0
  %2013 = vmatpush2.msra.mxu0 0.0
  %2014 = vmatprep.mubr.f32.mxu0 0.0
  %2015 = vmatmul.mubr.f32.gmra.mxu0 %v1948
  %v2016 = vpop.f32.mrf.mxu0
  %v2017 = vadd.f32 %v1415, %v2016
  %v2018 = vpop.f32.mrf.mxu0
  %v2019 = vadd.f32 %v1419, %v2018
  %2020 = vdwg.mxu0
  %v2021 = vsel %vm118, %v1492, %v2017
  %v2022 = vsel %vm119, %v1494, %v2019
  %2023 = vst [vmem:[#allocation2] sm:$0xff] %v2021
  %2024 = vst [vmem:[#allocation2 + $0x8] sm:$0xff] %v2022
  %v2025 = vsel %vm118, %v1567, %v1942
  %v2026 = vsel %vm119, %v1569, %v1944
  %2027 = vst [vmem:[%s473] sm:$0xff] %v2025
  %2028 = vst [vmem:[%s473 + $0x8] sm:$0xff] %v2026
  %v2029 = vsel %vm118, %v1642, %v1867
  %v2030 = vsel %vm119, %v1644, %v1869
  %2031 = vst [vmem:[%s478] sm:$0xff] %v2029
  %2032 = vst [vmem:[%s478 + $0x8] sm:$0xff] %v2030
  %v2033 = vsel %vm118, %v1717, %v1792
  %v2034 = vsel %vm119, %v1719, %v1794
  %2035 = vst [vmem:[%s483] sm:$0xff] %v2033
  %2036 = vst [vmem:[%s483 + $0x8] sm:$0xff] %v2034
  %v2037 = vsel %vm118, %v1792, %v1717
  %v2038 = vsel %vm119, %v1794, %v1719
  %2039 = vst [vmem:[%s488] sm:$0xff] %v2037
  %2040 = vst [vmem:[%s488 + $0x8] sm:$0xff] %v2038
  %v2041 = vsel %vm118, %v1867, %v1642
  %v2042 = vsel %vm119, %v1869, %v1644
  %2043 = vst [vmem:[%s493] sm:$0xff] %v2041
  %2044 = vst [vmem:[%s493 + $0x8] sm:$0xff] %v2042
  %v2045 = vsel %vm118, %v1942, %v1567
  %v2046 = vsel %vm119, %v1944, %v1569
  %2047 = vst [vmem:[%s498] sm:$0xff] %v2045
  %2048 = vst [vmem:[%s498 + $0x8] sm:$0xff] %v2046
  %v2049 = vsel %vm118, %v2017, %v1492
  %v2050 = vsel %vm119, %v2019, %v1494
  %2051 = vst [vmem:[%s503] sm:$0xff] %v2049
  %2052 = vst [vmem:[%s503 + $0x8] sm:$0xff] %v2050
  %v2053 = vld [vmem:[%s7] sm:$0xff]
  %v2054 = vld [vmem:[%s7 + $0x8] sm:$0xff]
  %v2055 = vld [vmem:[%s7 + $0x10] sm:$0xff]
  %v2056 = vld [vmem:[%s7 + $0x18] sm:$0xff]
  %v2057 = vld [vmem:[%s7 + $0x20] sm:$0xff]
  %v2058 = vld [vmem:[%s7 + $0x28] sm:$0xff]
  %v2059 = vld [vmem:[%s7 + $0x30] sm:$0xff]
  %v2060 = vld [vmem:[%s7 + $0x38] sm:$0xff]
  %v2061 = vld [vmem:[%s7 + $0x40] sm:$0xff]
  %v2062 = vld [vmem:[%s7 + $0x48] sm:$0xff]
  %v2063 = vld [vmem:[%s7 + $0x50] sm:$0xff]
  %v2064 = vld [vmem:[%s7 + $0x58] sm:$0xff]
  %v2065 = vld [vmem:[%s7 + $0x60] sm:$0xff]
  %v2066 = vld [vmem:[%s7 + $0x68] sm:$0xff]
  %v2067 = vld [vmem:[%s7 + $0x70] sm:$0xff]
  %v2068 = vld [vmem:[%s7 + $0x78] sm:$0xff]
  %v2069 = vld [vmem:[#allocation2] sm:$0xff]
  %v2070 = vld [vmem:[#allocation2 + $0x8] sm:$0xff]
  %v2071 = vxor.u32 %v2069, 2147483648
  %v2072 = vmul.f32 %v2071, 1.442695
  %v2073 = vpow.pop %v2072
  %v2074 = vadd.f32 %v2073, 1.0
  %v2075 = vrcp.pop %v2074
  %v2076 = vmul.f32 1.0, %v2075
  %v2077 = vtanh.pop %v2070
  %v2078 = vxor.u32 %v2070, 2147483648
  %v2079 = vmul.f32 %v2078, 1.442695
  %v2080 = vpow.pop %v2079
  %v2081 = vadd.f32 %v2080, 1.0
  %v2082 = vrcp.pop %v2081
  %v2083 = vmul.f32 1.0, %v2082
  %v2084 = vmul.f32 %v2076, %v2077
  %v2085 = vtanh.pop %v2084
  %2087 = vrot.lane.b32.xlu0 %v2085, 64
  %v2088 = vpop.permute.xlu0 %2087
  %v2090 = vmul.f32 %v2083, %v2088
  %2092 = vrot.lane.b32.xlu0 %v2090, 64
  %v2093 = vpop.permute.xlu0 %2092
  %v2095 = vmul.f32 %v79, %v2093
  %v2096 = vmul.f32 %v79, %v2084
  %2097 = vst.msk [vmem:[#allocation3] sm:$0xff] %vm550, %v2095
  %2098 = vst.msk [vmem:[%s552] sm:$0xff] %vm553, %v2095
  %v2099 = vld [vmem:[%s473] sm:$0xff]
  %v2100 = vld [vmem:[%s473 + $0x8] sm:$0xff]
  %v2102 = vsel %vm557, %v2095, 0
  %2104 = vmatprep.subr.mxu0 0.0
  %2105 = vmatpush1.msra.mxu0 0.0
  %2106 = vmatprep.subr.mxu0 0.0
  %2107 = vmatpush1.msra.mxu0 0.0
  %2108 = vmatprep.subr.mxu0 0.0
  %2109 = vmatpush1.msra.mxu0 0.0
  %2110 = vmatprep.subr.mxu0 0.0
  %2111 = vmatpush1.msra.mxu0 0.0
  %2112 = vmatprep.subr.mxu0 0.0
  %2113 = vmatpush1.msra.mxu0 0.0
  %2114 = vmatprep.subr.mxu0 0.0
  %2115 = vmatpush1.msra.mxu0 0.0
  %2116 = vmatprep.subr.mxu0 0.0
  %2117 = vmatpush1.msra.mxu0 0.0
  %2118 = vmatprep.subr.mxu0 0.0
  %2119 = vmatpush1.msra.mxu0 0.0
  %2120 = vmatprep.subr.mxu0 %v2068
  %2121 = vmatpush1.msra.mxu0 %v2067
  %2122 = vmatprep.subr.mxu0 %v2066
  %2123 = vmatpush1.msra.mxu0 %v2065
  %2124 = vmatprep.subr.mxu0 %v2064
  %2125 = vmatpush1.msra.mxu0 %v2063
  %2126 = vmatprep.subr.mxu0 %v2062
  %2127 = vmatpush1.msra.mxu0 %v2061
  %2128 = vmatprep.subr.mxu0 %v2060
  %2129 = vmatpush1.msra.mxu0 %v2059
  %2130 = vmatprep.subr.mxu0 %v2058
  %2131 = vmatpush1.msra.mxu0 %v2057
  %2132 = vmatprep.subr.mxu0 %v2056
  %2133 = vmatpush1.msra.mxu0 %v2055
  %2134 = vmatprep.subr.mxu0 %v2054
  %2135 = vmatpush1.msra.mxu0 %v2053
  %2136 = vmatprep.subr.mxu0 0.0
  %2137 = vmatpush2.msra.mxu0 0.0
  %2138 = vmatprep.subr.mxu0 0.0
  %2139 = vmatpush2.msra.mxu0 0.0
  %2140 = vmatprep.subr.mxu0 0.0
  %2141 = vmatpush2.msra.mxu0 0.0
  %2142 = vmatprep.subr.mxu0 0.0
  %2143 = vmatpush2.msra.mxu0 0.0
  %2144 = vmatprep.subr.mxu0 0.0
  %2145 = vmatpush2.msra.mxu0 0.0
  %2146 = vmatprep.subr.mxu0 0.0
  %2147 = vmatpush2.msra.mxu0 0.0
  %2148 = vmatprep.subr.mxu0 0.0
  %2149 = vmatpush2.msra.mxu0 0.0
  %2150 = vmatprep.subr.mxu0 0.0
  %2151 = vmatpush2.msra.mxu0 0.0
  %2152 = vmatprep.subr.mxu0 0.0
  %2153 = vmatpush2.msra.mxu0 0.0
  %2154 = vmatprep.subr.mxu0 0.0
  %2155 = vmatpush2.msra.mxu0 0.0
  %2156 = vmatprep.subr.mxu0 0.0
  %2157 = vmatpush2.msra.mxu0 0.0
  %2158 = vmatprep.subr.mxu0 0.0
  %2159 = vmatpush2.msra.mxu0 0.0
  %2160 = vmatprep.subr.mxu0 0.0
  %2161 = vmatpush2.msra.mxu0 0.0
  %2162 = vmatprep.subr.mxu0 0.0
  %2163 = vmatpush2.msra.mxu0 0.0
  %2164 = vmatprep.subr.mxu0 0.0
  %2165 = vmatpush2.msra.mxu0 0.0
  %2166 = vmatprep.subr.mxu0 0.0
  %2167 = vmatpush2.msra.mxu0 0.0
  %2168 = vmatprep.mubr.f32.mxu0 0.0
  %2169 = vmatmul.mubr.f32.gmra.mxu0 %v2102
  %v2170 = vpop.f32.mrf.mxu0
  %v2171 = vadd.f32 0.0, %v2170
  %v2172 = vpop.f32.mrf.mxu0
  %v2173 = vadd.f32 0.0, %v2172
  %2174 = vdwg.mxu0
  %v2175 = vadd.f32 %v2099, %v2171
  %v2176 = vadd.f32 %v2100, %v2173
  %v2177 = vxor.u32 %v2175, 2147483648
  %v2178 = vmul.f32 %v2177, 1.442695
  %v2179 = vpow.pop %v2178
  %v2180 = vadd.f32 %v2179, 1.0
  %v2181 = vrcp.pop %v2180
  %v2182 = vmul.f32 1.0, %v2181
  %v2183 = vtanh.pop %v2176
  %v2184 = vxor.u32 %v2176, 2147483648
  %v2185 = vmul.f32 %v2184, 1.442695
  %v2186 = vpow.pop %v2185
  %v2187 = vadd.f32 %v2186, 1.0
  %v2188 = vrcp.pop %v2187
  %v2189 = vmul.f32 1.0, %v2188
  %2191 = vrot.lane.b32.xlu0 %v2096, 64
  %v2192 = vpop.permute.xlu0 %2191
  %v2194 = vmul.f32 %v2182, %v2192
  %v2195 = vmul.f32 %v2182, %v2183
  %2197 = vrot.lane.b32.xlu0 %v2195, 64
  %v2198 = vpop.permute.xlu0 %2197
  %v2200 = vadd.f32 %v2194, %v2198
  %v2201 = vtanh.pop %v2200
  %v2202 = vmul.f32 %v2189, %v2201
  %2204 = vrot.lane.b32.xlu0 %v2202, 64
  %v2205 = vpop.permute.xlu0 %2204
  %v2207 = vmul.f32 %v80, %v2205
  %2209 = vrot.lane.b32.xlu0 %v2200, 64
  %v2210 = vpop.permute.xlu0 %2209
  %v2212 = vmul.f32 %v80, %v2210
  %v2213 = vmul.f32 %v87, %v2096
  %v2214 = vadd.f32 %v2212, %v2213
  %v2215 = vmul.f32 %v87, %v2095
  %v2216 = vadd.f32 %v2207, %v2215
  %2217 = vst.msk [vmem:[%s674] sm:$0xff] %vm550, %v2207
  %2218 = vst.msk [vmem:[%s676] sm:$0xff] %vm553, %v2207
  %v2219 = vld [vmem:[%s478] sm:$0xff]
  %v2220 = vld [vmem:[%s478 + $0x8] sm:$0xff]
  %v2222 = vsel %vm557, %v2216, 0
  %2224 = vmatprep.subr.mxu0 0.0
  %2225 = vmatpush1.msra.mxu0 0.0
  %2226 = vmatprep.subr.mxu0 0.0
  %2227 = vmatpush1.msra.mxu0 0.0
  %2228 = vmatprep.subr.mxu0 0.0
  %2229 = vmatpush1.msra.mxu0 0.0
  %2230 = vmatprep.subr.mxu0 0.0
  %2231 = vmatpush1.msra.mxu0 0.0
  %2232 = vmatprep.subr.mxu0 0.0
  %2233 = vmatpush1.msra.mxu0 0.0
  %2234 = vmatprep.subr.mxu0 0.0
  %2235 = vmatpush1.msra.mxu0 0.0
  %2236 = vmatprep.subr.mxu0 0.0
  %2237 = vmatpush1.msra.mxu0 0.0
  %2238 = vmatprep.subr.mxu0 0.0
  %2239 = vmatpush1.msra.mxu0 0.0
  %2240 = vmatprep.subr.mxu0 %v2068
  %2241 = vmatpush1.msra.mxu0 %v2067
  %2242 = vmatprep.subr.mxu0 %v2066
  %2243 = vmatpush1.msra.mxu0 %v2065
  %2244 = vmatprep.subr.mxu0 %v2064
  %2245 = vmatpush1.msra.mxu0 %v2063
  %2246 = vmatprep.subr.mxu0 %v2062
  %2247 = vmatpush1.msra.mxu0 %v2061
  %2248 = vmatprep.subr.mxu0 %v2060
  %2249 = vmatpush1.msra.mxu0 %v2059
  %2250 = vmatprep.subr.mxu0 %v2058
  %2251 = vmatpush1.msra.mxu0 %v2057
  %2252 = vmatprep.subr.mxu0 %v2056
  %2253 = vmatpush1.msra.mxu0 %v2055
  %2254 = vmatprep.subr.mxu0 %v2054
  %2255 = vmatpush1.msra.mxu0 %v2053
  %2256 = vmatprep.subr.mxu0 0.0
  %2257 = vmatpush2.msra.mxu0 0.0
  %2258 = vmatprep.subr.mxu0 0.0
  %2259 = vmatpush2.msra.mxu0 0.0
  %2260 = vmatprep.subr.mxu0 0.0
  %2261 = vmatpush2.msra.mxu0 0.0
  %2262 = vmatprep.subr.mxu0 0.0
  %2263 = vmatpush2.msra.mxu0 0.0
  %2264 = vmatprep.subr.mxu0 0.0
  %2265 = vmatpush2.msra.mxu0 0.0
  %2266 = vmatprep.subr.mxu0 0.0
  %2267 = vmatpush2.msra.mxu0 0.0
  %2268 = vmatprep.subr.mxu0 0.0
  %2269 = vmatpush2.msra.mxu0 0.0
  %2270 = vmatprep.subr.mxu0 0.0
  %2271 = vmatpush2.msra.mxu0 0.0
  %2272 = vmatprep.subr.mxu0 0.0
  %2273 = vmatpush2.msra.mxu0 0.0
  %2274 = vmatprep.subr.mxu0 0.0
  %2275 = vmatpush2.msra.mxu0 0.0
  %2276 = vmatprep.subr.mxu0 0.0
  %2277 = vmatpush2.msra.mxu0 0.0
  %2278 = vmatprep.subr.mxu0 0.0
  %2279 = vmatpush2.msra.mxu0 0.0
  %2280 = vmatprep.subr.mxu0 0.0
  %2281 = vmatpush2.msra.mxu0 0.0
  %2282 = vmatprep.subr.mxu0 0.0
  %2283 = vmatpush2.msra.mxu0 0.0
  %2284 = vmatprep.subr.mxu0 0.0
  %2285 = vmatpush2.msra.mxu0 0.0
  %2286 = vmatprep.subr.mxu0 0.0
  %2287 = vmatpush2.msra.mxu0 0.0
  %2288 = vmatprep.mubr.f32.mxu0 0.0
  %2289 = vmatmul.mubr.f32.gmra.mxu0 %v2222
  %v2290 = vpop.f32.mrf.mxu0
  %v2291 = vadd.f32 0.0, %v2290
  %v2292 = vpop.f32.mrf.mxu0
  %v2293 = vadd.f32 0.0, %v2292
  %2294 = vdwg.mxu0
  %v2295 = vadd.f32 %v2219, %v2291
  %v2296 = vadd.f32 %v2220, %v2293
  %v2297 = vxor.u32 %v2295, 2147483648
  %v2298 = vmul.f32 %v2297, 1.442695
  %v2299 = vpow.pop %v2298
  %v2300 = vadd.f32 %v2299, 1.0
  %v2301 = vrcp.pop %v2300
  %v2302 = vmul.f32 1.0, %v2301
  %v2303 = vtanh.pop %v2296
  %v2304 = vxor.u32 %v2296, 2147483648
  %v2305 = vmul.f32 %v2304, 1.442695
  %v2306 = vpow.pop %v2305
  %v2307 = vadd.f32 %v2306, 1.0
  %v2308 = vrcp.pop %v2307
  %v2309 = vmul.f32 1.0, %v2308
  %2311 = vrot.lane.b32.xlu0 %v2214, 64
  %v2312 = vpop.permute.xlu0 %2311
  %v2314 = vmul.f32 %v2302, %v2312
  %v2315 = vmul.f32 %v2302, %v2303
  %2317 = vrot.lane.b32.xlu0 %v2315, 64
  %v2318 = vpop.permute.xlu0 %2317
  %v2320 = vadd.f32 %v2314, %v2318
  %v2321 = vtanh.pop %v2320
  %v2322 = vmul.f32 %v2309, %v2321
  %2324 = vrot.lane.b32.xlu0 %v2322, 64
  %v2325 = vpop.permute.xlu0 %2324
  %v2327 = vmul.f32 %v81, %v2325
  %2329 = vrot.lane.b32.xlu0 %v2320, 64
  %v2330 = vpop.permute.xlu0 %2329
  %v2332 = vmul.f32 %v81, %v2330
  %v2333 = vmul.f32 %v88, %v2214
  %v2334 = vadd.f32 %v2332, %v2333
  %v2335 = vmul.f32 %v88, %v2216
  %v2336 = vadd.f32 %v2327, %v2335
  %2337 = vst.msk [vmem:[%s796] sm:$0xff] %vm550, %v2327
  %2338 = vst.msk [vmem:[%s798] sm:$0xff] %vm553, %v2327
  %v2339 = vld [vmem:[%s483] sm:$0xff]
  %v2340 = vld [vmem:[%s483 + $0x8] sm:$0xff]
  %v2342 = vsel %vm557, %v2336, 0
  %2344 = vmatprep.subr.mxu0 0.0
  %2345 = vmatpush1.msra.mxu0 0.0
  %2346 = vmatprep.subr.mxu0 0.0
  %2347 = vmatpush1.msra.mxu0 0.0
  %2348 = vmatprep.subr.mxu0 0.0
  %2349 = vmatpush1.msra.mxu0 0.0
  %2350 = vmatprep.subr.mxu0 0.0
  %2351 = vmatpush1.msra.mxu0 0.0
  %2352 = vmatprep.subr.mxu0 0.0
  %2353 = vmatpush1.msra.mxu0 0.0
  %2354 = vmatprep.subr.mxu0 0.0
  %2355 = vmatpush1.msra.mxu0 0.0
  %2356 = vmatprep.subr.mxu0 0.0
  %2357 = vmatpush1.msra.mxu0 0.0
  %2358 = vmatprep.subr.mxu0 0.0
  %2359 = vmatpush1.msra.mxu0 0.0
  %2360 = vmatprep.subr.mxu0 %v2068
  %2361 = vmatpush1.msra.mxu0 %v2067
  %2362 = vmatprep.subr.mxu0 %v2066
  %2363 = vmatpush1.msra.mxu0 %v2065
  %2364 = vmatprep.subr.mxu0 %v2064
  %2365 = vmatpush1.msra.mxu0 %v2063
  %2366 = vmatprep.subr.mxu0 %v2062
  %2367 = vmatpush1.msra.mxu0 %v2061
  %2368 = vmatprep.subr.mxu0 %v2060
  %2369 = vmatpush1.msra.mxu0 %v2059
  %2370 = vmatprep.subr.mxu0 %v2058
  %2371 = vmatpush1.msra.mxu0 %v2057
  %2372 = vmatprep.subr.mxu0 %v2056
  %2373 = vmatpush1.msra.mxu0 %v2055
  %2374 = vmatprep.subr.mxu0 %v2054
  %2375 = vmatpush1.msra.mxu0 %v2053
  %2376 = vmatprep.subr.mxu0 0.0
  %2377 = vmatpush2.msra.mxu0 0.0
  %2378 = vmatprep.subr.mxu0 0.0
  %2379 = vmatpush2.msra.mxu0 0.0
  %2380 = vmatprep.subr.mxu0 0.0
  %2381 = vmatpush2.msra.mxu0 0.0
  %2382 = vmatprep.subr.mxu0 0.0
  %2383 = vmatpush2.msra.mxu0 0.0
  %2384 = vmatprep.subr.mxu0 0.0
  %2385 = vmatpush2.msra.mxu0 0.0
  %2386 = vmatprep.subr.mxu0 0.0
  %2387 = vmatpush2.msra.mxu0 0.0
  %2388 = vmatprep.subr.mxu0 0.0
  %2389 = vmatpush2.msra.mxu0 0.0
  %2390 = vmatprep.subr.mxu0 0.0
  %2391 = vmatpush2.msra.mxu0 0.0
  %2392 = vmatprep.subr.mxu0 0.0
  %2393 = vmatpush2.msra.mxu0 0.0
  %2394 = vmatprep.subr.mxu0 0.0
  %2395 = vmatpush2.msra.mxu0 0.0
  %2396 = vmatprep.subr.mxu0 0.0
  %2397 = vmatpush2.msra.mxu0 0.0
  %2398 = vmatprep.subr.mxu0 0.0
  %2399 = vmatpush2.msra.mxu0 0.0
  %2400 = vmatprep.subr.mxu0 0.0
  %2401 = vmatpush2.msra.mxu0 0.0
  %2402 = vmatprep.subr.mxu0 0.0
  %2403 = vmatpush2.msra.mxu0 0.0
  %2404 = vmatprep.subr.mxu0 0.0
  %2405 = vmatpush2.msra.mxu0 0.0
  %2406 = vmatprep.subr.mxu0 0.0
  %2407 = vmatpush2.msra.mxu0 0.0
  %2408 = vmatprep.mubr.f32.mxu0 0.0
  %2409 = vmatmul.mubr.f32.gmra.mxu0 %v2342
  %v2410 = vpop.f32.mrf.mxu0
  %v2411 = vadd.f32 0.0, %v2410
  %v2412 = vpop.f32.mrf.mxu0
  %v2413 = vadd.f32 0.0, %v2412
  %2414 = vdwg.mxu0
  %v2415 = vadd.f32 %v2339, %v2411
  %v2416 = vadd.f32 %v2340, %v2413
  %v2417 = vxor.u32 %v2415, 2147483648
  %v2418 = vmul.f32 %v2417, 1.442695
  %v2419 = vpow.pop %v2418
  %v2420 = vadd.f32 %v2419, 1.0
  %v2421 = vrcp.pop %v2420
  %v2422 = vmul.f32 1.0, %v2421
  %v2423 = vtanh.pop %v2416
  %v2424 = vxor.u32 %v2416, 2147483648
  %v2425 = vmul.f32 %v2424, 1.442695
  %v2426 = vpow.pop %v2425
  %v2427 = vadd.f32 %v2426, 1.0
  %v2428 = vrcp.pop %v2427
  %v2429 = vmul.f32 1.0, %v2428
  %2431 = vrot.lane.b32.xlu0 %v2334, 64
  %v2432 = vpop.permute.xlu0 %2431
  %v2434 = vmul.f32 %v2422, %v2432
  %v2435 = vmul.f32 %v2422, %v2423
  %2437 = vrot.lane.b32.xlu0 %v2435, 64
  %v2438 = vpop.permute.xlu0 %2437
  %v2440 = vadd.f32 %v2434, %v2438
  %v2441 = vtanh.pop %v2440
  %v2442 = vmul.f32 %v2429, %v2441
  %2444 = vrot.lane.b32.xlu0 %v2442, 64
  %v2445 = vpop.permute.xlu0 %2444
  %v2447 = vmul.f32 %v82, %v2445
  %2449 = vrot.lane.b32.xlu0 %v2440, 64
  %v2450 = vpop.permute.xlu0 %2449
  %v2452 = vmul.f32 %v82, %v2450
  %v2453 = vmul.f32 %v89, %v2334
  %v2454 = vadd.f32 %v2452, %v2453
  %v2455 = vmul.f32 %v89, %v2336
  %v2456 = vadd.f32 %v2447, %v2455
  %2457 = vst.msk [vmem:[%s918] sm:$0xff] %vm550, %v2447
  %2458 = vst.msk [vmem:[%s920] sm:$0xff] %vm553, %v2447
  %v2459 = vld [vmem:[%s488] sm:$0xff]
  %v2460 = vld [vmem:[%s488 + $0x8] sm:$0xff]
  %v2462 = vsel %vm557, %v2456, 0
  %2464 = vmatprep.subr.mxu0 0.0
  %2465 = vmatpush1.msra.mxu0 0.0
  %2466 = vmatprep.subr.mxu0 0.0
  %2467 = vmatpush1.msra.mxu0 0.0
  %2468 = vmatprep.subr.mxu0 0.0
  %2469 = vmatpush1.msra.mxu0 0.0
  %2470 = vmatprep.subr.mxu0 0.0
  %2471 = vmatpush1.msra.mxu0 0.0
  %2472 = vmatprep.subr.mxu0 0.0
  %2473 = vmatpush1.msra.mxu0 0.0
  %2474 = vmatprep.subr.mxu0 0.0
  %2475 = vmatpush1.msra.mxu0 0.0
  %2476 = vmatprep.subr.mxu0 0.0
  %2477 = vmatpush1.msra.mxu0 0.0
  %2478 = vmatprep.subr.mxu0 0.0
  %2479 = vmatpush1.msra.mxu0 0.0
  %2480 = vmatprep.subr.mxu0 %v2068
  %2481 = vmatpush1.msra.mxu0 %v2067
  %2482 = vmatprep.subr.mxu0 %v2066
  %2483 = vmatpush1.msra.mxu0 %v2065
  %2484 = vmatprep.subr.mxu0 %v2064
  %2485 = vmatpush1.msra.mxu0 %v2063
  %2486 = vmatprep.subr.mxu0 %v2062
  %2487 = vmatpush1.msra.mxu0 %v2061
  %2488 = vmatprep.subr.mxu0 %v2060
  %2489 = vmatpush1.msra.mxu0 %v2059
  %2490 = vmatprep.subr.mxu0 %v2058
  %2491 = vmatpush1.msra.mxu0 %v2057
  %2492 = vmatprep.subr.mxu0 %v2056
  %2493 = vmatpush1.msra.mxu0 %v2055
  %2494 = vmatprep.subr.mxu0 %v2054
  %2495 = vmatpush1.msra.mxu0 %v2053
  %2496 = vmatprep.subr.mxu0 0.0
  %2497 = vmatpush2.msra.mxu0 0.0
  %2498 = vmatprep.subr.mxu0 0.0
  %2499 = vmatpush2.msra.mxu0 0.0
  %2500 = vmatprep.subr.mxu0 0.0
  %2501 = vmatpush2.msra.mxu0 0.0
  %2502 = vmatprep.subr.mxu0 0.0
  %2503 = vmatpush2.msra.mxu0 0.0
  %2504 = vmatprep.subr.mxu0 0.0
  %2505 = vmatpush2.msra.mxu0 0.0
  %2506 = vmatprep.subr.mxu0 0.0
  %2507 = vmatpush2.msra.mxu0 0.0
  %2508 = vmatprep.subr.mxu0 0.0
  %2509 = vmatpush2.msra.mxu0 0.0
  %2510 = vmatprep.subr.mxu0 0.0
  %2511 = vmatpush2.msra.mxu0 0.0
  %2512 = vmatprep.subr.mxu0 0.0
  %2513 = vmatpush2.msra.mxu0 0.0
  %2514 = vmatprep.subr.mxu0 0.0
  %2515 = vmatpush2.msra.mxu0 0.0
  %2516 = vmatprep.subr.mxu0 0.0
  %2517 = vmatpush2.msra.mxu0 0.0
  %2518 = vmatprep.subr.mxu0 0.0
  %2519 = vmatpush2.msra.mxu0 0.0
  %2520 = vmatprep.subr.mxu0 0.0
  %2521 = vmatpush2.msra.mxu0 0.0
  %2522 = vmatprep.subr.mxu0 0.0
  %2523 = vmatpush2.msra.mxu0 0.0
  %2524 = vmatprep.subr.mxu0 0.0
  %2525 = vmatpush2.msra.mxu0 0.0
  %2526 = vmatprep.subr.mxu0 0.0
  %2527 = vmatpush2.msra.mxu0 0.0
  %2528 = vmatprep.mubr.f32.mxu0 0.0
  %2529 = vmatmul.mubr.f32.gmra.mxu0 %v2462
  %v2530 = vpop.f32.mrf.mxu0
  %v2531 = vadd.f32 0.0, %v2530
  %v2532 = vpop.f32.mrf.mxu0
  %v2533 = vadd.f32 0.0, %v2532
  %2534 = vdwg.mxu0
  %v2535 = vadd.f32 %v2459, %v2531
  %v2536 = vadd.f32 %v2460, %v2533
  %v2537 = vxor.u32 %v2535, 2147483648
  %v2538 = vmul.f32 %v2537, 1.442695
  %v2539 = vpow.pop %v2538
  %v2540 = vadd.f32 %v2539, 1.0
  %v2541 = vrcp.pop %v2540
  %v2542 = vmul.f32 1.0, %v2541
  %v2543 = vtanh.pop %v2536
  %v2544 = vxor.u32 %v2536, 2147483648
  %v2545 = vmul.f32 %v2544, 1.442695
  %v2546 = vpow.pop %v2545
  %v2547 = vadd.f32 %v2546, 1.0
  %v2548 = vrcp.pop %v2547
  %v2549 = vmul.f32 1.0, %v2548
  %2551 = vrot.lane.b32.xlu0 %v2454, 64
  %v2552 = vpop.permute.xlu0 %2551
  %v2554 = vmul.f32 %v2542, %v2552
  %v2555 = vmul.f32 %v2542, %v2543
  %2557 = vrot.lane.b32.xlu0 %v2555, 64
  %v2558 = vpop.permute.xlu0 %2557
  %v2560 = vadd.f32 %v2554, %v2558
  %v2561 = vtanh.pop %v2560
  %v2562 = vmul.f32 %v2549, %v2561
  %2564 = vrot.lane.b32.xlu0 %v2562, 64
  %v2565 = vpop.permute.xlu0 %2564
  %v2567 = vmul.f32 %v83, %v2565
  %2569 = vrot.lane.b32.xlu0 %v2560, 64
  %v2570 = vpop.permute.xlu0 %2569
  %v2572 = vmul.f32 %v83, %v2570
  %v2573 = vmul.f32 %v90, %v2454
  %v2574 = vadd.f32 %v2572, %v2573
  %v2575 = vmul.f32 %v90, %v2456
  %v2576 = vadd.f32 %v2567, %v2575
  %2577 = vst.msk [vmem:[%s920] sm:$0xff] %vm550, %v2567
  %2578 = vst.msk [vmem:[%s918] sm:$0xff] %vm553, %v2567
  %v2579 = vld [vmem:[%s493] sm:$0xff]
  %v2580 = vld [vmem:[%s493 + $0x8] sm:$0xff]
  %v2582 = vsel %vm557, %v2576, 0
  %2584 = vmatprep.subr.mxu0 0.0
  %2585 = vmatpush1.msra.mxu0 0.0
  %2586 = vmatprep.subr.mxu0 0.0
  %2587 = vmatpush1.msra.mxu0 0.0
  %2588 = vmatprep.subr.mxu0 0.0
  %2589 = vmatpush1.msra.mxu0 0.0
  %2590 = vmatprep.subr.mxu0 0.0
  %2591 = vmatpush1.msra.mxu0 0.0
  %2592 = vmatprep.subr.mxu0 0.0
  %2593 = vmatpush1.msra.mxu0 0.0
  %2594 = vmatprep.subr.mxu0 0.0
  %2595 = vmatpush1.msra.mxu0 0.0
  %2596 = vmatprep.subr.mxu0 0.0
  %2597 = vmatpush1.msra.mxu0 0.0
  %2598 = vmatprep.subr.mxu0 0.0
  %2599 = vmatpush1.msra.mxu0 0.0
  %2600 = vmatprep.subr.mxu0 %v2068
  %2601 = vmatpush1.msra.mxu0 %v2067
  %2602 = vmatprep.subr.mxu0 %v2066
  %2603 = vmatpush1.msra.mxu0 %v2065
  %2604 = vmatprep.subr.mxu0 %v2064
  %2605 = vmatpush1.msra.mxu0 %v2063
  %2606 = vmatprep.subr.mxu0 %v2062
  %2607 = vmatpush1.msra.mxu0 %v2061
  %2608 = vmatprep.subr.mxu0 %v2060
  %2609 = vmatpush1.msra.mxu0 %v2059
  %2610 = vmatprep.subr.mxu0 %v2058
  %2611 = vmatpush1.msra.mxu0 %v2057
  %2612 = vmatprep.subr.mxu0 %v2056
  %2613 = vmatpush1.msra.mxu0 %v2055
  %2614 = vmatprep.subr.mxu0 %v2054
  %2615 = vmatpush1.msra.mxu0 %v2053
  %2616 = vmatprep.subr.mxu0 0.0
  %2617 = vmatpush2.msra.mxu0 0.0
  %2618 = vmatprep.subr.mxu0 0.0
  %2619 = vmatpush2.msra.mxu0 0.0
  %2620 = vmatprep.subr.mxu0 0.0
  %2621 = vmatpush2.msra.mxu0 0.0
  %2622 = vmatprep.subr.mxu0 0.0
  %2623 = vmatpush2.msra.mxu0 0.0
  %2624 = vmatprep.subr.mxu0 0.0
  %2625 = vmatpush2.msra.mxu0 0.0
  %2626 = vmatprep.subr.mxu0 0.0
  %2627 = vmatpush2.msra.mxu0 0.0
  %2628 = vmatprep.subr.mxu0 0.0
  %2629 = vmatpush2.msra.mxu0 0.0
  %2630 = vmatprep.subr.mxu0 0.0
  %2631 = vmatpush2.msra.mxu0 0.0
  %2632 = vmatprep.subr.mxu0 0.0
  %2633 = vmatpush2.msra.mxu0 0.0
  %2634 = vmatprep.subr.mxu0 0.0
  %2635 = vmatpush2.msra.mxu0 0.0
  %2636 = vmatprep.subr.mxu0 0.0
  %2637 = vmatpush2.msra.mxu0 0.0
  %2638 = vmatprep.subr.mxu0 0.0
  %2639 = vmatpush2.msra.mxu0 0.0
  %2640 = vmatprep.subr.mxu0 0.0
  %2641 = vmatpush2.msra.mxu0 0.0
  %2642 = vmatprep.subr.mxu0 0.0
  %2643 = vmatpush2.msra.mxu0 0.0
  %2644 = vmatprep.subr.mxu0 0.0
  %2645 = vmatpush2.msra.mxu0 0.0
  %2646 = vmatprep.subr.mxu0 0.0
  %2647 = vmatpush2.msra.mxu0 0.0
  %2648 = vmatprep.mubr.f32.mxu0 0.0
  %2649 = vmatmul.mubr.f32.gmra.mxu0 %v2582
  %v2650 = vpop.f32.mrf.mxu0
  %v2651 = vadd.f32 0.0, %v2650
  %v2652 = vpop.f32.mrf.mxu0
  %v2653 = vadd.f32 0.0, %v2652
  %2654 = vdwg.mxu0
  %v2655 = vadd.f32 %v2579, %v2651
  %v2656 = vadd.f32 %v2580, %v2653
  %v2657 = vxor.u32 %v2655, 2147483648
  %v2658 = vmul.f32 %v2657, 1.442695
  %v2659 = vpow.pop %v2658
  %v2660 = vadd.f32 %v2659, 1.0
  %v2661 = vrcp.pop %v2660
  %v2662 = vmul.f32 1.0, %v2661
  %v2663 = vtanh.pop %v2656
  %v2664 = vxor.u32 %v2656, 2147483648
  %v2665 = vmul.f32 %v2664, 1.442695
  %v2666 = vpow.pop %v2665
  %v2667 = vadd.f32 %v2666, 1.0
  %v2668 = vrcp.pop %v2667
  %v2669 = vmul.f32 1.0, %v2668
  %2671 = vrot.lane.b32.xlu0 %v2574, 64
  %v2672 = vpop.permute.xlu0 %2671
  %v2674 = vmul.f32 %v2662, %v2672
  %v2675 = vmul.f32 %v2662, %v2663
  %2677 = vrot.lane.b32.xlu0 %v2675, 64
  %v2678 = vpop.permute.xlu0 %2677
  %v2680 = vadd.f32 %v2674, %v2678
  %v2681 = vtanh.pop %v2680
  %v2682 = vmul.f32 %v2669, %v2681
  %2684 = vrot.lane.b32.xlu0 %v2682, 64
  %v2685 = vpop.permute.xlu0 %2684
  %v2687 = vmul.f32 %v84, %v2685
  %2689 = vrot.lane.b32.xlu0 %v2680, 64
  %v2690 = vpop.permute.xlu0 %2689
  %v2692 = vmul.f32 %v84, %v2690
  %v2693 = vmul.f32 %v91, %v2574
  %v2694 = vadd.f32 %v2692, %v2693
  %v2695 = vmul.f32 %v91, %v2576
  %v2696 = vadd.f32 %v2687, %v2695
  %2697 = vst.msk [vmem:[%s798] sm:$0xff] %vm550, %v2687
  %2698 = vst.msk [vmem:[%s796] sm:$0xff] %vm553, %v2687
  %v2699 = vld [vmem:[%s498] sm:$0xff]
  %v2700 = vld [vmem:[%s498 + $0x8] sm:$0xff]
  %v2702 = vsel %vm557, %v2696, 0
  %2704 = vmatprep.subr.mxu0 0.0
  %2705 = vmatpush1.msra.mxu0 0.0
  %2706 = vmatprep.subr.mxu0 0.0
  %2707 = vmatpush1.msra.mxu0 0.0
  %2708 = vmatprep.subr.mxu0 0.0
  %2709 = vmatpush1.msra.mxu0 0.0
  %2710 = vmatprep.subr.mxu0 0.0
  %2711 = vmatpush1.msra.mxu0 0.0
  %2712 = vmatprep.subr.mxu0 0.0
  %2713 = vmatpush1.msra.mxu0 0.0
  %2714 = vmatprep.subr.mxu0 0.0
  %2715 = vmatpush1.msra.mxu0 0.0
  %2716 = vmatprep.subr.mxu0 0.0
  %2717 = vmatpush1.msra.mxu0 0.0
  %2718 = vmatprep.subr.mxu0 0.0
  %2719 = vmatpush1.msra.mxu0 0.0
  %2720 = vmatprep.subr.mxu0 %v2068
  %2721 = vmatpush1.msra.mxu0 %v2067
  %2722 = vmatprep.subr.mxu0 %v2066
  %2723 = vmatpush1.msra.mxu0 %v2065
  %2724 = vmatprep.subr.mxu0 %v2064
  %2725 = vmatpush1.msra.mxu0 %v2063
  %2726 = vmatprep.subr.mxu0 %v2062
  %2727 = vmatpush1.msra.mxu0 %v2061
  %2728 = vmatprep.subr.mxu0 %v2060
  %2729 = vmatpush1.msra.mxu0 %v2059
  %2730 = vmatprep.subr.mxu0 %v2058
  %2731 = vmatpush1.msra.mxu0 %v2057
  %2732 = vmatprep.subr.mxu0 %v2056
  %2733 = vmatpush1.msra.mxu0 %v2055
  %2734 = vmatprep.subr.mxu0 %v2054
  %2735 = vmatpush1.msra.mxu0 %v2053
  %2736 = vmatprep.subr.mxu0 0.0
  %2737 = vmatpush2.msra.mxu0 0.0
  %2738 = vmatprep.subr.mxu0 0.0
  %2739 = vmatpush2.msra.mxu0 0.0
  %2740 = vmatprep.subr.mxu0 0.0
  %2741 = vmatpush2.msra.mxu0 0.0
  %2742 = vmatprep.subr.mxu0 0.0
  %2743 = vmatpush2.msra.mxu0 0.0
  %2744 = vmatprep.subr.mxu0 0.0
  %2745 = vmatpush2.msra.mxu0 0.0
  %2746 = vmatprep.subr.mxu0 0.0
  %2747 = vmatpush2.msra.mxu0 0.0
  %2748 = vmatprep.subr.mxu0 0.0
  %2749 = vmatpush2.msra.mxu0 0.0
  %2750 = vmatprep.subr.mxu0 0.0
  %2751 = vmatpush2.msra.mxu0 0.0
  %2752 = vmatprep.subr.mxu0 0.0
  %2753 = vmatpush2.msra.mxu0 0.0
  %2754 = vmatprep.subr.mxu0 0.0
  %2755 = vmatpush2.msra.mxu0 0.0
  %2756 = vmatprep.subr.mxu0 0.0
  %2757 = vmatpush2.msra.mxu0 0.0
  %2758 = vmatprep.subr.mxu0 0.0
  %2759 = vmatpush2.msra.mxu0 0.0
  %2760 = vmatprep.subr.mxu0 0.0
  %2761 = vmatpush2.msra.mxu0 0.0
  %2762 = vmatprep.subr.mxu0 0.0
  %2763 = vmatpush2.msra.mxu0 0.0
  %2764 = vmatprep.subr.mxu0 0.0
  %2765 = vmatpush2.msra.mxu0 0.0
  %2766 = vmatprep.subr.mxu0 0.0
  %2767 = vmatpush2.msra.mxu0 0.0
  %2768 = vmatprep.mubr.f32.mxu0 0.0
  %2769 = vmatmul.mubr.f32.gmra.mxu0 %v2702
  %v2770 = vpop.f32.mrf.mxu0
  %v2771 = vadd.f32 0.0, %v2770
  %v2772 = vpop.f32.mrf.mxu0
  %v2773 = vadd.f32 0.0, %v2772
  %2774 = vdwg.mxu0
  %v2775 = vadd.f32 %v2699, %v2771
  %v2776 = vadd.f32 %v2700, %v2773
  %v2777 = vxor.u32 %v2775, 2147483648
  %v2778 = vmul.f32 %v2777, 1.442695
  %v2779 = vpow.pop %v2778
  %v2780 = vadd.f32 %v2779, 1.0
  %v2781 = vrcp.pop %v2780
  %v2782 = vmul.f32 1.0, %v2781
  %v2783 = vtanh.pop %v2776
  %v2784 = vxor.u32 %v2776, 2147483648
  %v2785 = vmul.f32 %v2784, 1.442695
  %v2786 = vpow.pop %v2785
  %v2787 = vadd.f32 %v2786, 1.0
  %v2788 = vrcp.pop %v2787
  %v2789 = vmul.f32 1.0, %v2788
  %2791 = vrot.lane.b32.xlu0 %v2694, 64
  %v2792 = vpop.permute.xlu0 %2791
  %v2794 = vmul.f32 %v2782, %v2792
  %v2795 = vmul.f32 %v2782, %v2783
  %2797 = vrot.lane.b32.xlu0 %v2795, 64
  %v2798 = vpop.permute.xlu0 %2797
  %v2800 = vadd.f32 %v2794, %v2798
  %v2801 = vtanh.pop %v2800
  %v2802 = vmul.f32 %v2789, %v2801
  %2804 = vrot.lane.b32.xlu0 %v2802, 64
  %v2805 = vpop.permute.xlu0 %2804
  %v2807 = vmul.f32 %v85, %v2805
  %2809 = vrot.lane.b32.xlu0 %v2800, 64
  %v2810 = vpop.permute.xlu0 %2809
  %v2812 = vmul.f32 %v85, %v2810
  %v2813 = vmul.f32 %v92, %v2694
  %v2814 = vadd.f32 %v2812, %v2813
  %v2815 = vmul.f32 %v92, %v2696
  %v2816 = vadd.f32 %v2807, %v2815
  %2817 = vst.msk [vmem:[%s676] sm:$0xff] %vm550, %v2807
  %2818 = vst.msk [vmem:[%s674] sm:$0xff] %vm553, %v2807
  %v2819 = vld [vmem:[%s503] sm:$0xff]
  %v2820 = vld [vmem:[%s503 + $0x8] sm:$0xff]
  %v2822 = vsel %vm557, %v2816, 0
  %2824 = vmatprep.subr.mxu0 0.0
  %2825 = vmatpush1.msra.mxu0 0.0
  %2826 = vmatprep.subr.mxu0 0.0
  %2827 = vmatpush1.msra.mxu0 0.0
  %2828 = vmatprep.subr.mxu0 0.0
  %2829 = vmatpush1.msra.mxu0 0.0
  %2830 = vmatprep.subr.mxu0 0.0
  %2831 = vmatpush1.msra.mxu0 0.0
  %2832 = vmatprep.subr.mxu0 0.0
  %2833 = vmatpush1.msra.mxu0 0.0
  %2834 = vmatprep.subr.mxu0 0.0
  %2835 = vmatpush1.msra.mxu0 0.0
  %2836 = vmatprep.subr.mxu0 0.0
  %2837 = vmatpush1.msra.mxu0 0.0
  %2838 = vmatprep.subr.mxu0 0.0
  %2839 = vmatpush1.msra.mxu0 0.0
  %2840 = vmatprep.subr.mxu0 %v2068
  %2841 = vmatpush1.msra.mxu0 %v2067
  %2842 = vmatprep.subr.mxu0 %v2066
  %2843 = vmatpush1.msra.mxu0 %v2065
  %2844 = vmatprep.subr.mxu0 %v2064
  %2845 = vmatpush1.msra.mxu0 %v2063
  %2846 = vmatprep.subr.mxu0 %v2062
  %2847 = vmatpush1.msra.mxu0 %v2061
  %2848 = vmatprep.subr.mxu0 %v2060
  %2849 = vmatpush1.msra.mxu0 %v2059
  %2850 = vmatprep.subr.mxu0 %v2058
  %2851 = vmatpush1.msra.mxu0 %v2057
  %2852 = vmatprep.subr.mxu0 %v2056
  %2853 = vmatpush1.msra.mxu0 %v2055
  %2854 = vmatprep.subr.mxu0 %v2054
  %2855 = vmatpush1.msra.mxu0 %v2053
  %2856 = vmatprep.subr.mxu0 0.0
  %2857 = vmatpush2.msra.mxu0 0.0
  %2858 = vmatprep.subr.mxu0 0.0
  %2859 = vmatpush2.msra.mxu0 0.0
  %2860 = vmatprep.subr.mxu0 0.0
  %2861 = vmatpush2.msra.mxu0 0.0
  %2862 = vmatprep.subr.mxu0 0.0
  %2863 = vmatpush2.msra.mxu0 0.0
  %2864 = vmatprep.subr.mxu0 0.0
  %2865 = vmatpush2.msra.mxu0 0.0
  %2866 = vmatprep.subr.mxu0 0.0
  %2867 = vmatpush2.msra.mxu0 0.0
  %2868 = vmatprep.subr.mxu0 0.0
  %2869 = vmatpush2.msra.mxu0 0.0
  %2870 = vmatprep.subr.mxu0 0.0
  %2871 = vmatpush2.msra.mxu0 0.0
  %2872 = vmatprep.subr.mxu0 0.0
  %2873 = vmatpush2.msra.mxu0 0.0
  %2874 = vmatprep.subr.mxu0 0.0
  %2875 = vmatpush2.msra.mxu0 0.0
  %2876 = vmatprep.subr.mxu0 0.0
  %2877 = vmatpush2.msra.mxu0 0.0
  %2878 = vmatprep.subr.mxu0 0.0
  %2879 = vmatpush2.msra.mxu0 0.0
  %2880 = vmatprep.subr.mxu0 0.0
  %2881 = vmatpush2.msra.mxu0 0.0
  %2882 = vmatprep.subr.mxu0 0.0
  %2883 = vmatpush2.msra.mxu0 0.0
  %2884 = vmatprep.subr.mxu0 0.0
  %2885 = vmatpush2.msra.mxu0 0.0
  %2886 = vmatprep.subr.mxu0 0.0
  %2887 = vmatpush2.msra.mxu0 0.0
  %2888 = vmatprep.mubr.f32.mxu0 0.0
  %2889 = vmatmul.mubr.f32.gmra.mxu0 %v2822
  %v2890 = vpop.f32.mrf.mxu0
  %v2891 = vadd.f32 0.0, %v2890
  %v2892 = vpop.f32.mrf.mxu0
  %v2893 = vadd.f32 0.0, %v2892
  %2894 = vdwg.mxu0
  %v2895 = vadd.f32 %v2819, %v2891
  %v2896 = vadd.f32 %v2820, %v2893
  %v2897 = vxor.u32 %v2895, 2147483648
  %v2898 = vmul.f32 %v2897, 1.442695
  %v2899 = vpow.pop %v2898
  %v2900 = vadd.f32 %v2899, 1.0
  %v2901 = vrcp.pop %v2900
  %v2902 = vmul.f32 1.0, %v2901
  %v2903 = vtanh.pop %v2896
  %v2904 = vxor.u32 %v2896, 2147483648
  %v2905 = vmul.f32 %v2904, 1.442695
  %v2906 = vpow.pop %v2905
  %v2907 = vadd.f32 %v2906, 1.0
  %v2908 = vrcp.pop %v2907
  %v2909 = vmul.f32 1.0, %v2908
  %2911 = vrot.lane.b32.xlu0 %v2814, 64
  %v2912 = vpop.permute.xlu0 %2911
  %v2914 = vmul.f32 %v2902, %v2912
  %v2915 = vmul.f32 %v2902, %v2903
  %2917 = vrot.lane.b32.xlu0 %v2915, 64
  %v2918 = vpop.permute.xlu0 %2917
  %v2920 = vadd.f32 %v2914, %v2918
  %v2921 = vtanh.pop %v2920
  %v2922 = vmul.f32 %v2909, %v2921
  %2924 = vrot.lane.b32.xlu0 %v2922, 64
  %v2925 = vpop.permute.xlu0 %2924
  %v2927 = vmul.f32 %v86, %v2925
  %2928 = vst.msk [vmem:[%s552] sm:$0xff] %vm550, %v2927
  %2929 = vst.msk [vmem:[#allocation3] sm:$0xff] %vm553, %v2927
  %v2930 = vld [vmem:[#allocation3] sm:$0xff]
  %v2931 = vld [vmem:[#allocation3 + $0x8] sm:$0xff]
  %v2932 = vld [vmem:[#allocation3 + $0x10] sm:$0xff]
  %v2933 = vld [vmem:[#allocation3 + $0x18] sm:$0xff]
  %v2934 = vld [vmem:[#allocation3 + $0x20] sm:$0xff]
  %v2935 = vld [vmem:[#allocation3 + $0x28] sm:$0xff]
  %v2936 = vld [vmem:[#allocation3 + $0x30] sm:$0xff]
  %v2937 = vld [vmem:[#allocation3 + $0x38] sm:$0xff]
  %v2938 = vtanh.pop %v2930
  %v2939 = vtanh.pop %v2931
  %v2940 = vtanh.pop %v2932
  %v2941 = vtanh.pop %v2933
  %v2942 = vtanh.pop %v2934
  %v2943 = vtanh.pop %v2935
  %v2944 = vtanh.pop %v2936
  %v2945 = vtanh.pop %v2937
  %v2946 = vld [vmem:[%s9] sm:$0x1]
  %v2948 = vlaneseq
  %v2949 = vshrl.u32 %v2948, 7
  %v2950 = vsub.s32 0, %v2949
  %v2951 = vrot.slane %v2946, %v2950
  %v2953 = vmul.f32 %v2938, %v2951
  %v2954 = vmul.f32 %v2939, %v2951
  %v2955 = vmul.f32 %v2940, %v2951
  %v2956 = vmul.f32 %v2941, %v2951
  %v2957 = vmul.f32 %v2942, %v2951
  %v2958 = vmul.f32 %v2943, %v2951
  %v2959 = vmul.f32 %v2944, %v2951
  %v2960 = vmul.f32 %v2945, %v2951
  %v2961 = vsel %vm557, %v2953, 0.0
  %2962 = vadd.xlane.f32.xlu0 %v2961
  %v2963 = vpop.xlane.xlu0 %2962
  %v2964 = vsel %vm557, %v2954, 0.0
  %2965 = vadd.xlane.f32.xlu0 %v2964
  %v2966 = vpop.xlane.xlu0 %2965
  %v2967 = vsel %vm557, %v2955, 0.0
  %2968 = vadd.xlane.f32.xlu0 %v2967
  %v2969 = vpop.xlane.xlu0 %2968
  %v2970 = vsel %vm557, %v2956, 0.0
  %2971 = vadd.xlane.f32.xlu0 %v2970
  %v2972 = vpop.xlane.xlu0 %2971
  %v2973 = vsel %vm557, %v2957, 0.0
  %2974 = vadd.xlane.f32.xlu0 %v2973
  %v2975 = vpop.xlane.xlu0 %2974
  %v2976 = vsel %vm557, %v2958, 0.0
  %2977 = vadd.xlane.f32.xlu0 %v2976
  %v2978 = vpop.xlane.xlu0 %2977
  %v2979 = vsel %vm557, %v2959, 0.0
  %2980 = vadd.xlane.f32.xlu0 %v2979
  %v2981 = vpop.xlane.xlu0 %2980
  %v2982 = vsel %vm557, %v2960, 0.0
  %2983 = vadd.xlane.f32.xlu0 %v2982
  %v2984 = vpop.xlane.xlu0 %2983
  %v2985 = vld [vmem:[#allocation4] sm:$0x1]
  %v2987 = vlaneseq
  %v2988 = vshrl.u32 %v2987, 7
  %v2989 = vsub.s32 0, %v2988
  %v2990 = vrot.slane %v2985, %v2989
  %v2992 = vadd.f32 %v2963, %v2990
  %v2993 = vadd.f32 %v2966, %v2990
  %v2994 = vadd.f32 %v2969, %v2990
  %v2995 = vadd.f32 %v2972, %v2990
  %v2996 = vadd.f32 %v2975, %v2990
  %v2997 = vadd.f32 %v2978, %v2990
  %v2998 = vadd.f32 %v2981, %v2990
  %v2999 = vadd.f32 %v2984, %v2990
  %vm3000 = vcmask 7168
  %v3001 = vsel %vm3000, %v2992, -inf
  %v3002 = vsel %vm3000, %v2993, -inf
  %v3003 = vsel %vm3000, %v2994, -inf
  %v3004 = vsel %vm3000, %v2995, -inf
  %v3005 = vsel %vm3000, %v2996, -inf
  %v3006 = vmax.f32 %v3001, %v3005
  %v3007 = vsel %vm3000, %v2997, -inf
  %v3008 = vmax.f32 %v3002, %v3007
  %v3009 = vsel %vm3000, %v2998, -inf
  %v3010 = vmax.f32 %v3003, %v3009
  %v3011 = vsel %vm3000, %v2999, -inf
  %v3012 = vmax.f32 %v3004, %v3011
  %v3013 = vmax.f32 %v3006, %v3008
  %v3014 = vmax.f32 %v3010, %v3012
  %v3015 = vmax.f32 %v3013, %v3014
  %v3016 = vsub.f32 %v2992, %v3015
  %v3017 = vsub.f32 %v2993, %v3015
  %v3018 = vsub.f32 %v2994, %v3015
  %v3019 = vsub.f32 %v2995, %v3015
  %v3020 = vsub.f32 %v2996, %v3015
  %v3021 = vsub.f32 %v2997, %v3015
  %v3022 = vsub.f32 %v2998, %v3015
  %v3023 = vsub.f32 %v2999, %v3015
  %v3024 = vmul.f32 %v3016, 1.442695
  %v3025 = vpow.pop %v3024
  %v3026 = vmul.f32 %v3017, 1.442695
  %v3027 = vpow.pop %v3026
  %v3028 = vmul.f32 %v3018, 1.442695
  %v3029 = vpow.pop %v3028
  %v3030 = vmul.f32 %v3019, 1.442695
  %v3031 = vpow.pop %v3030
  %v3032 = vmul.f32 %v3020, 1.442695
  %v3033 = vpow.pop %v3032
  %v3034 = vmul.f32 %v3021, 1.442695
  %v3035 = vpow.pop %v3034
  %v3036 = vmul.f32 %v3022, 1.442695
  %v3037 = vpow.pop %v3036
  %v3038 = vmul.f32 %v3023, 1.442695
  %v3039 = vpow.pop %v3038
  %v3040 = vsel %vm3000, %v3025, 0.0
  %v3041 = vsel %vm3000, %v3027, 0.0
  %v3042 = vadd.f32 %v3040, %v3041
  %v3043 = vsel %vm3000, %v3029, 0.0
  %v3044 = vadd.f32 %v3042, %v3043
  %v3045 = vsel %vm3000, %v3031, 0.0
  %v3046 = vadd.f32 %v3044, %v3045
  %v3047 = vsel %vm3000, %v3033, 0.0
  %v3048 = vadd.f32 %v3046, %v3047
  %v3049 = vsel %vm3000, %v3035, 0.0
  %v3050 = vadd.f32 %v3048, %v3049
  %v3051 = vsel %vm3000, %v3037, 0.0
  %v3052 = vadd.f32 %v3050, %v3051
  %v3053 = vsel %vm3000, %v3039, 0.0
  %v3054 = vadd.f32 %v3052, %v3053
  %v3055 = vrcp.pop %v3054
  %v3056 = vmul.f32 %v3025, %v3055
  %v3057 = vmul.f32 %v3027, %v3055
  %v3058 = vmul.f32 %v3029, %v3055
  %v3059 = vmul.f32 %v3031, %v3055
  %v3060 = vmul.f32 %v3033, %v3055
  %v3061 = vmul.f32 %v3035, %v3055
  %v3062 = vmul.f32 %v3037, %v3055
  %v3063 = vmul.f32 %v3039, %v3055
  %3065 = vset.pattern.permute.xlu0 0
  %3066 = vperm.xlu0 %3065, %v3056
  %v3067 = vpop.permute.xlu0 %3066
  %3070 = vset.pattern.permute.xlu0 0
  %3071 = vperm.xlu0 %3070, %v3057
  %v3072 = vpop.permute.xlu0 %3071
  %3075 = vset.pattern.permute.xlu0 0
  %3076 = vperm.xlu0 %3075, %v3058
  %v3077 = vpop.permute.xlu0 %3076
  %3080 = vset.pattern.permute.xlu0 0
  %3081 = vperm.xlu0 %3080, %v3059
  %v3082 = vpop.permute.xlu0 %3081
  %3085 = vset.pattern.permute.xlu0 0
  %3086 = vperm.xlu0 %3085, %v3060
  %v3087 = vpop.permute.xlu0 %3086
  %3090 = vset.pattern.permute.xlu0 0
  %3091 = vperm.xlu0 %3090, %v3061
  %v3092 = vpop.permute.xlu0 %3091
  %3095 = vset.pattern.permute.xlu0 0
  %3096 = vperm.xlu0 %3095, %v3062
  %v3097 = vpop.permute.xlu0 %3096
  %3100 = vset.pattern.permute.xlu0 0
  %3101 = vperm.xlu0 %3100, %v3063
  %v3102 = vpop.permute.xlu0 %3101
  %v3104 = vmul.f32 %v3067, %v2938
  %v3105 = vmul.f32 %v3072, %v2939
  %v3106 = vmul.f32 %v3077, %v2940
  %v3107 = vmul.f32 %v3082, %v2941
  %v3108 = vmul.f32 %v3087, %v2942
  %v3109 = vmul.f32 %v3092, %v2943
  %v3110 = vmul.f32 %v3097, %v2944
  %v3111 = vmul.f32 %v3102, %v2945
  %v3112 = vsel %vm557, %v3104, 0.0
  %v3113 = vsel %vm557, %v3105, 0.0
  %v3114 = vadd.f32 %v3112, %v3113
  %v3115 = vsel %vm557, %v3106, 0.0
  %v3116 = vadd.f32 %v3114, %v3115
  %v3117 = vsel %vm557, %v3107, 0.0
  %v3118 = vadd.f32 %v3116, %v3117
  %v3119 = vsel %vm557, %v3108, 0.0
  %v3120 = vadd.f32 %v3118, %v3119
  %v3121 = vsel %vm557, %v3109, 0.0
  %v3122 = vadd.f32 %v3120, %v3121
  %v3123 = vsel %vm557, %v3110, 0.0
  %v3124 = vadd.f32 %v3122, %v3123
  %v3125 = vsel %vm557, %v3111, 0.0
  %v3126 = vadd.f32 %v3124, %v3125
  %v3127 = vld [vmem:[%s11] sm:$0xff]
  %v3128 = vld [vmem:[%s11 + $0x8] sm:$0xff]
  %v3129 = vld [vmem:[%s11 + $0x10] sm:$0xff]
  %v3130 = vld [vmem:[%s11 + $0x18] sm:$0xff]
  %v3131 = vld [vmem:[%s11 + $0x20] sm:$0xff]
  %v3132 = vld [vmem:[%s11 + $0x28] sm:$0xff]
  %v3133 = vld [vmem:[%s11 + $0x30] sm:$0xff]
  %v3134 = vld [vmem:[%s11 + $0x38] sm:$0xff]
  %v3135 = vld [vmem:[%s12] sm:$0x1]
  %v3137 = vlaneseq
  %v3138 = vshrl.u32 %v3137, 7
  %v3139 = vsub.s32 0, %v3138
  %v3140 = vrot.slane %v3135, %v3139
  %v3143 = vsel %vm557, %v3126, 0
  %3145 = vmatprep.subr.mxu0 0.0
  %3146 = vmatpush1.msra.mxu0 0.0
  %3147 = vmatprep.subr.mxu0 0.0
  %3148 = vmatpush1.msra.mxu0 0.0
  %3149 = vmatprep.subr.mxu0 0.0
  %3150 = vmatpush1.msra.mxu0 0.0
  %3151 = vmatprep.subr.mxu0 0.0
  %3152 = vmatpush1.msra.mxu0 0.0
  %3153 = vmatprep.subr.mxu0 0.0
  %3154 = vmatpush1.msra.mxu0 0.0
  %3155 = vmatprep.subr.mxu0 0.0
  %3156 = vmatpush1.msra.mxu0 0.0
  %3157 = vmatprep.subr.mxu0 0.0
  %3158 = vmatpush1.msra.mxu0 0.0
  %3159 = vmatprep.subr.mxu0 0.0
  %3160 = vmatpush1.msra.mxu0 0.0
  %3161 = vmatprep.subr.mxu0 0.0
  %3162 = vmatpush1.msra.mxu0 %v3134
  %3163 = vmatprep.subr.mxu0 0.0
  %3164 = vmatpush1.msra.mxu0 %v3133
  %3165 = vmatprep.subr.mxu0 0.0
  %3166 = vmatpush1.msra.mxu0 %v3132
  %3167 = vmatprep.subr.mxu0 0.0
  %3168 = vmatpush1.msra.mxu0 %v3131
  %3169 = vmatprep.subr.mxu0 0.0
  %3170 = vmatpush1.msra.mxu0 %v3130
  %3171 = vmatprep.subr.mxu0 0.0
  %3172 = vmatpush1.msra.mxu0 %v3129
  %3173 = vmatprep.subr.mxu0 0.0
  %3174 = vmatpush1.msra.mxu0 %v3128
  %3175 = vmatprep.subr.mxu0 0.0
  %3176 = vmatpush1.msra.mxu0 %v3127
  %3177 = vmatprep.subr.mxu0 0.0
  %3178 = vmatpush2.msra.mxu0 0.0
  %3179 = vmatprep.subr.mxu0 0.0
  %3180 = vmatpush2.msra.mxu0 0.0
  %3181 = vmatprep.subr.mxu0 0.0
  %3182 = vmatpush2.msra.mxu0 0.0
  %3183 = vmatprep.subr.mxu0 0.0
  %3184 = vmatpush2.msra.mxu0 0.0
  %3185 = vmatprep.subr.mxu0 0.0
  %3186 = vmatpush2.msra.mxu0 0.0
  %3187 = vmatprep.subr.mxu0 0.0
  %3188 = vmatpush2.msra.mxu0 0.0
  %3189 = vmatprep.subr.mxu0 0.0
  %3190 = vmatpush2.msra.mxu0 0.0
  %3191 = vmatprep.subr.mxu0 0.0
  %3192 = vmatpush2.msra.mxu0 0.0
  %3193 = vmatprep.subr.mxu0 0.0
  %3194 = vmatpush2.msra.mxu0 0.0
  %3195 = vmatprep.subr.mxu0 0.0
  %3196 = vmatpush2.msra.mxu0 0.0
  %3197 = vmatprep.subr.mxu0 0.0
  %3198 = vmatpush2.msra.mxu0 0.0
  %3199 = vmatprep.subr.mxu0 0.0
  %3200 = vmatpush2.msra.mxu0 0.0
  %3201 = vmatprep.subr.mxu0 0.0
  %3202 = vmatpush2.msra.mxu0 0.0
  %3203 = vmatprep.subr.mxu0 0.0
  %3204 = vmatpush2.msra.mxu0 0.0
  %3205 = vmatprep.subr.mxu0 0.0
  %3206 = vmatpush2.msra.mxu0 0.0
  %3207 = vmatprep.subr.mxu0 0.0
  %3208 = vmatpush2.msra.mxu0 0.0
  %3209 = vmatprep.mubr.f32.mxu0 0.0
  %3210 = vmatmul.mubr.f32.gmra.mxu0 %v3143
  %v3211 = vpop.f32.mrf.mxu0
  %v3212 = vadd.f32 %v3140, %v3211
  %v3213 = vpop.f32.mrf.mxu0
  %3214 = vdwg.mxu0
  %vm3215 = vcmask 23552
  %3216 = vst.msk [vmem:[%s13] sm:$0xff] %vm3215, %v3212
  %vm3217 = vcmp.eq.s32.totalorder %v50, 0
  %vm3218 = vcmp.eq.s32.totalorder %v50, 1
  %vm3219 = vcmp.eq.s32.totalorder %v50, 2
  %vm3220 = vcmp.eq.s32.totalorder %v50, 3
  %vm3221 = vcmp.eq.s32.totalorder %v50, 4
  %vm3222 = vcmp.eq.s32.totalorder %v50, 5
  %vm3223 = vcmp.eq.s32.totalorder %v50, 6
  %vm3224 = vcmp.eq.s32.totalorder %v50, 7
  %v3225 = vsel %vm3217, %v3067, 0.0
  %v3226 = vsel %vm3218, %v3072, 0.0
  %v3227 = vsel %vm3219, %v3077, 0.0
  %v3228 = vsel %vm3220, %v3082, 0.0
  %v3229 = vsel %vm3221, %v3087, 0.0
  %v3230 = vsel %vm3222, %v3092, 0.0
  %v3231 = vsel %vm3223, %v3097, 0.0
  %v3232 = vsel %vm3224, %v3102, 0.0
  %vm3233 = vcmask 64512
  %v3234 = vsel %vm3233, %v3225, 0.0
  %v3235 = vsel %vm3233, %v3226, 0.0
  %v3236 = vadd.f32 %v3234, %v3235
  %v3237 = vsel %vm3233, %v3227, 0.0
  %v3238 = vadd.f32 %v3236, %v3237
  %v3239 = vsel %vm3233, %v3228, 0.0
  %v3240 = vadd.f32 %v3238, %v3239
  %v3241 = vsel %vm3233, %v3229, 0.0
  %v3242 = vadd.f32 %v3240, %v3241
  %v3243 = vsel %vm3233, %v3230, 0.0
  %v3244 = vadd.f32 %v3242, %v3243
  %v3245 = vsel %vm3233, %v3231, 0.0
  %v3246 = vadd.f32 %v3244, %v3245
  %v3247 = vsel %vm3233, %v3232, 0.0
  %v3248 = vadd.f32 %v3246, %v3247
  %3249 = vst.msk [vmem:[%s14] sm:$0xff] %vm3233, %v3248
  // Predicated region
  $region54: #{rnn_forward.1} parent=0 // pred_check
    _
  $region55: #{rnn_forward.1} parent=0 // pred_check_branch
    %3251 = sbr.rel (0) target = $region57
  $region56: #{rnn_forward.1} parent=0 // pred_region
    _
  $region57: #{rnn_forward.1} parent=0 // pred_fallthru
    _
  // Predicated region
  $region58: #{rnn_forward.1} parent=0 // pred_check
    _
  $region59: #{rnn_forward.1} parent=0 // pred_check_branch
    %3253 = sbr.rel (0) target = $region61
  $region60: #{rnn_forward.1} parent=0 // pred_region
    _
  $region61: #{rnn_forward.1} parent=0 // pred_fallthru
    _
  // Predicated region
  $region62: #{rnn_forward.1} parent=0 // pred_check
    _
  $region63: #{rnn_forward.1} parent=0 // pred_check_branch
    %3255 = sbr.rel (0) target = $region65
  $region64: #{rnn_forward.1} parent=0 // pred_region
    _
  $region65: #{rnn_forward.1} parent=0 // pred_fallthru
    _
  // Predicated region
  $region66: #{rnn_forward.1} parent=0 // pred_check
    _
  $region67: #{rnn_forward.1} parent=0 // pred_check_branch
    %3257 = sbr.rel (0) target = $region69
  $region68: #{rnn_forward.1} parent=0 // pred_region
    _
  $region69: #{rnn_forward.1} parent=0 // pred_fallthru
    _

</llo_original>
